<compile_context>
chip_gen: v7x
topology: tpu7x:2x2x1
jax: 0.10.0
libtpu: 0.0.40
codegen_flags: <defaults>
</compile_context>

<pallas_src>
import numpy as np

import jax
import jax.numpy as jnp
from jax.experimental import pallas as pl
from jax.experimental.pallas import tpu as pltpu

MAX_DEPTH = 100.0
MIN_DEPTH = 0.1

NUM_EXT_CHANNELS = 2          # exercises the `extra` branch
OUT_MODE = "disp"
EXT_TYPE = "pixelwise"
FEATS_MODE = "dec"

_LANE = 128
_TM_MAX = 2048                # max rows (M) per non-head GEMM grid step
_TN_MAX = 2048                # max lanes (M) per transposed-head grid step
_HEAD_ROWS = 16               # cout = 1+ext padded to one bf16 sublane pack
_VMEM_LIMIT = 32 * 1024 * 1024  # keep v7x (64 MiB per TC) safe


def _cdiv(a, b):
    return (a + b - 1) // b


def _round_up(n, m):
    return _cdiv(n, m) * m


# ---------------------------------------------------------------------------
# Pallas kernels
# ---------------------------------------------------------------------------
def _gemm_bias_relu_kernel(x_ref, w_ref, b_ref, o_ref):
    """[tm,Kp]bf16 @ [Kp,128]bf16 -> f32 acc, + bias, ReLU, store bf16."""
    y = jnp.dot(x_ref[...], w_ref[...], preferred_element_type=jnp.float32)
    y = jnp.maximum(y + b_ref[...], 0.0)
    o_ref[...] = y.astype(o_ref.dtype)


def _head_gemm_t_kernel(xt_ref, wt_ref, bt_ref, o_ref):
    """Transposed narrow-N head: [16,Kp]bf16 @ [Kp,tn]bf16 -> [16,tn] f32.

    Row 0 carries the fused out_mode=='disp' mapping (sigmoid + affine, on the
    EUP, computed only on the single (1, tn) slice); rows 1..2 are the raw
    pixelwise `extra` channels; rows 3..15 are padding and never read back.
    """
    y = jnp.dot(wt_ref[...], xt_ref[...], preferred_element_type=jnp.float32)
    y = y + bt_ref[...]
    min_disp = 1.0 / MAX_DEPTH
    max_disp = 1.0 / MIN_DEPTH
    disp = min_disp + (max_disp - min_disp) * jax.nn.sigmoid(y[0:1, :])
    row = jax.lax.broadcasted_iota(jnp.int32, y.shape, 0)
    o_ref[...] = jnp.where(row == 0, disp, y)


# ---------------------------------------------------------------------------
# Single-buffering for grid-invariant operands (weights / bias)
# ---------------------------------------------------------------------------
_SINGLE_BUFFER_OK = None


def _single_buffering_supported():
    """Probe whether this JAX/Mosaic build accepts pl.Buffered(1) BlockSpecs."""
    global _SINGLE_BUFFER_OK
    if _SINGLE_BUFFER_OK is None:
        def _copy(x_ref, o_ref):
            o_ref[...] = x_ref[...]
        try:
            spec = pl.BlockSpec((8, 128), lambda i: (0, 0),
                                pipeline_mode=pl.Buffered(1))
            out = pl.pallas_call(
                _copy,
                out_shape=jax.ShapeDtypeStruct((8, 128), jnp.float32),
                grid=(1,),
                in_specs=[spec],
                out_specs=pl.BlockSpec((8, 128), lambda i: (0, 0)),
            )(jnp.zeros((8, 128), jnp.float32))
            jax.block_until_ready(out)
            _SINGLE_BUFFER_OK = True
        except Exception:  # older / stricter builds: fall back to 2 buffers
            _SINGLE_BUFFER_OK = False
    return _SINGLE_BUFFER_OK


def _resident_spec(block_shape, index_map):
    """BlockSpec for operands whose index_map is constant across the grid:
    the second pipeline buffer is pure VMEM waste, so request 1 buffer."""
    if _single_buffering_supported():
        return pl.BlockSpec(block_shape, index_map,
                            pipeline_mode=pl.Buffered(1))
    return pl.BlockSpec(block_shape, index_map)


# ---------------------------------------------------------------------------
# Pallas wrappers
# ---------------------------------------------------------------------------
def pallas_gemm_relu(cols, wp, bp, tm):
    """relu(cols @ wp + bp) -> bf16.

    cols : [Mp, Kp] bf16 (already padded), wp : [Kp, 128] bf16, bp : [1, 128] f32.
    """
    Mp, Kp = cols.shape
    Kw, Np = wp.shape
    assert Kw == Kp and Mp % tm == 0 and bp.shape == (1, Np)
    return pl.pallas_call(
        _gemm_bias_relu_kernel,
        out_shape=jax.ShapeDtypeStruct((Mp, Np), jnp.bfloat16),
        grid=(Mp // tm,),
        in_specs=[
            pl.BlockSpec((tm, Kp), lambda i: (i, 0)),     # activations (pipelined)
            _resident_spec((Kp, Np), lambda i: (0, 0)),   # weights (grid-invariant)
            _resident_spec((1, Np), lambda i: (0, 0)),    # bias
        ],
        out_specs=pl.BlockSpec((tm, Np), lambda i: (i, 0)),
        compiler_params=pltpu.CompilerParams(
            dimension_semantics=("parallel",),
            vmem_limit_bytes=_VMEM_LIMIT,
        ),
        cost_estimate=pl.CostEstimate(
            flops=2 * Mp * Kp * Np,
            transcendentals=0,
            bytes_accessed=Mp * Kp * 2 + Kp * Np * 2 + Np * 4 + Mp * Np * 2,
        ),
    )(cols, wp, bp)


def pallas_head_gemm_t(cols_t, wt, bt, tn):
    """Transposed head GEMM with fused disp epilogue on row 0 -> [16, Mp] f32."""
    Kp, Mp = cols_t.shape
    Cp, Kw = wt.shape
    assert Kw == Kp and Mp % tn == 0 and bt.shape == (Cp, 1)
    return pl.pallas_call(
        _head_gemm_t_kernel,
        out_shape=jax.ShapeDtypeStruct((Cp, Mp), jnp.float32),
        grid=(Mp // tn,),
        in_specs=[
            pl.BlockSpec((Kp, tn), lambda i: (0, i)),     # colsT tile (pipelined)
            _resident_spec((Cp, Kp), lambda i: (0, 0)),   # transposed weights
            _resident_spec((Cp, 1), lambda i: (0, 0)),    # bias column
        ],
        out_specs=pl.BlockSpec((Cp, tn), lambda i: (0, i)),
        compiler_params=pltpu.CompilerParams(
            dimension_semantics=("parallel",),
            vmem_limit_bytes=_VMEM_LIMIT,
        ),
        cost_estimate=pl.CostEstimate(
            flops=2 * Cp * Kp * Mp,
            transcendentals=Mp,
            bytes_accessed=Kp * Mp * 2 + Cp * Kp * 2 + Cp * 4 + Cp * Mp * 4,
        ),
    )(cols_t, wt, bt)


# ---------------------------------------------------------------------------
# Tiling helpers
# ---------------------------------------------------------------------------
def _tile_rows(M):
    """M tile for the row-major GEMM: multiple of 16 (bf16 sublane pack),
    <= _TM_MAX, and >= 2 tiles when M allows it (v7x: both TensorCores)."""
    Mp = _round_up(M, 16)
    n = max(2, _cdiv(Mp, _TM_MAX))
    tm = _round_up(_cdiv(Mp, n), 16)
    Mp = _round_up(Mp, tm)
    return Mp, tm


def _tile_lanes(M):
    """M tile for the transposed head GEMM (M lives on the lane axis)."""
    Mp = _round_up(M, _LANE)
    n = max(2, _cdiv(Mp, _TN_MAX))
    tn = _round_up(_cdiv(Mp, n), _LANE)
    Mp = _round_up(Mp, tn)
    return Mp, tn


# ---------------------------------------------------------------------------
# Conv glue: per-tap patch construction (XLA) feeding the Pallas GEMMs
# ---------------------------------------------------------------------------
def _tap_patches(inputs, stride):
    """Per-tap patches for a 3x3 conv with padding=1.

    inputs: list of (nhwc bf16 tensor, upsample2x flag).  Upsampled inputs are
    indexed directly with static gather indices + border mask, so the 2x
    nearest-neighbour upsample (and the pre-conv channel concat) are never
    materialized in HBM.  Returns ([9 x (B,Ho,Wo,Ctot)], B, Ho, Wo) in
    tap-major / channel-minor order.
    """
    B = inputs[0][0].shape[0]
    H = inputs[0][0].shape[1] * (2 if inputs[0][1] else 1)
    W = inputs[0][0].shape[2] * (2 if inputs[0][1] else 1)
    for x, up in inputs:
        s = 2 if up else 1
        assert x.shape[0] == B and x.shape[1] * s == H and x.shape[2] * s == W
    Ho = (H - 1) // stride + 1
    Wo = (W - 1) // stride + 1

    per_input = []
    for x, up in inputs:
        taps = []
        if not up:
            xpad = jnp.pad(x, ((0, 0), (1, 1), (1, 1), (0, 0)))
            for i in range(3):
                for j in range(3):
                    taps.append(
                        xpad[:, i:i + (Ho - 1) * stride + 1:stride,
                                j:j + (Wo - 1) * stride + 1:stride, :])
        else:
            assert stride == 1
            Hd, Wd = x.shape[1], x.shape[2]
            for i in range(3):
                hh = i + np.arange(2 * Hd)
                vh = (hh >= 1) & (hh <= 2 * Hd)
                sh = np.clip((hh - 1) // 2, 0, Hd - 1)
                for j in range(3):
                    ww = j + np.arange(2 * Wd)
                    vw = (ww >= 1) & (ww <= 2 * Wd)
                    sw = np.clip((ww - 1) // 2, 0, Wd - 1)
                    g = x[:, sh][:, :, sw]                    # [B,2Hd,2Wd,C]
                    mask = jnp.asarray(
                        (vh[:, None] & vw[None, :])[None, :, :, None])
                    taps.append(jnp.where(mask, g, jnp.zeros((), x.dtype)))
        per_input.append(taps)

    if len(inputs) == 1:
        patches = per_input[0]
    else:
        patches = [jnp.concatenate([t[k] for t in per_input], axis=-1)
                   for k in range(9)]
    return patches, B, Ho, Wo


def conv3x3(inputs, layer, stride=1):
    """3x3 conv (pad=1) + bias + ReLU: XLA patch glue + Pallas GEMM hot path.

    Returns bf16 NHWC [B, Ho, Wo, cout]."""
    patches, B, Ho, Wo = _tap_patches(inputs, stride)
    K = 9 * sum(x.shape[-1] for x, _ in inputs)
    Kp, _ = layer["w"].shape
    M = B * Ho * Wo
    Mp, tm = _tile_rows(M)
    # Build the im2col matrix directly at padded (Mp, Kp): the K padding is
    # folded into the tap concatenate, M padding into a single zero-row concat
    # (no separate full-matrix jnp.pad pass).
    if Kp > K:
        patches = patches + [jnp.zeros((B, Ho, Wo, Kp - K), jnp.bfloat16)]
    cols = jnp.concatenate(patches, axis=-1).reshape(M, Kp)
    if Mp > M:
        cols = jnp.concatenate(
            [cols, jnp.zeros((Mp - M, Kp), jnp.bfloat16)], axis=0)
    y = pallas_gemm_relu(cols, layer["w"], layer["b"], tm)    # [Mp, 128] bf16
    return y[:M, :layer["cout"]].reshape(B, Ho, Wo, layer["cout"])


def head_conv3x3(x, layer):
    """Narrow-N head conv (cout = 1 + num_ext) as a transposed Pallas GEMM
    with the out_mode=='disp' mapping fused onto output channel 0.

    Returns f32 NCHW [B, 1+ext, Ho, Wo]."""
    patches, B, Ho, Wo = _tap_patches([(x, False)], 1)
    C = x.shape[-1]
    K = 9 * C
    Cp, Kp = layer["wt"].shape
    M = B * Ho * Wo
    Mp, tn = _tile_lanes(M)
    rows = [jnp.transpose(p, (3, 0, 1, 2)).reshape(C, M) for p in patches]
    if Kp > K:
        rows.append(jnp.zeros((Kp - K, M), jnp.bfloat16))
    cols_t = jnp.concatenate(rows, axis=0)                    # [Kp, M]
    if Mp > M:
        cols_t = jnp.concatenate(
            [cols_t, jnp.zeros((Kp, Mp - M), jnp.bfloat16)], axis=1)
    ot = pallas_head_gemm_t(cols_t, layer["wt"], layer["bt"], tn)  # [16,Mp] f32
    out = ot[:layer["cout"], :M].reshape(layer["cout"], B, Ho, Wo)
    return jnp.transpose(out, (1, 0, 2, 3))


# ---------------------------------------------------------------------------
# Parameters (deterministic, synthetic) — padded + bf16-cast ONCE at init
# ---------------------------------------------------------------------------
IN_CH = 4
ENC_CH = [8, 16, 32]           # num_ch_skipt
DEC_CH = [32, 16, 8]
OUT_CH = 1 + NUM_EXT_CHANNELS  # num_ch_out


def init_params(key):
    # NOTE: the flat K layout is tap-major / channel-minor ((kh,kw) outer, Cin
    # inner). Real pretrained [Cout,Cin,3,3] weights must be permuted to a
    # (kh,kw,Cin)-flattened layout before this padding, or results are wrong.
    def conv_param(k, cin, cout):
        k1, k2 = jax.random.split(k)
        fan_in = 9 * cin
        w = jax.random.normal(k1, (fan_in, cout), jnp.float32) / jnp.sqrt(fan_in)
        b = 0.01 * jax.random.normal(k2, (cout,), jnp.float32)
        kp = _round_up(fan_in, _LANE)
        assert cout <= _LANE
        wp = jnp.zeros((kp, _LANE), jnp.bfloat16).at[:fan_in, :cout].set(
            w.astype(jnp.bfloat16))
        bp = jnp.zeros((1, _LANE), jnp.float32).at[0, :cout].set(b)
        return {"w": wp, "b": bp, "cout": cout}

    def head_param(k, cin, cout):
        k1, k2 = jax.random.split(k)
        fan_in = 9 * cin
        w = jax.random.normal(k1, (fan_in, cout), jnp.float32) / jnp.sqrt(fan_in)
        b = 0.01 * jax.random.normal(k2, (cout,), jnp.float32)
        kp = _round_up(fan_in, _LANE)
        assert cout <= _HEAD_ROWS
        wt = jnp.zeros((_HEAD_ROWS, kp), jnp.bfloat16).at[:cout, :fan_in].set(
            w.T.astype(jnp.bfloat16))
        bt = jnp.zeros((_HEAD_ROWS, 1), jnp.float32).at[:cout, 0].set(b)
        return {"wt": wt, "bt": bt, "cout": cout}

    keys = jax.random.split(key, 9)
    p = {}
    p["enc0"] = conv_param(keys[0], IN_CH, ENC_CH[0])
    p["enc1"] = conv_param(keys[1], ENC_CH[0], ENC_CH[1])
    p["enc2"] = conv_param(keys[2], ENC_CH[1], ENC_CH[2])
    p["dec2"] = conv_param(keys[3], ENC_CH[2], DEC_CH[0])
    p["head2"] = head_param(keys[4], DEC_CH[0], OUT_CH)
    p["dec1"] = conv_param(keys[5], DEC_CH[0] + ENC_CH[1], DEC_CH[1])
    p["head1"] = head_param(keys[6], DEC_CH[1], OUT_CH)
    p["dec0"] = conv_param(keys[7], DEC_CH[1] + ENC_CH[0], DEC_CH[2])
    p["head0"] = head_param(keys[8], DEC_CH[2], OUT_CH)
    return p


# ---------------------------------------------------------------------------
# DepthNet forward
# ---------------------------------------------------------------------------
def depthnet_forward(inputs_nchw, params):
    """Returns (preds, extra, feats) like DepthNet.forward.

    preds: list of [B, 1, h, w] f32 (disp-mapped), coarse -> fine.
    extra: list of [B, num_ext_channels, h, w] f32 (ext_type='pixelwise').
    feats: list of decoder feature maps [B, C, h, w] (feats_mode='dec');
           returned in bf16 (bf16 MXU pipeline — will not bit-match an f32
           PyTorch reference; tolerance ~1e-2).
    """
    # bf16 BEFORE any patch construction (halves im2col HBM bytes).
    x = jnp.transpose(inputs_nchw, (0, 2, 3, 1)).astype(jnp.bfloat16)  # NHWC
    p = params

    # ----- encoder (3 scales); dropout == 0.0 -> no-op (eval semantics) -----
    f0 = conv3x3([(x, False)], p["enc0"], stride=2)     # H/2
    f1 = conv3x3([(f0, False)], p["enc1"], stride=2)    # H/4
    f2 = conv3x3([(f1, False)], p["enc2"], stride=2)    # H/8

    # ----- decoder; 2x upsample + skip-concat folded into patch construction,
    #       heads carry the fused disp epilogue on a narrow transposed GEMM
    d2 = conv3x3([(f2, False)], p["dec2"])
    out2 = head_conv3x3(d2, p["head2"])
    d1 = conv3x3([(d2, True), (f1, False)], p["dec1"])
    out1 = head_conv3x3(d1, p["head1"])
    d0 = conv3x3([(d1, True), (f0, False)], p["dec0"])
    out0 = head_conv3x3(d0, p["head0"])

    outs = [out2, out1, out0]                 # coarse -> fine, [B,1+ext,h,w]
    preds = [o[:, :1] for o in outs]          # channel 0 already disp-mapped
    extra = [o[:, 1:] for o in outs]          # ext_type == 'pixelwise'
    feats = [jnp.transpose(d, (0, 3, 1, 2)) for d in (d2, d1, d0)]  # 'dec'

    if NUM_EXT_CHANNELS:
        return preds, extra, feats
    return preds, None, feats


# ---------------------------------------------------------------------------
if __name__ == "__main__":
    key = jax.random.PRNGKey(0)
    k_param, k_inp = jax.random.split(key)
    params = init_params(k_param)
    x = jax.random.normal(k_inp, (2, IN_CH, 16, 16), jnp.float32)  # [B,C,H,W]

    fwd = jax.jit(lambda inp: depthnet_forward(inp, params))
    preds, extra, feats = fwd(x)
    jax.block_until_ready((preds, extra, feats))

    # light sanity checks
    assert preds[0].shape == (2, 1, 2, 2)
    assert preds[-1].shape == (2, 1, 8, 8)
    assert extra[-1].shape == (2, NUM_EXT_CHANNELS, 8, 8)
    assert feats[-1].shape == (2, DEC_CH[2], 8, 8)
    assert bool(jnp.all(preds[-1] >= 1.0 / MAX_DEPTH)) and bool(
        jnp.all(preds[-1] <= 1.0 / MIN_DEPTH))

    print("KERNEL_OK")
</pallas_src>

<mosaic_0001>
module attributes {stable_mosaic.version = 11 : i64} {
  func.func @_gemm_bias_relu_kernel(%arg0: i32, %arg1: memref<64x128xbf16, #tpu.memory_space<vmem>>, %arg2: memref<128x128xbf16, #tpu.memory_space<vmem>>, %arg3: memref<1x128xf32, #tpu.memory_space<vmem>>, %arg4: memref<64x128xbf16, #tpu.memory_space<vmem>>) attributes {dimension_semantics = [#tpu.dimension_semantics<parallel>], iteration_bounds = array<i64: 2>, scalar_prefetch = 0 : i64, scratch_operands = 0 : i64, tpu.core_type = #tpu.core_type<tc>, window_params = [{transform_indices = @transform_0, window_bounds = array<i64: 64, 128>}, {pipeline_mode = #tpu.pipeline_mode<synchronous>, transform_indices = @transform_1, window_bounds = array<i64: 128, 128>}, {pipeline_mode = #tpu.pipeline_mode<synchronous>, transform_indices = @transform_2, window_bounds = array<i64: 1, 128>}, {transform_indices = @transform_3, window_bounds = array<i64: 64, 128>}]} {
    %c0 = arith.constant 0 : index
    %c0_0 = arith.constant 0 : index
    %0 = vector.load %arg1[%c0, %c0_0] : memref<64x128xbf16, #tpu.memory_space<vmem>>, vector<64x128xbf16>
    %c0_1 = arith.constant 0 : index
    %c0_2 = arith.constant 0 : index
    %1 = vector.load %arg2[%c0_1, %c0_2] : memref<128x128xbf16, #tpu.memory_space<vmem>>, vector<128x128xbf16>
    %cst = arith.constant dense<0.000000e+00> : vector<64x128xf32>
    %2 = tpu.matmul %0, %1, %cst {dimension_numbers = #tpu.dot_dimension_numbers<[1], [0], [0], [1], [0, 0, 1, 1], [], []>} : vector<64x128xbf16>, vector<128x128xbf16>, vector<64x128xf32> -> vector<64x128xf32>
    %c0_3 = arith.constant 0 : index
    %c0_4 = arith.constant 0 : index
    %3 = vector.load %arg3[%c0_3, %c0_4] : memref<1x128xf32, #tpu.memory_space<vmem>>, vector<1x128xf32>
    %4 = vector.broadcast %3 : vector<1x128xf32> to vector<64x128xf32>
    %5 = arith.addf %2, %4 : vector<64x128xf32>
    %cst_5 = arith.constant 0.000000e+00 : f32
    %6 = vector.broadcast %cst_5 : f32 to vector<64x128xf32>
    %7 = arith.maximumf %5, %6 : vector<64x128xf32>
    %8 = arith.truncf %7 : vector<64x128xf32> to vector<64x128xbf16>
    %c0_6 = arith.constant 0 : index
    %c0_7 = arith.constant 0 : index
    %9 = vector.load %arg4[%c0_6, %c0_7] : memref<64x128xbf16, #tpu.memory_space<vmem>>, vector<64x128xbf16>
    tpu.vector_store %arg4[%c0_6, %c0_7], %8 {strides = array<i32>} : memref<64x128xbf16, #tpu.memory_space<vmem>>, vector<64x128xbf16>,
    return
  }
  func.func @transform_0(%arg0: i32) -> (i32, i32) {
    %c0_i32 = arith.constant 0 : i32
    %c0_i32_0 = arith.constant 0 : i32
    return %arg0, %c0_i32 : i32, i32
  }
  func.func @transform_1(%arg0: i32) -> (i32, i32) {
    %c0_i32 = arith.constant 0 : i32
    %c0_i32_0 = arith.constant 0 : i32
    %c0_i32_1 = arith.constant 0 : i32
    return %c0_i32, %c0_i32_0 : i32, i32
  }
  func.func @transform_2(%arg0: i32) -> (i32, i32) {
    %c0_i32 = arith.constant 0 : i32
    %c0_i32_0 = arith.constant 0 : i32
    %c0_i32_1 = arith.constant 0 : i32
    return %c0_i32, %c0_i32_0 : i32, i32
  }
  func.func @transform_3(%arg0: i32) -> (i32, i32) {
    %c0_i32 = arith.constant 0 : i32
    %c0_i32_0 = arith.constant 0 : i32
    return %arg0, %c0_i32 : i32, i32
  }
}

module attributes {stable_mosaic.version = 11 : i64} {
  func.func @_gemm_bias_relu_kernel(%arg0: i32, %arg1: memref<16x128xbf16, #tpu.memory_space<vmem>>, %arg2: memref<128x128xbf16, #tpu.memory_space<vmem>>, %arg3: memref<1x128xf32, #tpu.memory_space<vmem>>, %arg4: memref<16x128xbf16, #tpu.memory_space<vmem>>) attributes {dimension_semantics = [#tpu.dimension_semantics<parallel>], iteration_bounds = array<i64: 2>, scalar_prefetch = 0 : i64, scratch_operands = 0 : i64, tpu.core_type = #tpu.core_type<tc>, window_params = [{transform_indices = @transform_0, window_bounds = array<i64: 16, 128>}, {pipeline_mode = #tpu.pipeline_mode<synchronous>, transform_indices = @transform_1, window_bounds = array<i64: 128, 128>}, {pipeline_mode = #tpu.pipeline_mode<synchronous>, transform_indices = @transform_2, window_bounds = array<i64: 1, 128>}, {transform_indices = @transform_3, window_bounds = array<i64: 16, 128>}]} {
    %c0 = arith.constant 0 : index
    %c0_0 = arith.constant 0 : index
    %0 = vector.load %arg1[%c0, %c0_0] : memref<16x128xbf16, #tpu.memory_space<vmem>>, vector<16x128xbf16>
    %c0_1 = arith.constant 0 : index
    %c0_2 = arith.constant 0 : index
    %1 = vector.load %arg2[%c0_1, %c0_2] : memref<128x128xbf16, #tpu.memory_space<vmem>>, vector<128x128xbf16>
    %cst = arith.constant dense<0.000000e+00> : vector<16x128xf32>
    %2 = tpu.matmul %0, %1, %cst {dimension_numbers = #tpu.dot_dimension_numbers<[1], [0], [0], [1], [0, 0, 1, 1], [], []>} : vector<16x128xbf16>, vector<128x128xbf16>, vector<16x128xf32> -> vector<16x128xf32>
    %c0_3 = arith.constant 0 : index
    %c0_4 = arith.constant 0 : index
    %3 = vector.load %arg3[%c0_3, %c0_4] : memref<1x128xf32, #tpu.memory_space<vmem>>, vector<1x128xf32>
    %4 = vector.broadcast %3 : vector<1x128xf32> to vector<16x128xf32>
    %5 = arith.addf %2, %4 : vector<16x128xf32>
    %cst_5 = arith.constant 0.000000e+00 : f32
    %6 = vector.broadcast %cst_5 : f32 to vector<16x128xf32>
    %7 = arith.maximumf %5, %6 : vector<16x128xf32>
    %8 = arith.truncf %7 : vector<16x128xf32> to vector<16x128xbf16>
    %c0_6 = arith.constant 0 : index
    %c0_7 = arith.constant 0 : index
    %9 = vector.load %arg4[%c0_6, %c0_7] : memref<16x128xbf16, #tpu.memory_space<vmem>>, vector<16x128xbf16>
    tpu.vector_store %arg4[%c0_6, %c0_7], %8 {strides = array<i32>} : memref<16x128xbf16, #tpu.memory_space<vmem>>, vector<16x128xbf16>,
    return
  }
  func.func @transform_0(%arg0: i32) -> (i32, i32) {
    %c0_i32 = arith.constant 0 : i32
    %c0_i32_0 = arith.constant 0 : i32
    return %arg0, %c0_i32 : i32, i32
  }
  func.func @transform_1(%arg0: i32) -> (i32, i32) {
    %c0_i32 = arith.constant 0 : i32
    %c0_i32_0 = arith.constant 0 : i32
    %c0_i32_1 = arith.constant 0 : i32
    return %c0_i32, %c0_i32_0 : i32, i32
  }
  func.func @transform_2(%arg0: i32) -> (i32, i32) {
    %c0_i32 = arith.constant 0 : i32
    %c0_i32_0 = arith.constant 0 : i32
    %c0_i32_1 = arith.constant 0 : i32
    return %c0_i32, %c0_i32_0 : i32, i32
  }
  func.func @transform_3(%arg0: i32) -> (i32, i32) {
    %c0_i32 = arith.constant 0 : i32
    %c0_i32_0 = arith.constant 0 : i32
    return %arg0, %c0_i32 : i32, i32
  }
}

module attributes {stable_mosaic.version = 11 : i64} {
  func.func @_gemm_bias_relu_kernel(%arg0: i32, %arg1: memref<16x256xbf16, #tpu.memory_space<vmem>>, %arg2: memref<256x128xbf16, #tpu.memory_space<vmem>>, %arg3: memref<1x128xf32, #tpu.memory_space<vmem>>, %arg4: memref<16x128xbf16, #tpu.memory_space<vmem>>) attributes {dimension_semantics = [#tpu.dimension_semantics<parallel>], iteration_bounds = array<i64: 1>, scalar_prefetch = 0 : i64, scratch_operands = 0 : i64, tpu.core_type = #tpu.core_type<tc>, window_params = [{transform_indices = @transform_0, window_bounds = array<i64: 16, 256>}, {pipeline_mode = #tpu.pipeline_mode<synchronous>, transform_indices = @transform_1, window_bounds = array<i64: 256, 128>}, {pipeline_mode = #tpu.pipeline_mode<synchronous>, transform_indices = @transform_2, window_bounds = array<i64: 1, 128>}, {transform_indices = @transform_3, window_bounds = array<i64: 16, 128>}]} {
    %c0 = arith.constant 0 : index
    %c0_0 = arith.constant 0 : index
    %0 = vector.load %arg1[%c0, %c0_0] : memref<16x256xbf16, #tpu.memory_space<vmem>>, vector<16x256xbf16>
    %c0_1 = arith.constant 0 : index
    %c0_2 = arith.constant 0 : index
    %1 = vector.load %arg2[%c0_1, %c0_2] : memref<256x128xbf16, #tpu.memory_space<vmem>>, vector<256x128xbf16>
    %cst = arith.constant dense<0.000000e+00> : vector<16x128xf32>
    %2 = tpu.matmul %0, %1, %cst {dimension_numbers = #tpu.dot_dimension_numbers<[1], [0], [0], [1], [0, 0, 1, 1], [], []>} : vector<16x256xbf16>, vector<256x128xbf16>, vector<16x128xf32> -> vector<16x128xf32>
    %c0_3 = arith.constant 0 : index
    %c0_4 = arith.constant 0 : index
    %3 = vector.load %arg3[%c0_3, %c0_4] : memref<1x128xf32, #tpu.memory_space<vmem>>, vector<1x128xf32>
    %4 = vector.broadcast %3 : vector<1x128xf32> to vector<16x128xf32>
    %5 = arith.addf %2, %4 : vector<16x128xf32>
    %cst_5 = arith.constant 0.000000e+00 : f32
    %6 = vector.broadcast %cst_5 : f32 to vector<16x128xf32>
    %7 = arith.maximumf %5, %6 : vector<16x128xf32>
    %8 = arith.truncf %7 : vector<16x128xf32> to vector<16x128xbf16>
    %c0_6 = arith.constant 0 : index
    %c0_7 = arith.constant 0 : index
    %9 = vector.load %arg4[%c0_6, %c0_7] : memref<16x128xbf16, #tpu.memory_space<vmem>>, vector<16x128xbf16>
    tpu.vector_store %arg4[%c0_6, %c0_7], %8 {strides = array<i32>} : memref<16x128xbf16, #tpu.memory_space<vmem>>, vector<16x128xbf16>,
    return
  }
  func.func @transform_0(%arg0: i32) -> (i32, i32) {
    %c0_i32 = arith.constant 0 : i32
    %c0_i32_0 = arith.constant 0 : i32
    return %arg0, %c0_i32 : i32, i32
  }
  func.func @transform_1(%arg0: i32) -> (i32, i32) {
    %c0_i32 = arith.constant 0 : i32
    %c0_i32_0 = arith.constant 0 : i32
    %c0_i32_1 = arith.constant 0 : i32
    return %c0_i32, %c0_i32_0 : i32, i32
  }
  func.func @transform_2(%arg0: i32) -> (i32, i32) {
    %c0_i32 = arith.constant 0 : i32
    %c0_i32_0 = arith.constant 0 : i32
    %c0_i32_1 = arith.constant 0 : i32
    return %c0_i32, %c0_i32_0 : i32, i32
  }
  func.func @transform_3(%arg0: i32) -> (i32, i32) {
    %c0_i32 = arith.constant 0 : i32
    %c0_i32_0 = arith.constant 0 : i32
    return %arg0, %c0_i32 : i32, i32
  }
}

module attributes {stable_mosaic.version = 11 : i64} {
  func.func @_gemm_bias_relu_kernel(%arg0: i32, %arg1: memref<16x384xbf16, #tpu.memory_space<vmem>>, %arg2: memref<384x128xbf16, #tpu.memory_space<vmem>>, %arg3: memref<1x128xf32, #tpu.memory_space<vmem>>, %arg4: memref<16x128xbf16, #tpu.memory_space<vmem>>) attributes {dimension_semantics = [#tpu.dimension_semantics<parallel>], iteration_bounds = array<i64: 1>, scalar_prefetch = 0 : i64, scratch_operands = 0 : i64, tpu.core_type = #tpu.core_type<tc>, window_params = [{transform_indices = @transform_0, window_bounds = array<i64: 16, 384>}, {pipeline_mode = #tpu.pipeline_mode<synchronous>, transform_indices = @transform_1, window_bounds = array<i64: 384, 128>}, {pipeline_mode = #tpu.pipeline_mode<synchronous>, transform_indices = @transform_2, window_bounds = array<i64: 1, 128>}, {transform_indices = @transform_3, window_bounds = array<i64: 16, 128>}]} {
    %c0 = arith.constant 0 : index
    %c0_0 = arith.constant 0 : index
    %0 = vector.load %arg1[%c0, %c0_0] : memref<16x384xbf16, #tpu.memory_space<vmem>>, vector<16x384xbf16>
    %c0_1 = arith.constant 0 : index
    %c0_2 = arith.constant 0 : index
    %1 = vector.load %arg2[%c0_1, %c0_2] : memref<384x128xbf16, #tpu.memory_space<vmem>>, vector<384x128xbf16>
    %cst = arith.constant dense<0.000000e+00> : vector<16x128xf32>
    %2 = tpu.matmul %0, %1, %cst {dimension_numbers = #tpu.dot_dimension_numbers<[1], [0], [0], [1], [0, 0, 1, 1], [], []>} : vector<16x384xbf16>, vector<384x128xbf16>, vector<16x128xf32> -> vector<16x128xf32>
    %c0_3 = arith.constant 0 : index
    %c0_4 = arith.constant 0 : index
    %3 = vector.load %arg3[%c0_3, %c0_4] : memref<1x128xf32, #tpu.memory_space<vmem>>, vector<1x128xf32>
    %4 = vector.broadcast %3 : vector<1x128xf32> to vector<16x128xf32>
    %5 = arith.addf %2, %4 : vector<16x128xf32>
    %cst_5 = arith.constant 0.000000e+00 : f32
    %6 = vector.broadcast %cst_5 : f32 to vector<16x128xf32>
    %7 = arith.maximumf %5, %6 : vector<16x128xf32>
    %8 = arith.truncf %7 : vector<16x128xf32> to vector<16x128xbf16>
    %c0_6 = arith.constant 0 : index
    %c0_7 = arith.constant 0 : index
    %9 = vector.load %arg4[%c0_6, %c0_7] : memref<16x128xbf16, #tpu.memory_space<vmem>>, vector<16x128xbf16>
    tpu.vector_store %arg4[%c0_6, %c0_7], %8 {strides = array<i32>} : memref<16x128xbf16, #tpu.memory_space<vmem>>, vector<16x128xbf16>,
    return
  }
  func.func @transform_0(%arg0: i32) -> (i32, i32) {
    %c0_i32 = arith.constant 0 : i32
    %c0_i32_0 = arith.constant 0 : i32
    return %arg0, %c0_i32 : i32, i32
  }
  func.func @transform_1(%arg0: i32) -> (i32, i32) {
    %c0_i32 = arith.constant 0 : i32
    %c0_i32_0 = arith.constant 0 : i32
    %c0_i32_1 = arith.constant 0 : i32
    return %c0_i32, %c0_i32_0 : i32, i32
  }
  func.func @transform_2(%arg0: i32) -> (i32, i32) {
    %c0_i32 = arith.constant 0 : i32
    %c0_i32_0 = arith.constant 0 : i32
    %c0_i32_1 = arith.constant 0 : i32
    return %c0_i32, %c0_i32_0 : i32, i32
  }
  func.func @transform_3(%arg0: i32) -> (i32, i32) {
    %c0_i32 = arith.constant 0 : i32
    %c0_i32_0 = arith.constant 0 : i32
    return %arg0, %c0_i32 : i32, i32
  }
}

module attributes {stable_mosaic.version = 11 : i64} {
  func.func @_gemm_bias_relu_kernel(%arg0: i32, %arg1: memref<16x512xbf16, #tpu.memory_space<vmem>>, %arg2: memref<512x128xbf16, #tpu.memory_space<vmem>>, %arg3: memref<1x128xf32, #tpu.memory_space<vmem>>, %arg4: memref<16x128xbf16, #tpu.memory_space<vmem>>) attributes {dimension_semantics = [#tpu.dimension_semantics<parallel>], iteration_bounds = array<i64: 2>, scalar_prefetch = 0 : i64, scratch_operands = 0 : i64, tpu.core_type = #tpu.core_type<tc>, window_params = [{transform_indices = @transform_0, window_bounds = array<i64: 16, 512>}, {pipeline_mode = #tpu.pipeline_mode<synchronous>, transform_indices = @transform_1, window_bounds = array<i64: 512, 128>}, {pipeline_mode = #tpu.pipeline_mode<synchronous>, transform_indices = @transform_2, window_bounds = array<i64: 1, 128>}, {transform_indices = @transform_3, window_bounds = array<i64: 16, 128>}]} {
    %c0 = arith.constant 0 : index
    %c0_0 = arith.constant 0 : index
    %0 = vector.load %arg1[%c0, %c0_0] : memref<16x512xbf16, #tpu.memory_space<vmem>>, vector<16x512xbf16>
    %c0_1 = arith.constant 0 : index
    %c0_2 = arith.constant 0 : index
    %1 = vector.load %arg2[%c0_1, %c0_2] : memref<512x128xbf16, #tpu.memory_space<vmem>>, vector<512x128xbf16>
    %cst = arith.constant dense<0.000000e+00> : vector<16x128xf32>
    %2 = tpu.matmul %0, %1, %cst {dimension_numbers = #tpu.dot_dimension_numbers<[1], [0], [0], [1], [0, 0, 1, 1], [], []>} : vector<16x512xbf16>, vector<512x128xbf16>, vector<16x128xf32> -> vector<16x128xf32>
    %c0_3 = arith.constant 0 : index
    %c0_4 = arith.constant 0 : index
    %3 = vector.load %arg3[%c0_3, %c0_4] : memref<1x128xf32, #tpu.memory_space<vmem>>, vector<1x128xf32>
    %4 = vector.broadcast %3 : vector<1x128xf32> to vector<16x128xf32>
    %5 = arith.addf %2, %4 : vector<16x128xf32>
    %cst_5 = arith.constant 0.000000e+00 : f32
    %6 = vector.broadcast %cst_5 : f32 to vector<16x128xf32>
    %7 = arith.maximumf %5, %6 : vector<16x128xf32>
    %8 = arith.truncf %7 : vector<16x128xf32> to vector<16x128xbf16>
    %c0_6 = arith.constant 0 : index
    %c0_7 = arith.constant 0 : index
    %9 = vector.load %arg4[%c0_6, %c0_7] : memref<16x128xbf16, #tpu.memory_space<vmem>>, vector<16x128xbf16>
    tpu.vector_store %arg4[%c0_6, %c0_7], %8 {strides = array<i32>} : memref<16x128xbf16, #tpu.memory_space<vmem>>, vector<16x128xbf16>,
    return
  }
  func.func @transform_0(%arg0: i32) -> (i32, i32) {
    %c0_i32 = arith.constant 0 : i32
    %c0_i32_0 = arith.constant 0 : i32
    return %arg0, %c0_i32 : i32, i32
  }
  func.func @transform_1(%arg0: i32) -> (i32, i32) {
    %c0_i32 = arith.constant 0 : i32
    %c0_i32_0 = arith.constant 0 : i32
    %c0_i32_1 = arith.constant 0 : i32
    return %c0_i32, %c0_i32_0 : i32, i32
  }
  func.func @transform_2(%arg0: i32) -> (i32, i32) {
    %c0_i32 = arith.constant 0 : i32
    %c0_i32_0 = arith.constant 0 : i32
    %c0_i32_1 = arith.constant 0 : i32
    return %c0_i32, %c0_i32_0 : i32, i32
  }
  func.func @transform_3(%arg0: i32) -> (i32, i32) {
    %c0_i32 = arith.constant 0 : i32
    %c0_i32_0 = arith.constant 0 : i32
    return %arg0, %c0_i32 : i32, i32
  }
}

module attributes {stable_mosaic.version = 11 : i64} {
  func.func @_gemm_bias_relu_kernel(%arg0: i32, %arg1: memref<64x256xbf16, #tpu.memory_space<vmem>>, %arg2: memref<256x128xbf16, #tpu.memory_space<vmem>>, %arg3: memref<1x128xf32, #tpu.memory_space<vmem>>, %arg4: memref<64x128xbf16, #tpu.memory_space<vmem>>) attributes {dimension_semantics = [#tpu.dimension_semantics<parallel>], iteration_bounds = array<i64: 2>, scalar_prefetch = 0 : i64, scratch_operands = 0 : i64, tpu.core_type = #tpu.core_type<tc>, window_params = [{transform_indices = @transform_0, window_bounds = array<i64: 64, 256>}, {pipeline_mode = #tpu.pipeline_mode<synchronous>, transform_indices = @transform_1, window_bounds = array<i64: 256, 128>}, {pipeline_mode = #tpu.pipeline_mode<synchronous>, transform_indices = @transform_2, window_bounds = array<i64: 1, 128>}, {transform_indices = @transform_3, window_bounds = array<i64: 64, 128>}]} {
    %c0 = arith.constant 0 : index
    %c0_0 = arith.constant 0 : index
    %0 = vector.load %arg1[%c0, %c0_0] : memref<64x256xbf16, #tpu.memory_space<vmem>>, vector<64x256xbf16>
    %c0_1 = arith.constant 0 : index
    %c0_2 = arith.constant 0 : index
    %1 = vector.load %arg2[%c0_1, %c0_2] : memref<256x128xbf16, #tpu.memory_space<vmem>>, vector<256x128xbf16>
    %cst = arith.constant dense<0.000000e+00> : vector<64x128xf32>
    %2 = tpu.matmul %0, %1, %cst {dimension_numbers = #tpu.dot_dimension_numbers<[1], [0], [0], [1], [0, 0, 1, 1], [], []>} : vector<64x256xbf16>, vector<256x128xbf16>, vector<64x128xf32> -> vector<64x128xf32>
    %c0_3 = arith.constant 0 : index
    %c0_4 = arith.constant 0 : index
    %3 = vector.load %arg3[%c0_3, %c0_4] : memref<1x128xf32, #tpu.memory_space<vmem>>, vector<1x128xf32>
    %4 = vector.broadcast %3 : vector<1x128xf32> to vector<64x128xf32>
    %5 = arith.addf %2, %4 : vector<64x128xf32>
    %cst_5 = arith.constant 0.000000e+00 : f32
    %6 = vector.broadcast %cst_5 : f32 to vector<64x128xf32>
    %7 = arith.maximumf %5, %6 : vector<64x128xf32>
    %8 = arith.truncf %7 : vector<64x128xf32> to vector<64x128xbf16>
    %c0_6 = arith.constant 0 : index
    %c0_7 = arith.constant 0 : index
    %9 = vector.load %arg4[%c0_6, %c0_7] : memref<64x128xbf16, #tpu.memory_space<vmem>>, vector<64x128xbf16>
    tpu.vector_store %arg4[%c0_6, %c0_7], %8 {strides = array<i32>} : memref<64x128xbf16, #tpu.memory_space<vmem>>, vector<64x128xbf16>,
    return
  }
  func.func @transform_0(%arg0: i32) -> (i32, i32) {
    %c0_i32 = arith.constant 0 : i32
    %c0_i32_0 = arith.constant 0 : i32
    return %arg0, %c0_i32 : i32, i32
  }
  func.func @transform_1(%arg0: i32) -> (i32, i32) {
    %c0_i32 = arith.constant 0 : i32
    %c0_i32_0 = arith.constant 0 : i32
    %c0_i32_1 = arith.constant 0 : i32
    return %c0_i32, %c0_i32_0 : i32, i32
  }
  func.func @transform_2(%arg0: i32) -> (i32, i32) {
    %c0_i32 = arith.constant 0 : i32
    %c0_i32_0 = arith.constant 0 : i32
    %c0_i32_1 = arith.constant 0 : i32
    return %c0_i32, %c0_i32_0 : i32, i32
  }
  func.func @transform_3(%arg0: i32) -> (i32, i32) {
    %c0_i32 = arith.constant 0 : i32
    %c0_i32_0 = arith.constant 0 : i32
    return %arg0, %c0_i32 : i32, i32
  }
}

module attributes {stable_mosaic.version = 11 : i64} {
  func.func @_head_gemm_t_kernel(%arg0: i32, %arg1: memref<128x128xbf16, #tpu.memory_space<vmem>>, %arg2: memref<16x128xbf16, #tpu.memory_space<vmem>>, %arg3: memref<16x1xf32, #tpu.memory_space<vmem>>, %arg4: memref<16x128xf32, #tpu.memory_space<vmem>>) attributes {dimension_semantics = [#tpu.dimension_semantics<parallel>], iteration_bounds = array<i64: 1>, scalar_prefetch = 0 : i64, scratch_operands = 0 : i64, tpu.core_type = #tpu.core_type<tc>, window_params = [{transform_indices = @transform_0, window_bounds = array<i64: 128, 128>}, {pipeline_mode = #tpu.pipeline_mode<synchronous>, transform_indices = @transform_1, window_bounds = array<i64: 16, 128>}, {pipeline_mode = #tpu.pipeline_mode<synchronous>, transform_indices = @transform_2, window_bounds = array<i64: 16, 1>}, {transform_indices = @transform_3, window_bounds = array<i64: 16, 128>}]} {
    %c0 = arith.constant 0 : index
    %c0_0 = arith.constant 0 : index
    %0 = vector.load %arg2[%c0, %c0_0] : memref<16x128xbf16, #tpu.memory_space<vmem>>, vector<16x128xbf16>
    %c0_1 = arith.constant 0 : index
    %c0_2 = arith.constant 0 : index
    %1 = vector.load %arg1[%c0_1, %c0_2] : memref<128x128xbf16, #tpu.memory_space<vmem>>, vector<128x128xbf16>
    %cst = arith.constant dense<0.000000e+00> : vector<16x128xf32>
    %2 = tpu.matmul %0, %1, %cst {dimension_numbers = #tpu.dot_dimension_numbers<[1], [0], [0], [1], [0, 0, 1, 1], [], []>} : vector<16x128xbf16>, vector<128x128xbf16>, vector<16x128xf32> -> vector<16x128xf32>
    %c0_3 = arith.constant 0 : index
    %c0_4 = arith.constant 0 : index
    %3 = vector.load %arg3[%c0_3, %c0_4] : memref<16x1xf32, #tpu.memory_space<vmem>>, vector<16x1xf32>
    %4 = vector.broadcast %3 : vector<16x1xf32> to vector<16x128xf32>
    %5 = arith.addf %2, %4 : vector<16x128xf32>
    %6 = vector.extract_strided_slice %5 {offsets = [0, 0], sizes = [1, 128], strides = [1, 1]} : vector<16x128xf32> to vector<1x128xf32>
    %7 = arith.negf %6 : vector<1x128xf32>
    %8 = math.exp %7 : vector<1x128xf32>
    %cst_5 = arith.constant 1.000000e+00 : f32
    %9 = vector.broadcast %cst_5 : f32 to vector<1x128xf32>
    %10 = arith.addf %9, %8 : vector<1x128xf32>
    %11 = arith.divf %9, %10 : vector<1x128xf32>
    %cst_6 = arith.constant 9.98999977 : f32
    %12 = vector.broadcast %cst_6 : f32 to vector<1x128xf32>
    %13 = arith.mulf %12, %11 : vector<1x128xf32>
    %cst_7 = arith.constant 0.00999999977 : f32
    %14 = vector.broadcast %cst_7 : f32 to vector<1x128xf32>
    %15 = arith.addf %14, %13 : vector<1x128xf32>
    %16 = tpu.iota {dimensions = array<i32: 0>} : vector<16x128xi32>
    %c0_i32 = arith.constant 0 : i32
    %17 = vector.broadcast %c0_i32 : i32 to vector<16x128xi32>
    %18 = arith.cmpi eq, %16, %17 : vector<16x128xi32>
    %19 = vector.shape_cast %15 : vector<1x128xf32> to vector<1x128xf32>
    %20 = vector.broadcast %19 : vector<1x128xf32> to vector<16x128xf32>
    %21 = arith.select %18, %20, %5 : vector<16x128xi1>, vector<16x128xf32>
    %c0_8 = arith.constant 0 : index
    %c0_9 = arith.constant 0 : index
    %22 = vector.load %arg4[%c0_8, %c0_9] : memref<16x128xf32, #tpu.memory_space<vmem>>, vector<16x128xf32>
    tpu.vector_store %arg4[%c0_8, %c0_9], %21 {strides = array<i32>} : memref<16x128xf32, #tpu.memory_space<vmem>>, vector<16x128xf32>,
    return
  }
  func.func @transform_0(%arg0: i32) -> (i32, i32) {
    %c0_i32 = arith.constant 0 : i32
    %c0_i32_0 = arith.constant 0 : i32
    return %c0_i32, %arg0 : i32, i32
  }
  func.func @transform_1(%arg0: i32) -> (i32, i32) {
    %c0_i32 = arith.constant 0 : i32
    %c0_i32_0 = arith.constant 0 : i32
    %c0_i32_1 = arith.constant 0 : i32
    return %c0_i32, %c0_i32_0 : i32, i32
  }
  func.func @transform_2(%arg0: i32) -> (i32, i32) {
    %c0_i32 = arith.constant 0 : i32
    %c0_i32_0 = arith.constant 0 : i32
    %c0_i32_1 = arith.constant 0 : i32
    return %c0_i32, %c0_i32_0 : i32, i32
  }
  func.func @transform_3(%arg0: i32) -> (i32, i32) {
    %c0_i32 = arith.constant 0 : i32
    %c0_i32_0 = arith.constant 0 : i32
    return %c0_i32, %arg0 : i32, i32
  }
}

module attributes {stable_mosaic.version = 11 : i64} {
  func.func @_head_gemm_t_kernel(%arg0: i32, %arg1: memref<256x128xbf16, #tpu.memory_space<vmem>>, %arg2: memref<16x256xbf16, #tpu.memory_space<vmem>>, %arg3: memref<16x1xf32, #tpu.memory_space<vmem>>, %arg4: memref<16x128xf32, #tpu.memory_space<vmem>>) attributes {dimension_semantics = [#tpu.dimension_semantics<parallel>], iteration_bounds = array<i64: 1>, scalar_prefetch = 0 : i64, scratch_operands = 0 : i64, tpu.core_type = #tpu.core_type<tc>, window_params = [{transform_indices = @transform_0, window_bounds = array<i64: 256, 128>}, {pipeline_mode = #tpu.pipeline_mode<synchronous>, transform_indices = @transform_1, window_bounds = array<i64: 16, 256>}, {pipeline_mode = #tpu.pipeline_mode<synchronous>, transform_indices = @transform_2, window_bounds = array<i64: 16, 1>}, {transform_indices = @transform_3, window_bounds = array<i64: 16, 128>}]} {
    %c0 = arith.constant 0 : index
    %c0_0 = arith.constant 0 : index
    %0 = vector.load %arg2[%c0, %c0_0] : memref<16x256xbf16, #tpu.memory_space<vmem>>, vector<16x256xbf16>
    %c0_1 = arith.constant 0 : index
    %c0_2 = arith.constant 0 : index
    %1 = vector.load %arg1[%c0_1, %c0_2] : memref<256x128xbf16, #tpu.memory_space<vmem>>, vector<256x128xbf16>
    %cst = arith.constant dense<0.000000e+00> : vector<16x128xf32>
    %2 = tpu.matmul %0, %1, %cst {dimension_numbers = #tpu.dot_dimension_numbers<[1], [0], [0], [1], [0, 0, 1, 1], [], []>} : vector<16x256xbf16>, vector<256x128xbf16>, vector<16x128xf32> -> vector<16x128xf32>
    %c0_3 = arith.constant 0 : index
    %c0_4 = arith.constant 0 : index
    %3 = vector.load %arg3[%c0_3, %c0_4] : memref<16x1xf32, #tpu.memory_space<vmem>>, vector<16x1xf32>
    %4 = vector.broadcast %3 : vector<16x1xf32> to vector<16x128xf32>
    %5 = arith.addf %2, %4 : vector<16x128xf32>
    %6 = vector.extract_strided_slice %5 {offsets = [0, 0], sizes = [1, 128], strides = [1, 1]} : vector<16x128xf32> to vector<1x128xf32>
    %7 = arith.negf %6 : vector<1x128xf32>
    %8 = math.exp %7 : vector<1x128xf32>
    %cst_5 = arith.constant 1.000000e+00 : f32
    %9 = vector.broadcast %cst_5 : f32 to vector<1x128xf32>
    %10 = arith.addf %9, %8 : vector<1x128xf32>
    %11 = arith.divf %9, %10 : vector<1x128xf32>
    %cst_6 = arith.constant 9.98999977 : f32
    %12 = vector.broadcast %cst_6 : f32 to vector<1x128xf32>
    %13 = arith.mulf %12, %11 : vector<1x128xf32>
    %cst_7 = arith.constant 0.00999999977 : f32
    %14 = vector.broadcast %cst_7 : f32 to vector<1x128xf32>
    %15 = arith.addf %14, %13 : vector<1x128xf32>
    %16 = tpu.iota {dimensions = array<i32: 0>} : vector<16x128xi32>
    %c0_i32 = arith.constant 0 : i32
    %17 = vector.broadcast %c0_i32 : i32 to vector<16x128xi32>
    %18 = arith.cmpi eq, %16, %17 : vector<16x128xi32>
    %19 = vector.shape_cast %15 : vector<1x128xf32> to vector<1x128xf32>
    %20 = vector.broadcast %19 : vector<1x128xf32> to vector<16x128xf32>
    %21 = arith.select %18, %20, %5 : vector<16x128xi1>, vector<16x128xf32>
    %c0_8 = arith.constant 0 : index
    %c0_9 = arith.constant 0 : index
    %22 = vector.load %arg4[%c0_8, %c0_9] : memref<16x128xf32, #tpu.memory_space<vmem>>, vector<16x128xf32>
    tpu.vector_store %arg4[%c0_8, %c0_9], %21 {strides = array<i32>} : memref<16x128xf32, #tpu.memory_space<vmem>>, vector<16x128xf32>,
    return
  }
  func.func @transform_0(%arg0: i32) -> (i32, i32) {
    %c0_i32 = arith.constant 0 : i32
    %c0_i32_0 = arith.constant 0 : i32
    return %c0_i32, %arg0 : i32, i32
  }
  func.func @transform_1(%arg0: i32) -> (i32, i32) {
    %c0_i32 = arith.constant 0 : i32
    %c0_i32_0 = arith.constant 0 : i32
    %c0_i32_1 = arith.constant 0 : i32
    return %c0_i32, %c0_i32_0 : i32, i32
  }
  func.func @transform_2(%arg0: i32) -> (i32, i32) {
    %c0_i32 = arith.constant 0 : i32
    %c0_i32_0 = arith.constant 0 : i32
    %c0_i32_1 = arith.constant 0 : i32
    return %c0_i32, %c0_i32_0 : i32, i32
  }
  func.func @transform_3(%arg0: i32) -> (i32, i32) {
    %c0_i32 = arith.constant 0 : i32
    %c0_i32_0 = arith.constant 0 : i32
    return %c0_i32, %arg0 : i32, i32
  }
}

module attributes {stable_mosaic.version = 11 : i64} {
  func.func @_head_gemm_t_kernel(%arg0: i32, %arg1: memref<384x128xbf16, #tpu.memory_space<vmem>>, %arg2: memref<16x384xbf16, #tpu.memory_space<vmem>>, %arg3: memref<16x1xf32, #tpu.memory_space<vmem>>, %arg4: memref<16x128xf32, #tpu.memory_space<vmem>>) attributes {dimension_semantics = [#tpu.dimension_semantics<parallel>], iteration_bounds = array<i64: 1>, scalar_prefetch = 0 : i64, scratch_operands = 0 : i64, tpu.core_type = #tpu.core_type<tc>, window_params = [{transform_indices = @transform_0, window_bounds = array<i64: 384, 128>}, {pipeline_mode = #tpu.pipeline_mode<synchronous>, transform_indices = @transform_1, window_bounds = array<i64: 16, 384>}, {pipeline_mode = #tpu.pipeline_mode<synchronous>, transform_indices = @transform_2, window_bounds = array<i64: 16, 1>}, {transform_indices = @transform_3, window_bounds = array<i64: 16, 128>}]} {
    %c0 = arith.constant 0 : index
    %c0_0 = arith.constant 0 : index
    %0 = vector.load %arg2[%c0, %c0_0] : memref<16x384xbf16, #tpu.memory_space<vmem>>, vector<16x384xbf16>
    %c0_1 = arith.constant 0 : index
    %c0_2 = arith.constant 0 : index
    %1 = vector.load %arg1[%c0_1, %c0_2] : memref<384x128xbf16, #tpu.memory_space<vmem>>, vector<384x128xbf16>
    %cst = arith.constant dense<0.000000e+00> : vector<16x128xf32>
    %2 = tpu.matmul %0, %1, %cst {dimension_numbers = #tpu.dot_dimension_numbers<[1], [0], [0], [1], [0, 0, 1, 1], [], []>} : vector<16x384xbf16>, vector<384x128xbf16>, vector<16x128xf32> -> vector<16x128xf32>
    %c0_3 = arith.constant 0 : index
    %c0_4 = arith.constant 0 : index
    %3 = vector.load %arg3[%c0_3, %c0_4] : memref<16x1xf32, #tpu.memory_space<vmem>>, vector<16x1xf32>
    %4 = vector.broadcast %3 : vector<16x1xf32> to vector<16x128xf32>
    %5 = arith.addf %2, %4 : vector<16x128xf32>
    %6 = vector.extract_strided_slice %5 {offsets = [0, 0], sizes = [1, 128], strides = [1, 1]} : vector<16x128xf32> to vector<1x128xf32>
    %7 = arith.negf %6 : vector<1x128xf32>
    %8 = math.exp %7 : vector<1x128xf32>
    %cst_5 = arith.constant 1.000000e+00 : f32
    %9 = vector.broadcast %cst_5 : f32 to vector<1x128xf32>
    %10 = arith.addf %9, %8 : vector<1x128xf32>
    %11 = arith.divf %9, %10 : vector<1x128xf32>
    %cst_6 = arith.constant 9.98999977 : f32
    %12 = vector.broadcast %cst_6 : f32 to vector<1x128xf32>
    %13 = arith.mulf %12, %11 : vector<1x128xf32>
    %cst_7 = arith.constant 0.00999999977 : f32
    %14 = vector.broadcast %cst_7 : f32 to vector<1x128xf32>
    %15 = arith.addf %14, %13 : vector<1x128xf32>
    %16 = tpu.iota {dimensions = array<i32: 0>} : vector<16x128xi32>
    %c0_i32 = arith.constant 0 : i32
    %17 = vector.broadcast %c0_i32 : i32 to vector<16x128xi32>
    %18 = arith.cmpi eq, %16, %17 : vector<16x128xi32>
    %19 = vector.shape_cast %15 : vector<1x128xf32> to vector<1x128xf32>
    %20 = vector.broadcast %19 : vector<1x128xf32> to vector<16x128xf32>
    %21 = arith.select %18, %20, %5 : vector<16x128xi1>, vector<16x128xf32>
    %c0_8 = arith.constant 0 : index
    %c0_9 = arith.constant 0 : index
    %22 = vector.load %arg4[%c0_8, %c0_9] : memref<16x128xf32, #tpu.memory_space<vmem>>, vector<16x128xf32>
    tpu.vector_store %arg4[%c0_8, %c0_9], %21 {strides = array<i32>} : memref<16x128xf32, #tpu.memory_space<vmem>>, vector<16x128xf32>,
    return
  }
  func.func @transform_0(%arg0: i32) -> (i32, i32) {
    %c0_i32 = arith.constant 0 : i32
    %c0_i32_0 = arith.constant 0 : i32
    return %c0_i32, %arg0 : i32, i32
  }
  func.func @transform_1(%arg0: i32) -> (i32, i32) {
    %c0_i32 = arith.constant 0 : i32
    %c0_i32_0 = arith.constant 0 : i32
    %c0_i32_1 = arith.constant 0 : i32
    return %c0_i32, %c0_i32_0 : i32, i32
  }
  func.func @transform_2(%arg0: i32) -> (i32, i32) {
    %c0_i32 = arith.constant 0 : i32
    %c0_i32_0 = arith.constant 0 : i32
    %c0_i32_1 = arith.constant 0 : i32
    return %c0_i32, %c0_i32_0 : i32, i32
  }
  func.func @transform_3(%arg0: i32) -> (i32, i32) {
    %c0_i32 = arith.constant 0 : i32
    %c0_i32_0 = arith.constant 0 : i32
    return %c0_i32, %arg0 : i32, i32
  }
}

</mosaic_0001>

<llo_original>
// kernel: _lambda_.9
$region0: #{_lambda_.9}
  #allocation0 [shape = 'u32[]', space=smem, size = 0x4, offset = 0x4, fixed_abs, tag = 'smem constant byte address 0x4 - core index']
  #allocation1 [shape = 'u32[144,128]{1,0:T(1,128)}', space=vmem, size = 0x12000, scoped, tag = 'internal scratch']
  %s0 = inlined_call_operand.vmem [shape: bf16[128,128], index: 0, kind: input, shape index: {}]
  %s1 = inlined_call_operand.vmem [shape: bf16[128,128], index: 1, kind: input, shape index: {}]
  %s2 = inlined_call_operand.vmem [shape: f32[1,128], index: 2, kind: input, shape index: {}]
  %s3 = inlined_call_operand.vmem [shape: bf16[128,128], index: 3, kind: output, shape index: {}]
  %s4 = sld [smem:[#allocation0]]
  $region45: #{_lambda_.9} parent=0
    _
  %s6 = ssub.s32 1, %s4
  %s7 = scalar_select 0, %s6, %s4
  loop: start=0, step=1, limit=4
  $region2: #{_lambda_.9} parent=0 // loop_pre_header
    _
  $region3: #{_lambda_.9} parent=0 // loop_header
    %s9 = sphi 0, %s13
    %p10 = scmp.ge.s32.totalorder %s9, 4
    %s19 = sphi 0, %s21
    %s22 = sphi 0, %s19
    %s23 = sphi 0, %s22
    %s39 = sphi 0, %s23
    %s43 = sphi 0, %s43
    %s45 = sphi 0, %s43
    %s46 = sphi 0, %s45
    %s60 = sphi 0, %s46
    %s64 = sphi 0, %s64
    %s66 = sphi 0, %s64
    %s67 = sphi 0, %s66
    %s81 = sphi 0, %s67
    %s87 = sphi 0, %s89
    %s90 = sphi 0, %s87
    %s91 = sphi 0, %s90
    %s107 = sphi 0, %s91
  $region4: #{_lambda_.9} parent=0 // loop_header_branch
    %12 = sbr.rel (%p10) target = $region8
  $region5: #{_lambda_.9} parent=0 // loop_body
    %s14 = ssub.s32 %s9, 1
    %s15 = ssub.s32 %s9, 2
    %s16 = sadd.s32 %s9, 1
    %s17 = ssub.s32 %s9, %s16
    %p18 = scmp.eq.s32.totalorder %s17, 0
    %s20 = sadd.s32 %s19, 1
    %s21 = scalar_select %p18, %s19, %s20
    %p24 = pneg %p18
    %p25 = scmp.eq.s32.totalorder %s9, 1
    %p26 = por %p24, %p25
    %p27 = scmp.ne.s32.totalorder %s19, %s22
    %p28 = scmp.eq.s32.totalorder %s9, 0
    %p29 = por %p27, %p28
    %p30 = scmp.ne.s32.totalorder %s19, %s22
    %p31 = scmp.eq.s32.totalorder %s14, 1
    %p32 = por %p30, %p31
    %p33 = scmp.ne.s32.totalorder %s22, %s23
    %p34 = scmp.eq.s32.totalorder %s14, 0
    %p35 = por %p33, %p34
    %p36 = scmp.ne.s32.totalorder %s22, %s23
    %p37 = scmp.eq.s32.totalorder %s15, 1
    %p38 = por %p36, %p37
    %p40 = scmp.ne.s32.totalorder %s23, %s39
    %p41 = scmp.eq.s32.totalorder %s15, 0
    %p42 = por %p40, %p41
    %s44 = sadd.s32 %s43, 1
    %p47 = scmp.eq.s32.totalorder %s9, 1
    %p48 = scmp.ne.s32.totalorder %s43, %s45
    %p49 = scmp.eq.s32.totalorder %s9, 0
    %p50 = por %p48, %p49
    %p51 = scmp.ne.s32.totalorder %s43, %s45
    %p52 = scmp.eq.s32.totalorder %s14, 1
    %p53 = por %p51, %p52
    %p54 = scmp.ne.s32.totalorder %s45, %s46
    %p55 = scmp.eq.s32.totalorder %s14, 0
    %p56 = por %p54, %p55
    %p57 = scmp.ne.s32.totalorder %s45, %s46
    %p58 = scmp.eq.s32.totalorder %s15, 1
    %p59 = por %p57, %p58
    %p61 = scmp.ne.s32.totalorder %s46, %s60
    %p62 = scmp.eq.s32.totalorder %s15, 0
    %p63 = por %p61, %p62
    %s65 = sadd.s32 %s64, 1
    %p68 = scmp.eq.s32.totalorder %s9, 1
    %p69 = scmp.ne.s32.totalorder %s64, %s66
    %p70 = scmp.eq.s32.totalorder %s9, 0
    %p71 = por %p69, %p70
    %p72 = scmp.ne.s32.totalorder %s64, %s66
    %p73 = scmp.eq.s32.totalorder %s14, 1
    %p74 = por %p72, %p73
    %p75 = scmp.ne.s32.totalorder %s66, %s67
    %p76 = scmp.eq.s32.totalorder %s14, 0
    %p77 = por %p75, %p76
    %p78 = scmp.ne.s32.totalorder %s66, %s67
    %p79 = scmp.eq.s32.totalorder %s15, 1
    %p80 = por %p78, %p79
    %p82 = scmp.ne.s32.totalorder %s67, %s81
    %p83 = scmp.eq.s32.totalorder %s15, 0
    %p84 = por %p82, %p83
    %s85 = ssub.s32 %s9, %s16
    %p86 = scmp.eq.s32.totalorder %s85, 0
    %s88 = sadd.s32 %s87, 1
    %s89 = scalar_select %p86, %s87, %s88
    %p92 = pneg %p86
    %p93 = scmp.eq.s32.totalorder %s9, 1
    %p94 = por %p92, %p93
    %p95 = scmp.ne.s32.totalorder %s87, %s90
    %p96 = scmp.eq.s32.totalorder %s9, 0
    %p97 = por %p95, %p96
    %p98 = scmp.ne.s32.totalorder %s87, %s90
    %p99 = scmp.eq.s32.totalorder %s14, 1
    %p100 = por %p98, %p99
    %p101 = scmp.ne.s32.totalorder %s90, %s91
    %p102 = scmp.eq.s32.totalorder %s14, 0
    %p103 = por %p101, %p102
    %p104 = scmp.ne.s32.totalorder %s90, %s91
    %p105 = scmp.eq.s32.totalorder %s15, 1
    %p106 = por %p104, %p105
    %p108 = scmp.ne.s32.totalorder %s91, %s107
    %p109 = scmp.eq.s32.totalorder %s15, 0
    %p110 = por %p108, %p109
    %p111 = scmp.le.s32.totalorder 1, %s9
    %p112 = scmp.lt.s32.totalorder %s9, 3
    %p113 = pnand %p111, %p112
    %p114 = pneg %p113
    // Predicated region
    $region9: #{_lambda_.9} parent=5 // pred_check
      _
    $region10: #{_lambda_.9} parent=5 // pred_check_branch
      %116 = sbr.rel (%p113) target = $region12
    $region11: #{_lambda_.9} parent=5 // pred_region
      %s117 = ssub.s32 %s9, 1
      // Predicated region
      $region13: #{_lambda_.9} parent=11 // pred_check
        %p118 = pneg %p56
      $region14: #{_lambda_.9} parent=11 // pred_check_branch
        %120 = sbr.rel (%p118) target = $region16
      $region15: #{_lambda_.9} parent=11 // pred_region
        _
      $region16: #{_lambda_.9} parent=11 // pred_fallthru
        _
      // Predicated region
      $region17: #{_lambda_.9} parent=11 // pred_check
        %p121 = pneg %p77
      $region18: #{_lambda_.9} parent=11 // pred_check_branch
        %123 = sbr.rel (%p121) target = $region20
      $region19: #{_lambda_.9} parent=11 // pred_region
        _
      $region20: #{_lambda_.9} parent=11 // pred_fallthru
        _
    $region12: #{_lambda_.9} parent=5 // pred_fallthru
      _
    %p124 = scmp.lt.s32.totalorder %s9, 2
    // Predicated region
    $region21: #{_lambda_.9} parent=5 // pred_check
      %p125 = pneg %p124
    $region22: #{_lambda_.9} parent=5 // pred_check_branch
      %127 = sbr.rel (%p125) target = $region24
    $region23: #{_lambda_.9} parent=5 // pred_region
      // Predicated region
      $region25: #{_lambda_.9} parent=23 // pred_check
        %p128 = pneg %p29
      $region26: #{_lambda_.9} parent=23 // pred_check_branch
        %130 = sbr.rel (%p128) target = $region28
      $region27: #{_lambda_.9} parent=23 // pred_region
        %s131 = smul.u32 8, %s9
        %p132 = scmp.lt.s32.totalorder %s131, 15
        %s133 = scalar_select %p132, %s131, 15
        %s134 = smul.addr %s133, 4
        %s135 = scalar_lea.vmem %s0, %s134
        %s136 = smul.u32 8, %s9
      $region28: #{_lambda_.9} parent=23 // pred_fallthru
        _
    $region24: #{_lambda_.9} parent=5 // pred_fallthru
      _
    %p137 = scmp.le.s32.totalorder 1, %s9
    %p138 = scmp.lt.s32.totalorder %s9, 3
    %p139 = pnand %p137, %p138
    %p140 = pneg %p139
    // Predicated region
    $region29: #{_lambda_.9} parent=5 // pred_check
      _
    $region30: #{_lambda_.9} parent=5 // pred_check_branch
      %142 = sbr.rel (%p139) target = $region32
    $region31: #{_lambda_.9} parent=5 // pred_region
      %s143 = ssub.s32 %s9, 1
      %s144 = smul.u32 8, %s14
      %p145 = scmp.lt.s32.totalorder %s144, 15
      %s146 = scalar_select %p145, %s144, 15
      %s147 = smul.addr %s146, 4
      %s148 = scalar_lea.vmem %s0, %s147
      %p149 = pneg %p35
      %p150 = pneg %p32
      %p151 = pneg %p56
      %p152 = pneg %p53
      %p153 = pneg %p77
      %p154 = pneg %p74
      %p155 = pneg %p103
      %p156 = pneg %p100
      %s157 = smul.u32 8, %s14
      %p158 = scmp.lt.s32.totalorder %s157, 15
      %s159 = scalar_select %p158, %s157, 15
      %s160 = smul.addr %s159, 4
      %s161 = scalar_lea.vmem %s3, %s160
      %s162 = smul.u32 8, %s14
      %p163 = scmp.lt.s32.totalorder %s162, 15
      %s164 = scalar_select %p163, %s162, 15
      %s165 = smul.addr %s164, 4
      %s166 = scalar_lea.vmem %s0, %s165
      %s167 = smul.u32 8, %s14
      %s168 = smul.u32 8, %s14
      %p169 = scmp.lt.s32.totalorder %s168, 15
      %s170 = scalar_select %p169, %s168, 15
      %s171 = smul.addr %s170, 4
      %s172 = scalar_lea.vmem %s3, %s171
      %s173 = smul.u32 8, %s14
      %v175 = vld [vmem:[%s166] sm:$0xf]
      %v176 = vld [vmem:[%s166 + $0x4] sm:$0xf]
      %v177 = vld [vmem:[%s166 + $0x8] sm:$0xf]
      %v178 = vld [vmem:[%s166 + $0xc] sm:$0xf]
      %v179 = vld [vmem:[%s166 + $0x10] sm:$0xf]
      %v180 = vld [vmem:[%s166 + $0x14] sm:$0xf]
      %v181 = vld [vmem:[%s166 + $0x18] sm:$0xf]
      %v182 = vld [vmem:[%s166 + $0x1c] sm:$0xf]
      %v183 = vld [vmem:[%s1] sm:$0xf]
      %v184 = vld [vmem:[%s1 + $0x4] sm:$0xf]
      %v185 = vld [vmem:[%s1 + $0x8] sm:$0xf]
      %v186 = vld [vmem:[%s1 + $0xc] sm:$0xf]
      %v187 = vld [vmem:[%s1 + $0x10] sm:$0xf]
      %v188 = vld [vmem:[%s1 + $0x14] sm:$0xf]
      %v189 = vld [vmem:[%s1 + $0x18] sm:$0xf]
      %v190 = vld [vmem:[%s1 + $0x1c] sm:$0xf]
      %v191 = vld [vmem:[%s1 + $0x20] sm:$0xf]
      %v192 = vld [vmem:[%s1 + $0x24] sm:$0xf]
      %v193 = vld [vmem:[%s1 + $0x28] sm:$0xf]
      %v194 = vld [vmem:[%s1 + $0x2c] sm:$0xf]
      %v195 = vld [vmem:[%s1 + $0x30] sm:$0xf]
      %v196 = vld [vmem:[%s1 + $0x34] sm:$0xf]
      %v197 = vld [vmem:[%s1 + $0x38] sm:$0xf]
      %v198 = vld [vmem:[%s1 + $0x3c] sm:$0xf]
      %v199 = vld [vmem:[%s2] sm:$0x1]
      %v201 = vlaneseq
      %v202 = vshrl.u32 %v201, 7
      %v203 = vsub.s32 0, %v202
      %v204 = vrot.slane %v199, %v203
      %v214 = vunpack.c.l.b16 %v175
      %v215 = vunpack.c.l.b16 %v176
      %v216 = vunpack.c.l.b16 %v177
      %v217 = vunpack.c.l.b16 %v178
      %v218 = vunpack.c.l.b16 %v179
      %v219 = vunpack.c.l.b16 %v180
      %v220 = vunpack.c.l.b16 %v181
      %v221 = vunpack.c.l.b16 %v182
      %v222 = vpack.c.b16 %v215, %v214
      %v223 = vpack.c.b16 %v217, %v216
      %v224 = vpack.c.b16 %v219, %v218
      %v225 = vpack.c.b16 %v221, %v220
      %v246 = vunpack.c.l.b16 %v183
      %v247 = vunpack.c.l.b16 %v184
      %v248 = vunpack.c.l.b16 %v185
      %v249 = vunpack.c.l.b16 %v186
      %v250 = vunpack.c.l.b16 %v187
      %v251 = vunpack.c.l.b16 %v188
      %v252 = vunpack.c.l.b16 %v189
      %v253 = vunpack.c.l.b16 %v190
      %v254 = vunpack.c.l.b16 %v191
      %v255 = vunpack.c.l.b16 %v192
      %v256 = vunpack.c.l.b16 %v193
      %v257 = vunpack.c.l.b16 %v194
      %v258 = vunpack.c.l.b16 %v195
      %v259 = vunpack.c.l.b16 %v196
      %v260 = vunpack.c.l.b16 %v197
      %v261 = vunpack.c.l.b16 %v198
      %v262 = vpack.c.b16 %v247, %v246
      %v263 = vpack.c.b16 %v249, %v248
      %v264 = vpack.c.b16 %v251, %v250
      %v265 = vpack.c.b16 %v253, %v252
      %v266 = vpack.c.b16 %v255, %v254
      %v267 = vpack.c.b16 %v257, %v256
      %v268 = vpack.c.b16 %v259, %v258
      %v269 = vpack.c.b16 %v261, %v260
      %278 = vmatprep.subr.bf16.mxu0 0
      %279 = vmatpush1.bf16.msra.mxu0 %v262
      %280 = vmatprep.subr.bf16.mxu0 0
      %281 = vmatpush1.bf16.msra.mxu0 %v263
      %282 = vmatprep.subr.bf16.mxu0 0
      %283 = vmatpush1.bf16.msra.mxu0 %v264
      %284 = vmatprep.subr.bf16.mxu0 0
      %285 = vmatpush1.bf16.msra.mxu0 %v265
      %286 = vmatprep.subr.bf16.mxu0 0
      %287 = vmatpush1.bf16.msra.mxu0 %v266
      %288 = vmatprep.subr.bf16.mxu0 0
      %289 = vmatpush1.bf16.msra.mxu0 %v267
      %290 = vmatprep.subr.bf16.mxu0 0
      %291 = vmatpush1.bf16.msra.mxu0 %v268
      %292 = vmatprep.subr.bf16.mxu0 0
      %293 = vmatpush1.bf16.msra.mxu0 %v269
      %294 = vmatprep.subr.bf16.mxu0 0
      %295 = vmatpush1.bf16.msra.mxu0 0
      %296 = vmatprep.subr.bf16.mxu0 0
      %297 = vmatpush1.bf16.msra.mxu0 0
      %298 = vmatprep.subr.bf16.mxu0 0
      %299 = vmatpush1.bf16.msra.mxu0 0
      %300 = vmatprep.subr.bf16.mxu0 0
      %301 = vmatpush1.bf16.msra.mxu0 0
      %302 = vmatprep.subr.bf16.mxu0 0
      %303 = vmatpush1.bf16.msra.mxu0 0
      %304 = vmatprep.subr.bf16.mxu0 0
      %305 = vmatpush1.bf16.msra.mxu0 0
      %306 = vmatprep.subr.bf16.mxu0 0
      %307 = vmatpush1.bf16.msra.mxu0 0
      %308 = vmatprep.subr.bf16.mxu0 0
      %309 = vmatpush1.bf16.msra.mxu0 0
      %310 = vmatprep.mubr.bf16.mxu0 0
      %311 = vmatmul.mubr.bf16.gmra.mrb[0].mxu0 %v222
      %v312 = vpop.f32.mrb[0].mxu0
      %v313 = vadd.f32 %v204, %v312
      %v314 = vpop.f32.mrb[0].mxu0
      %v315 = vpop.f32.mrb[0].mxu0
      %v316 = vadd.f32 %v204, %v315
      %v317 = vpop.f32.mrb[0].mxu0
      %318 = vmatprep.mubr.bf16.mxu0 0
      %319 = vmatmul.mubr.bf16.gmra.mrb[0].mxu0 %v223
      %v320 = vpop.f32.mrb[0].mxu0
      %v321 = vadd.f32 %v204, %v320
      %v322 = vpop.f32.mrb[0].mxu0
      %v323 = vpop.f32.mrb[0].mxu0
      %v324 = vadd.f32 %v204, %v323
      %v325 = vpop.f32.mrb[0].mxu0
      %326 = vmatprep.mubr.bf16.mxu0 0
      %327 = vmatmul.mubr.bf16.gmra.mrb[0].mxu0 %v224
      %v328 = vpop.f32.mrb[0].mxu0
      %v329 = vadd.f32 %v204, %v328
      %v330 = vpop.f32.mrb[0].mxu0
      %v331 = vpop.f32.mrb[0].mxu0
      %v332 = vadd.f32 %v204, %v331
      %v333 = vpop.f32.mrb[0].mxu0
      %334 = vmatprep.mubr.bf16.mxu0 0
      %335 = vmatmul.mubr.bf16.gmra.mrb[0].mxu0 %v225
      %v336 = vpop.f32.mrb[0].mxu0
      %v337 = vadd.f32 %v204, %v336
      %v338 = vpop.f32.mrb[0].mxu0
      %v339 = vpop.f32.mrb[0].mxu0
      %v340 = vadd.f32 %v204, %v339
      %v341 = vpop.f32.mrb[0].mxu0
      %342 = vdwg.mxu0
      %v343 = vmax.f32 %v313, 0.0
      %v344 = vmax.f32 %v316, 0.0
      %v345 = vmax.f32 %v321, 0.0
      %v346 = vmax.f32 %v324, 0.0
      %v347 = vmax.f32 %v329, 0.0
      %v348 = vmax.f32 %v332, 0.0
      %v349 = vmax.f32 %v337, 0.0
      %v350 = vmax.f32 %v340, 0.0
      %v351 = vpack.c.bf16 %v344, %v343
      %v352 = vpack.c.bf16 %v346, %v345
      %v353 = vpack.c.bf16 %v348, %v347
      %v354 = vpack.c.bf16 %v350, %v349
      %v359 = vunpack.c.l.b16 %v351
      %v360 = vunpack.c.h.b16 %v351
      %v361 = vunpack.c.l.b16 %v352
      %v362 = vunpack.c.h.b16 %v352
      %v363 = vunpack.c.l.b16 %v353
      %v364 = vunpack.c.h.b16 %v353
      %v365 = vunpack.c.l.b16 %v354
      %v366 = vunpack.c.h.b16 %v354
      %v367 = vpack.c.b16 %v359, %v359
      %v368 = vpack.c.b16 %v360, %v360
      %v369 = vpack.c.b16 %v361, %v361
      %v370 = vpack.c.b16 %v362, %v362
      %v371 = vpack.c.b16 %v363, %v363
      %v372 = vpack.c.b16 %v364, %v364
      %v373 = vpack.c.b16 %v365, %v365
      %v374 = vpack.c.b16 %v366, %v366
      %383 = vst [vmem:[%s172] sm:$0xf] %v367
      %384 = vst [vmem:[%s172 + $0x4] sm:$0xf] %v368
      %385 = vst [vmem:[%s172 + $0x8] sm:$0xf] %v369
      %386 = vst [vmem:[%s172 + $0xc] sm:$0xf] %v370
      %387 = vst [vmem:[%s172 + $0x10] sm:$0xf] %v371
      %388 = vst [vmem:[%s172 + $0x14] sm:$0xf] %v372
      %389 = vst [vmem:[%s172 + $0x18] sm:$0xf] %v373
      %390 = vst [vmem:[%s172 + $0x1c] sm:$0xf] %v374
      %s391 = smul.u32 8, %s14
      %p392 = scmp.lt.s32.totalorder %s391, 15
      %s393 = scalar_select %p392, %s391, 15
      %s394 = smul.addr %s393, 4
      %s395 = scalar_lea.vmem %s3, %s394
      // Predicated region
      $region33: #{_lambda_.9} parent=31 // pred_check
        %p396 = pneg %p100
      $region34: #{_lambda_.9} parent=31 // pred_check_branch
        %398 = sbr.rel (%p396) target = $region36
      $region35: #{_lambda_.9} parent=31 // pred_region
        %s399 = smul.u32 8, %s14
      $region36: #{_lambda_.9} parent=31 // pred_fallthru
        _
    $region32: #{_lambda_.9} parent=5 // pred_fallthru
      _
    %p400 = scmp.le.s32.totalorder 2, %s9
    // Predicated region
    $region37: #{_lambda_.9} parent=5 // pred_check
      %p401 = pneg %p400
    $region38: #{_lambda_.9} parent=5 // pred_check_branch
      %403 = sbr.rel (%p401) target = $region40
    $region39: #{_lambda_.9} parent=5 // pred_region
      %s404 = ssub.s32 %s9, 2
      // Predicated region
      $region41: #{_lambda_.9} parent=39 // pred_check
        %p405 = pneg %p106
      $region42: #{_lambda_.9} parent=39 // pred_check_branch
        %407 = sbr.rel (%p405) target = $region44
      $region43: #{_lambda_.9} parent=39 // pred_region
        %s408 = smul.u32 8, %s15
        %p409 = scmp.lt.s32.totalorder %s408, 15
        %s410 = scalar_select %p409, %s408, 15
        %s411 = smul.addr %s410, 4
        %s412 = scalar_lea.vmem %s3, %s411
      $region44: #{_lambda_.9} parent=39 // pred_fallthru
        _
    $region40: #{_lambda_.9} parent=5 // pred_fallthru
      _
  $region6: #{_lambda_.9} parent=0 // loop_footer
    %s13 = sadd.s32 1, %s9
  $region7: #{_lambda_.9} parent=0 // loop_footer_branch
    %8 = sbr.rel target = $region3
  $region8: #{_lambda_.9} parent=0 // loop_exit
    _

// kernel: _lambda_.10
$region0: #{_lambda_.10}
  #allocation0 [shape = 'u32[]', space=smem, size = 0x4, offset = 0x4, fixed_abs, tag = 'smem constant byte address 0x4 - core index']
  #allocation1 [shape = 'u32[144,128]{1,0:T(1,128)}', space=vmem, size = 0x12000, scoped, tag = 'internal scratch']
  %s0 = inlined_call_operand.vmem [shape: bf16[32,128], index: 0, kind: input, shape index: {}]
  %s1 = inlined_call_operand.vmem [shape: bf16[128,128], index: 1, kind: input, shape index: {}]
  %s2 = inlined_call_operand.vmem [shape: f32[1,128], index: 2, kind: input, shape index: {}]
  %s3 = inlined_call_operand.vmem [shape: bf16[32,128], index: 3, kind: output, shape index: {}]
  %s4 = sld [smem:[#allocation0]]
  $region45: #{_lambda_.10} parent=0
    _
  %s6 = ssub.s32 1, %s4
  %s7 = scalar_select 0, %s6, %s4
  loop: start=0, step=1, limit=4
  $region2: #{_lambda_.10} parent=0 // loop_pre_header
    _
  $region3: #{_lambda_.10} parent=0 // loop_header
    %s9 = sphi 0, %s13
    %p10 = scmp.ge.s32.totalorder %s9, 4
    %s19 = sphi 0, %s21
    %s22 = sphi 0, %s19
    %s23 = sphi 0, %s22
    %s39 = sphi 0, %s23
    %s43 = sphi 0, %s43
    %s45 = sphi 0, %s43
    %s46 = sphi 0, %s45
    %s60 = sphi 0, %s46
    %s64 = sphi 0, %s64
    %s66 = sphi 0, %s64
    %s67 = sphi 0, %s66
    %s81 = sphi 0, %s67
    %s87 = sphi 0, %s89
    %s90 = sphi 0, %s87
    %s91 = sphi 0, %s90
    %s107 = sphi 0, %s91
  $region4: #{_lambda_.10} parent=0 // loop_header_branch
    %12 = sbr.rel (%p10) target = $region8
  $region5: #{_lambda_.10} parent=0 // loop_body
    %s14 = ssub.s32 %s9, 1
    %s15 = ssub.s32 %s9, 2
    %s16 = sadd.s32 %s9, 1
    %s17 = ssub.s32 %s9, %s16
    %p18 = scmp.eq.s32.totalorder %s17, 0
    %s20 = sadd.s32 %s19, 1
    %s21 = scalar_select %p18, %s19, %s20
    %p24 = pneg %p18
    %p25 = scmp.eq.s32.totalorder %s9, 1
    %p26 = por %p24, %p25
    %p27 = scmp.ne.s32.totalorder %s19, %s22
    %p28 = scmp.eq.s32.totalorder %s9, 0
    %p29 = por %p27, %p28
    %p30 = scmp.ne.s32.totalorder %s19, %s22
    %p31 = scmp.eq.s32.totalorder %s14, 1
    %p32 = por %p30, %p31
    %p33 = scmp.ne.s32.totalorder %s22, %s23
    %p34 = scmp.eq.s32.totalorder %s14, 0
    %p35 = por %p33, %p34
    %p36 = scmp.ne.s32.totalorder %s22, %s23
    %p37 = scmp.eq.s32.totalorder %s15, 1
    %p38 = por %p36, %p37
    %p40 = scmp.ne.s32.totalorder %s23, %s39
    %p41 = scmp.eq.s32.totalorder %s15, 0
    %p42 = por %p40, %p41
    %s44 = sadd.s32 %s43, 1
    %p47 = scmp.eq.s32.totalorder %s9, 1
    %p48 = scmp.ne.s32.totalorder %s43, %s45
    %p49 = scmp.eq.s32.totalorder %s9, 0
    %p50 = por %p48, %p49
    %p51 = scmp.ne.s32.totalorder %s43, %s45
    %p52 = scmp.eq.s32.totalorder %s14, 1
    %p53 = por %p51, %p52
    %p54 = scmp.ne.s32.totalorder %s45, %s46
    %p55 = scmp.eq.s32.totalorder %s14, 0
    %p56 = por %p54, %p55
    %p57 = scmp.ne.s32.totalorder %s45, %s46
    %p58 = scmp.eq.s32.totalorder %s15, 1
    %p59 = por %p57, %p58
    %p61 = scmp.ne.s32.totalorder %s46, %s60
    %p62 = scmp.eq.s32.totalorder %s15, 0
    %p63 = por %p61, %p62
    %s65 = sadd.s32 %s64, 1
    %p68 = scmp.eq.s32.totalorder %s9, 1
    %p69 = scmp.ne.s32.totalorder %s64, %s66
    %p70 = scmp.eq.s32.totalorder %s9, 0
    %p71 = por %p69, %p70
    %p72 = scmp.ne.s32.totalorder %s64, %s66
    %p73 = scmp.eq.s32.totalorder %s14, 1
    %p74 = por %p72, %p73
    %p75 = scmp.ne.s32.totalorder %s66, %s67
    %p76 = scmp.eq.s32.totalorder %s14, 0
    %p77 = por %p75, %p76
    %p78 = scmp.ne.s32.totalorder %s66, %s67
    %p79 = scmp.eq.s32.totalorder %s15, 1
    %p80 = por %p78, %p79
    %p82 = scmp.ne.s32.totalorder %s67, %s81
    %p83 = scmp.eq.s32.totalorder %s15, 0
    %p84 = por %p82, %p83
    %s85 = ssub.s32 %s9, %s16
    %p86 = scmp.eq.s32.totalorder %s85, 0
    %s88 = sadd.s32 %s87, 1
    %s89 = scalar_select %p86, %s87, %s88
    %p92 = pneg %p86
    %p93 = scmp.eq.s32.totalorder %s9, 1
    %p94 = por %p92, %p93
    %p95 = scmp.ne.s32.totalorder %s87, %s90
    %p96 = scmp.eq.s32.totalorder %s9, 0
    %p97 = por %p95, %p96
    %p98 = scmp.ne.s32.totalorder %s87, %s90
    %p99 = scmp.eq.s32.totalorder %s14, 1
    %p100 = por %p98, %p99
    %p101 = scmp.ne.s32.totalorder %s90, %s91
    %p102 = scmp.eq.s32.totalorder %s14, 0
    %p103 = por %p101, %p102
    %p104 = scmp.ne.s32.totalorder %s90, %s91
    %p105 = scmp.eq.s32.totalorder %s15, 1
    %p106 = por %p104, %p105
    %p108 = scmp.ne.s32.totalorder %s91, %s107
    %p109 = scmp.eq.s32.totalorder %s15, 0
    %p110 = por %p108, %p109
    %p111 = scmp.le.s32.totalorder 1, %s9
    %p112 = scmp.lt.s32.totalorder %s9, 3
    %p113 = pnand %p111, %p112
    %p114 = pneg %p113
    // Predicated region
    $region9: #{_lambda_.10} parent=5 // pred_check
      _
    $region10: #{_lambda_.10} parent=5 // pred_check_branch
      %116 = sbr.rel (%p113) target = $region12
    $region11: #{_lambda_.10} parent=5 // pred_region
      %s117 = ssub.s32 %s9, 1
      // Predicated region
      $region13: #{_lambda_.10} parent=11 // pred_check
        %p118 = pneg %p56
      $region14: #{_lambda_.10} parent=11 // pred_check_branch
        %120 = sbr.rel (%p118) target = $region16
      $region15: #{_lambda_.10} parent=11 // pred_region
        _
      $region16: #{_lambda_.10} parent=11 // pred_fallthru
        _
      // Predicated region
      $region17: #{_lambda_.10} parent=11 // pred_check
        %p121 = pneg %p77
      $region18: #{_lambda_.10} parent=11 // pred_check_branch
        %123 = sbr.rel (%p121) target = $region20
      $region19: #{_lambda_.10} parent=11 // pred_region
        _
      $region20: #{_lambda_.10} parent=11 // pred_fallthru
        _
    $region12: #{_lambda_.10} parent=5 // pred_fallthru
      _
    %p124 = scmp.lt.s32.totalorder %s9, 2
    // Predicated region
    $region21: #{_lambda_.10} parent=5 // pred_check
      %p125 = pneg %p124
    $region22: #{_lambda_.10} parent=5 // pred_check_branch
      %127 = sbr.rel (%p125) target = $region24
    $region23: #{_lambda_.10} parent=5 // pred_region
      // Predicated region
      $region25: #{_lambda_.10} parent=23 // pred_check
        %p128 = pneg %p29
      $region26: #{_lambda_.10} parent=23 // pred_check_branch
        %130 = sbr.rel (%p128) target = $region28
      $region27: #{_lambda_.10} parent=23 // pred_region
        %s131 = smul.u32 2, %s9
        %p132 = scmp.lt.s32.totalorder %s131, 3
        %s133 = scalar_select %p132, %s131, 3
        %s134 = smul.addr %s133, 4
        %s135 = scalar_lea.vmem %s0, %s134
        %s136 = smul.u32 2, %s9
      $region28: #{_lambda_.10} parent=23 // pred_fallthru
        _
    $region24: #{_lambda_.10} parent=5 // pred_fallthru
      _
    %p137 = scmp.le.s32.totalorder 1, %s9
    %p138 = scmp.lt.s32.totalorder %s9, 3
    %p139 = pnand %p137, %p138
    %p140 = pneg %p139
    // Predicated region
    $region29: #{_lambda_.10} parent=5 // pred_check
      _
    $region30: #{_lambda_.10} parent=5 // pred_check_branch
      %142 = sbr.rel (%p139) target = $region32
    $region31: #{_lambda_.10} parent=5 // pred_region
      %s143 = ssub.s32 %s9, 1
      %s144 = smul.u32 2, %s14
      %p145 = scmp.lt.s32.totalorder %s144, 3
      %s146 = scalar_select %p145, %s144, 3
      %s147 = smul.addr %s146, 4
      %s148 = scalar_lea.vmem %s0, %s147
      %p149 = pneg %p35
      %p150 = pneg %p32
      %p151 = pneg %p56
      %p152 = pneg %p53
      %p153 = pneg %p77
      %p154 = pneg %p74
      %p155 = pneg %p103
      %p156 = pneg %p100
      %s157 = smul.u32 2, %s14
      %p158 = scmp.lt.s32.totalorder %s157, 3
      %s159 = scalar_select %p158, %s157, 3
      %s160 = smul.addr %s159, 4
      %s161 = scalar_lea.vmem %s3, %s160
      %s162 = smul.u32 2, %s14
      %p163 = scmp.lt.s32.totalorder %s162, 3
      %s164 = scalar_select %p163, %s162, 3
      %s165 = smul.addr %s164, 4
      %s166 = scalar_lea.vmem %s0, %s165
      %s167 = smul.u32 2, %s14
      %s168 = smul.u32 2, %s14
      %p169 = scmp.lt.s32.totalorder %s168, 3
      %s170 = scalar_select %p169, %s168, 3
      %s171 = smul.addr %s170, 4
      %s172 = scalar_lea.vmem %s3, %s171
      %s173 = smul.u32 2, %s14
      %v175 = vld [vmem:[%s166] sm:$0xf]
      %v176 = vld [vmem:[%s166 + $0x4] sm:$0xf]
      %v177 = vld [vmem:[%s1] sm:$0xf]
      %v178 = vld [vmem:[%s1 + $0x4] sm:$0xf]
      %v179 = vld [vmem:[%s1 + $0x8] sm:$0xf]
      %v180 = vld [vmem:[%s1 + $0xc] sm:$0xf]
      %v181 = vld [vmem:[%s1 + $0x10] sm:$0xf]
      %v182 = vld [vmem:[%s1 + $0x14] sm:$0xf]
      %v183 = vld [vmem:[%s1 + $0x18] sm:$0xf]
      %v184 = vld [vmem:[%s1 + $0x1c] sm:$0xf]
      %v185 = vld [vmem:[%s1 + $0x20] sm:$0xf]
      %v186 = vld [vmem:[%s1 + $0x24] sm:$0xf]
      %v187 = vld [vmem:[%s1 + $0x28] sm:$0xf]
      %v188 = vld [vmem:[%s1 + $0x2c] sm:$0xf]
      %v189 = vld [vmem:[%s1 + $0x30] sm:$0xf]
      %v190 = vld [vmem:[%s1 + $0x34] sm:$0xf]
      %v191 = vld [vmem:[%s1 + $0x38] sm:$0xf]
      %v192 = vld [vmem:[%s1 + $0x3c] sm:$0xf]
      %v193 = vld [vmem:[%s2] sm:$0x1]
      %v195 = vlaneseq
      %v196 = vshrl.u32 %v195, 7
      %v197 = vsub.s32 0, %v196
      %v198 = vrot.slane %v193, %v197
      %v202 = vunpack.c.l.b16 %v175
      %v203 = vunpack.c.l.b16 %v176
      %v204 = vpack.c.b16 %v203, %v202
      %v222 = vunpack.c.l.b16 %v177
      %v223 = vunpack.c.l.b16 %v178
      %v224 = vunpack.c.l.b16 %v179
      %v225 = vunpack.c.l.b16 %v180
      %v226 = vunpack.c.l.b16 %v181
      %v227 = vunpack.c.l.b16 %v182
      %v228 = vunpack.c.l.b16 %v183
      %v229 = vunpack.c.l.b16 %v184
      %v230 = vunpack.c.l.b16 %v185
      %v231 = vunpack.c.l.b16 %v186
      %v232 = vunpack.c.l.b16 %v187
      %v233 = vunpack.c.l.b16 %v188
      %v234 = vunpack.c.l.b16 %v189
      %v235 = vunpack.c.l.b16 %v190
      %v236 = vunpack.c.l.b16 %v191
      %v237 = vunpack.c.l.b16 %v192
      %v238 = vpack.c.b16 %v223, %v222
      %v239 = vpack.c.b16 %v225, %v224
      %v240 = vpack.c.b16 %v227, %v226
      %v241 = vpack.c.b16 %v229, %v228
      %v242 = vpack.c.b16 %v231, %v230
      %v243 = vpack.c.b16 %v233, %v232
      %v244 = vpack.c.b16 %v235, %v234
      %v245 = vpack.c.b16 %v237, %v236
      %254 = vmatprep.subr.bf16.mxu0 0
      %255 = vmatpush1.bf16.msra.mxu0 %v238
      %256 = vmatprep.subr.bf16.mxu0 0
      %257 = vmatpush1.bf16.msra.mxu0 %v239
      %258 = vmatprep.subr.bf16.mxu0 0
      %259 = vmatpush1.bf16.msra.mxu0 %v240
      %260 = vmatprep.subr.bf16.mxu0 0
      %261 = vmatpush1.bf16.msra.mxu0 %v241
      %262 = vmatprep.subr.bf16.mxu0 0
      %263 = vmatpush1.bf16.msra.mxu0 %v242
      %264 = vmatprep.subr.bf16.mxu0 0
      %265 = vmatpush1.bf16.msra.mxu0 %v243
      %266 = vmatprep.subr.bf16.mxu0 0
      %267 = vmatpush1.bf16.msra.mxu0 %v244
      %268 = vmatprep.subr.bf16.mxu0 0
      %269 = vmatpush1.bf16.msra.mxu0 %v245
      %270 = vmatprep.subr.bf16.mxu0 0
      %271 = vmatpush1.bf16.msra.mxu0 0
      %272 = vmatprep.subr.bf16.mxu0 0
      %273 = vmatpush1.bf16.msra.mxu0 0
      %274 = vmatprep.subr.bf16.mxu0 0
      %275 = vmatpush1.bf16.msra.mxu0 0
      %276 = vmatprep.subr.bf16.mxu0 0
      %277 = vmatpush1.bf16.msra.mxu0 0
      %278 = vmatprep.subr.bf16.mxu0 0
      %279 = vmatpush1.bf16.msra.mxu0 0
      %280 = vmatprep.subr.bf16.mxu0 0
      %281 = vmatpush1.bf16.msra.mxu0 0
      %282 = vmatprep.subr.bf16.mxu0 0
      %283 = vmatpush1.bf16.msra.mxu0 0
      %284 = vmatprep.subr.bf16.mxu0 0
      %285 = vmatpush1.bf16.msra.mxu0 0
      %286 = vmatprep.mubr.bf16.mxu0 0
      %287 = vmatmul.mubr.bf16.gmra.mrb[0].mxu0 %v204
      %v288 = vpop.f32.mrb[0].mxu0
      %v289 = vadd.f32 %v198, %v288
      %v290 = vpop.f32.mrb[0].mxu0
      %v291 = vpop.f32.mrb[0].mxu0
      %v292 = vadd.f32 %v198, %v291
      %v293 = vpop.f32.mrb[0].mxu0
      %294 = vdwg.mxu0
      %v295 = vmax.f32 %v289, 0.0
      %v296 = vmax.f32 %v292, 0.0
      %v297 = vpack.c.bf16 %v296, %v295
      %v299 = vunpack.c.l.b16 %v297
      %v300 = vunpack.c.h.b16 %v297
      %v301 = vpack.c.b16 %v299, %v299
      %v302 = vpack.c.b16 %v300, %v300
      %305 = vst [vmem:[%s172] sm:$0xf] %v301
      %306 = vst [vmem:[%s172 + $0x4] sm:$0xf] %v302
      %s307 = smul.u32 2, %s14
      %p308 = scmp.lt.s32.totalorder %s307, 3
      %s309 = scalar_select %p308, %s307, 3
      %s310 = smul.addr %s309, 4
      %s311 = scalar_lea.vmem %s3, %s310
      // Predicated region
      $region33: #{_lambda_.10} parent=31 // pred_check
        %p312 = pneg %p100
      $region34: #{_lambda_.10} parent=31 // pred_check_branch
        %314 = sbr.rel (%p312) target = $region36
      $region35: #{_lambda_.10} parent=31 // pred_region
        %s315 = smul.u32 2, %s14
      $region36: #{_lambda_.10} parent=31 // pred_fallthru
        _
    $region32: #{_lambda_.10} parent=5 // pred_fallthru
      _
    %p316 = scmp.le.s32.totalorder 2, %s9
    // Predicated region
    $region37: #{_lambda_.10} parent=5 // pred_check
      %p317 = pneg %p316
    $region38: #{_lambda_.10} parent=5 // pred_check_branch
      %319 = sbr.rel (%p317) target = $region40
    $region39: #{_lambda_.10} parent=5 // pred_region
      %s320 = ssub.s32 %s9, 2
      // Predicated region
      $region41: #{_lambda_.10} parent=39 // pred_check
        %p321 = pneg %p106
      $region42: #{_lambda_.10} parent=39 // pred_check_branch
        %323 = sbr.rel (%p321) target = $region44
      $region43: #{_lambda_.10} parent=39 // pred_region
        %s324 = smul.u32 2, %s15
        %p325 = scmp.lt.s32.totalorder %s324, 3
        %s326 = scalar_select %p325, %s324, 3
        %s327 = smul.addr %s326, 4
        %s328 = scalar_lea.vmem %s3, %s327
      $region44: #{_lambda_.10} parent=39 // pred_fallthru
        _
    $region40: #{_lambda_.10} parent=5 // pred_fallthru
      _
  $region6: #{_lambda_.10} parent=0 // loop_footer
    %s13 = sadd.s32 1, %s9
  $region7: #{_lambda_.10} parent=0 // loop_footer_branch
    %8 = sbr.rel target = $region3
  $region8: #{_lambda_.10} parent=0 // loop_exit
    _

// kernel: _lambda_.11
$region0: #{_lambda_.11}
  #allocation0 [shape = 'u32[]', space=smem, size = 0x4, offset = 0x4, fixed_abs, tag = 'smem constant byte address 0x4 - core index']
  #allocation1 [shape = 'u32[144,128]{1,0:T(1,128)}', space=vmem, size = 0x12000, scoped, tag = 'internal scratch']
  %s0 = inlined_call_operand.vmem [shape: bf16[16,256], index: 0, kind: input, shape index: {}]
  %s1 = inlined_call_operand.vmem [shape: bf16[256,128], index: 1, kind: input, shape index: {}]
  %s2 = inlined_call_operand.vmem [shape: f32[1,128], index: 2, kind: input, shape index: {}]
  %s3 = inlined_call_operand.vmem [shape: bf16[16,128], index: 3, kind: output, shape index: {}]
  %s4 = sld [smem:[#allocation0]]
  $region22: #{_lambda_.11} parent=0
    _
  %s6 = ssub.s32 1, %s4
  %s7 = scalar_select 0, %s6, %s4
  // Predicated region
  $region2: #{_lambda_.11} parent=0 // pred_check
    _
  $region3: #{_lambda_.11} parent=0 // pred_check_branch
    %9 = sbr.rel (0) target = $region5
  $region4: #{_lambda_.11} parent=0 // pred_region
    _
  $region5: #{_lambda_.11} parent=0 // pred_fallthru
    _
  // Predicated region
  $region6: #{_lambda_.11} parent=0 // pred_check
    _
  $region7: #{_lambda_.11} parent=0 // pred_check_branch
    %11 = sbr.rel (0) target = $region9
  $region8: #{_lambda_.11} parent=0 // pred_region
    _
  $region9: #{_lambda_.11} parent=0 // pred_fallthru
    _
  // Predicated region
  $region10: #{_lambda_.11} parent=0 // pred_check
    _
  $region11: #{_lambda_.11} parent=0 // pred_check_branch
    %13 = sbr.rel (0) target = $region13
  $region12: #{_lambda_.11} parent=0 // pred_region
    _
  $region13: #{_lambda_.11} parent=0 // pred_fallthru
    _
  %v15 = vld [vmem:[%s0] sm:$0xff]
  %v16 = vld [vmem:[%s0 + $0x8] sm:$0xff]
  %v17 = vld [vmem:[%s1] sm:$0xf]
  %v18 = vld [vmem:[%s1 + $0x4] sm:$0xf]
  %v19 = vld [vmem:[%s1 + $0x8] sm:$0xf]
  %v20 = vld [vmem:[%s1 + $0xc] sm:$0xf]
  %v21 = vld [vmem:[%s1 + $0x10] sm:$0xf]
  %v22 = vld [vmem:[%s1 + $0x14] sm:$0xf]
  %v23 = vld [vmem:[%s1 + $0x18] sm:$0xf]
  %v24 = vld [vmem:[%s1 + $0x1c] sm:$0xf]
  %v25 = vld [vmem:[%s1 + $0x20] sm:$0xf]
  %v26 = vld [vmem:[%s1 + $0x24] sm:$0xf]
  %v27 = vld [vmem:[%s1 + $0x28] sm:$0xf]
  %v28 = vld [vmem:[%s1 + $0x2c] sm:$0xf]
  %v29 = vld [vmem:[%s1 + $0x30] sm:$0xf]
  %v30 = vld [vmem:[%s1 + $0x34] sm:$0xf]
  %v31 = vld [vmem:[%s1 + $0x38] sm:$0xf]
  %v32 = vld [vmem:[%s1 + $0x3c] sm:$0xf]
  %v33 = vld [vmem:[%s1 + $0x40] sm:$0xf]
  %v34 = vld [vmem:[%s1 + $0x44] sm:$0xf]
  %v35 = vld [vmem:[%s1 + $0x48] sm:$0xf]
  %v36 = vld [vmem:[%s1 + $0x4c] sm:$0xf]
  %v37 = vld [vmem:[%s1 + $0x50] sm:$0xf]
  %v38 = vld [vmem:[%s1 + $0x54] sm:$0xf]
  %v39 = vld [vmem:[%s1 + $0x58] sm:$0xf]
  %v40 = vld [vmem:[%s1 + $0x5c] sm:$0xf]
  %v41 = vld [vmem:[%s1 + $0x60] sm:$0xf]
  %v42 = vld [vmem:[%s1 + $0x64] sm:$0xf]
  %v43 = vld [vmem:[%s1 + $0x68] sm:$0xf]
  %v44 = vld [vmem:[%s1 + $0x6c] sm:$0xf]
  %v45 = vld [vmem:[%s1 + $0x70] sm:$0xf]
  %v46 = vld [vmem:[%s1 + $0x74] sm:$0xf]
  %v47 = vld [vmem:[%s1 + $0x78] sm:$0xf]
  %v48 = vld [vmem:[%s1 + $0x7c] sm:$0xf]
  %v49 = vld [vmem:[%s2] sm:$0x1]
  %v51 = vlaneseq
  %v52 = vshrl.u32 %v51, 7
  %v53 = vsub.s32 0, %v52
  %v54 = vrot.slane %v49, %v53
  %v58 = vunpack.c.l.b16 %v15
  %v59 = vunpack.c.h.b16 %v15
  %v60 = vunpack.c.l.b16 %v16
  %v61 = vunpack.c.h.b16 %v16
  %v62 = vpack.c.b16 %v60, %v58
  %v63 = vpack.c.b16 %v61, %v59
  %v98 = vunpack.c.l.b16 %v17
  %v99 = vunpack.c.l.b16 %v18
  %v100 = vunpack.c.l.b16 %v19
  %v101 = vunpack.c.l.b16 %v20
  %v102 = vunpack.c.l.b16 %v21
  %v103 = vunpack.c.l.b16 %v22
  %v104 = vunpack.c.l.b16 %v23
  %v105 = vunpack.c.l.b16 %v24
  %v106 = vunpack.c.l.b16 %v25
  %v107 = vunpack.c.l.b16 %v26
  %v108 = vunpack.c.l.b16 %v27
  %v109 = vunpack.c.l.b16 %v28
  %v110 = vunpack.c.l.b16 %v29
  %v111 = vunpack.c.l.b16 %v30
  %v112 = vunpack.c.l.b16 %v31
  %v113 = vunpack.c.l.b16 %v32
  %v114 = vunpack.c.l.b16 %v33
  %v115 = vunpack.c.l.b16 %v34
  %v116 = vunpack.c.l.b16 %v35
  %v117 = vunpack.c.l.b16 %v36
  %v118 = vunpack.c.l.b16 %v37
  %v119 = vunpack.c.l.b16 %v38
  %v120 = vunpack.c.l.b16 %v39
  %v121 = vunpack.c.l.b16 %v40
  %v122 = vunpack.c.l.b16 %v41
  %v123 = vunpack.c.l.b16 %v42
  %v124 = vunpack.c.l.b16 %v43
  %v125 = vunpack.c.l.b16 %v44
  %v126 = vunpack.c.l.b16 %v45
  %v127 = vunpack.c.l.b16 %v46
  %v128 = vunpack.c.l.b16 %v47
  %v129 = vunpack.c.l.b16 %v48
  %v130 = vpack.c.b16 %v99, %v98
  %v131 = vpack.c.b16 %v101, %v100
  %v132 = vpack.c.b16 %v103, %v102
  %v133 = vpack.c.b16 %v105, %v104
  %v134 = vpack.c.b16 %v107, %v106
  %v135 = vpack.c.b16 %v109, %v108
  %v136 = vpack.c.b16 %v111, %v110
  %v137 = vpack.c.b16 %v113, %v112
  %v138 = vpack.c.b16 %v115, %v114
  %v139 = vpack.c.b16 %v117, %v116
  %v140 = vpack.c.b16 %v119, %v118
  %v141 = vpack.c.b16 %v121, %v120
  %v142 = vpack.c.b16 %v123, %v122
  %v143 = vpack.c.b16 %v125, %v124
  %v144 = vpack.c.b16 %v127, %v126
  %v145 = vpack.c.b16 %v129, %v128
  %162 = vmatprep.subr.bf16.mxu0 0
  %163 = vmatpush1.bf16.msra.mxu0 %v130
  %164 = vmatprep.subr.bf16.mxu0 0
  %165 = vmatpush1.bf16.msra.mxu0 %v131
  %166 = vmatprep.subr.bf16.mxu0 0
  %167 = vmatpush1.bf16.msra.mxu0 %v132
  %168 = vmatprep.subr.bf16.mxu0 0
  %169 = vmatpush1.bf16.msra.mxu0 %v133
  %170 = vmatprep.subr.bf16.mxu0 0
  %171 = vmatpush1.bf16.msra.mxu0 %v134
  %172 = vmatprep.subr.bf16.mxu0 0
  %173 = vmatpush1.bf16.msra.mxu0 %v135
  %174 = vmatprep.subr.bf16.mxu0 0
  %175 = vmatpush1.bf16.msra.mxu0 %v136
  %176 = vmatprep.subr.bf16.mxu0 0
  %177 = vmatpush1.bf16.msra.mxu0 %v137
  %178 = vmatprep.subr.bf16.mxu0 0
  %179 = vmatpush1.bf16.msra.mxu0 %v138
  %180 = vmatprep.subr.bf16.mxu0 0
  %181 = vmatpush1.bf16.msra.mxu0 %v139
  %182 = vmatprep.subr.bf16.mxu0 0
  %183 = vmatpush1.bf16.msra.mxu0 %v140
  %184 = vmatprep.subr.bf16.mxu0 0
  %185 = vmatpush1.bf16.msra.mxu0 %v141
  %186 = vmatprep.subr.bf16.mxu0 0
  %187 = vmatpush1.bf16.msra.mxu0 %v142
  %188 = vmatprep.subr.bf16.mxu0 0
  %189 = vmatpush1.bf16.msra.mxu0 %v143
  %190 = vmatprep.subr.bf16.mxu0 0
  %191 = vmatpush1.bf16.msra.mxu0 %v144
  %192 = vmatprep.subr.bf16.mxu0 0
  %193 = vmatpush1.bf16.msra.mxu0 %v145
  %194 = vmatprep.mubr.bf16.mxu0 %v63
  %195 = vmatmul.mubr.bf16.gmra.mrb[0].mxu0 %v62
  %v196 = vpop.f32.mrb[0].mxu0
  %v197 = vadd.f32 %v54, %v196
  %v198 = vpop.f32.mrb[0].mxu0
  %v199 = vpop.f32.mrb[0].mxu0
  %v200 = vadd.f32 %v54, %v199
  %v201 = vpop.f32.mrb[0].mxu0
  %202 = vdwg.mxu0
  %v203 = vmax.f32 %v197, 0.0
  %v204 = vmax.f32 %v200, 0.0
  %v205 = vpack.c.bf16 %v204, %v203
  %v207 = vunpack.c.l.b16 %v205
  %v208 = vunpack.c.h.b16 %v205
  %v209 = vpack.c.b16 %v207, %v207
  %v210 = vpack.c.b16 %v208, %v208
  %213 = vst [vmem:[%s3] sm:$0xf] %v209
  %214 = vst [vmem:[%s3 + $0x4] sm:$0xf] %v210
  // Predicated region
  $region14: #{_lambda_.11} parent=0 // pred_check
    _
  $region15: #{_lambda_.11} parent=0 // pred_check_branch
    %216 = sbr.rel (0) target = $region17
  $region16: #{_lambda_.11} parent=0 // pred_region
    _
  $region17: #{_lambda_.11} parent=0 // pred_fallthru
    _
  // Predicated region
  $region18: #{_lambda_.11} parent=0 // pred_check
    _
  $region19: #{_lambda_.11} parent=0 // pred_check_branch
    %218 = sbr.rel (0) target = $region21
  $region20: #{_lambda_.11} parent=0 // pred_region
    _
  $region21: #{_lambda_.11} parent=0 // pred_fallthru
    _

// kernel: _lambda_.12
$region0: #{_lambda_.12}
  #allocation0 [shape = 'u32[]', space=smem, size = 0x4, offset = 0x4, fixed_abs, tag = 'smem constant byte address 0x4 - core index']
  #allocation1 [shape = 'u32[144,128]{1,0:T(1,128)}', space=vmem, size = 0x12000, scoped, tag = 'internal scratch']
  %s0 = inlined_call_operand.vmem [shape: bf16[16,384], index: 0, kind: input, shape index: {}]
  %s1 = inlined_call_operand.vmem [shape: bf16[384,128], index: 1, kind: input, shape index: {}]
  %s2 = inlined_call_operand.vmem [shape: f32[1,128], index: 2, kind: input, shape index: {}]
  %s3 = inlined_call_operand.vmem [shape: bf16[16,128], index: 3, kind: output, shape index: {}]
  %s4 = sld [smem:[#allocation0]]
  $region22: #{_lambda_.12} parent=0
    _
  %s6 = ssub.s32 1, %s4
  %s7 = scalar_select 0, %s6, %s4
  // Predicated region
  $region2: #{_lambda_.12} parent=0 // pred_check
    _
  $region3: #{_lambda_.12} parent=0 // pred_check_branch
    %9 = sbr.rel (0) target = $region5
  $region4: #{_lambda_.12} parent=0 // pred_region
    _
  $region5: #{_lambda_.12} parent=0 // pred_fallthru
    _
  // Predicated region
  $region6: #{_lambda_.12} parent=0 // pred_check
    _
  $region7: #{_lambda_.12} parent=0 // pred_check_branch
    %11 = sbr.rel (0) target = $region9
  $region8: #{_lambda_.12} parent=0 // pred_region
    _
  $region9: #{_lambda_.12} parent=0 // pred_fallthru
    _
  // Predicated region
  $region10: #{_lambda_.12} parent=0 // pred_check
    _
  $region11: #{_lambda_.12} parent=0 // pred_check_branch
    %13 = sbr.rel (0) target = $region13
  $region12: #{_lambda_.12} parent=0 // pred_region
    _
  $region13: #{_lambda_.12} parent=0 // pred_fallthru
    _
  %v15 = vld [vmem:[%s0] sm:$0xff]
  %v16 = vld [vmem:[%s0 + $0x8] sm:$0xf]
  %v17 = vld [vmem:[%s0 + $0xc] sm:$0xff]
  %v18 = vld [vmem:[%s0 + $0x14] sm:$0xf]
  %v19 = vld [vmem:[%s1] sm:$0xf]
  %v20 = vld [vmem:[%s1 + $0x4] sm:$0xf]
  %v21 = vld [vmem:[%s1 + $0x8] sm:$0xf]
  %v22 = vld [vmem:[%s1 + $0xc] sm:$0xf]
  %v23 = vld [vmem:[%s1 + $0x10] sm:$0xf]
  %v24 = vld [vmem:[%s1 + $0x14] sm:$0xf]
  %v25 = vld [vmem:[%s1 + $0x18] sm:$0xf]
  %v26 = vld [vmem:[%s1 + $0x1c] sm:$0xf]
  %v27 = vld [vmem:[%s1 + $0x20] sm:$0xf]
  %v28 = vld [vmem:[%s1 + $0x24] sm:$0xf]
  %v29 = vld [vmem:[%s1 + $0x28] sm:$0xf]
  %v30 = vld [vmem:[%s1 + $0x2c] sm:$0xf]
  %v31 = vld [vmem:[%s1 + $0x30] sm:$0xf]
  %v32 = vld [vmem:[%s1 + $0x34] sm:$0xf]
  %v33 = vld [vmem:[%s1 + $0x38] sm:$0xf]
  %v34 = vld [vmem:[%s1 + $0x3c] sm:$0xf]
  %v35 = vld [vmem:[%s1 + $0x40] sm:$0xf]
  %v36 = vld [vmem:[%s1 + $0x44] sm:$0xf]
  %v37 = vld [vmem:[%s1 + $0x48] sm:$0xf]
  %v38 = vld [vmem:[%s1 + $0x4c] sm:$0xf]
  %v39 = vld [vmem:[%s1 + $0x50] sm:$0xf]
  %v40 = vld [vmem:[%s1 + $0x54] sm:$0xf]
  %v41 = vld [vmem:[%s1 + $0x58] sm:$0xf]
  %v42 = vld [vmem:[%s1 + $0x5c] sm:$0xf]
  %v43 = vld [vmem:[%s1 + $0x60] sm:$0xf]
  %v44 = vld [vmem:[%s1 + $0x64] sm:$0xf]
  %v45 = vld [vmem:[%s1 + $0x68] sm:$0xf]
  %v46 = vld [vmem:[%s1 + $0x6c] sm:$0xf]
  %v47 = vld [vmem:[%s1 + $0x70] sm:$0xf]
  %v48 = vld [vmem:[%s1 + $0x74] sm:$0xf]
  %v49 = vld [vmem:[%s1 + $0x78] sm:$0xf]
  %v50 = vld [vmem:[%s1 + $0x7c] sm:$0xf]
  %v51 = vld [vmem:[%s1 + $0x80] sm:$0xf]
  %v52 = vld [vmem:[%s1 + $0x84] sm:$0xf]
  %v53 = vld [vmem:[%s1 + $0x88] sm:$0xf]
  %v54 = vld [vmem:[%s1 + $0x8c] sm:$0xf]
  %v55 = vld [vmem:[%s1 + $0x90] sm:$0xf]
  %v56 = vld [vmem:[%s1 + $0x94] sm:$0xf]
  %v57 = vld [vmem:[%s1 + $0x98] sm:$0xf]
  %v58 = vld [vmem:[%s1 + $0x9c] sm:$0xf]
  %v59 = vld [vmem:[%s1 + $0xa0] sm:$0xf]
  %v60 = vld [vmem:[%s1 + $0xa4] sm:$0xf]
  %v61 = vld [vmem:[%s1 + $0xa8] sm:$0xf]
  %v62 = vld [vmem:[%s1 + $0xac] sm:$0xf]
  %v63 = vld [vmem:[%s1 + $0xb0] sm:$0xf]
  %v64 = vld [vmem:[%s1 + $0xb4] sm:$0xf]
  %v65 = vld [vmem:[%s1 + $0xb8] sm:$0xf]
  %v66 = vld [vmem:[%s1 + $0xbc] sm:$0xf]
  %v67 = vld [vmem:[%s2] sm:$0x1]
  %v69 = vlaneseq
  %v70 = vshrl.u32 %v69, 7
  %v71 = vsub.s32 0, %v70
  %v72 = vrot.slane %v67, %v71
  %v78 = vunpack.c.l.b16 %v15
  %v79 = vunpack.c.h.b16 %v15
  %v80 = vunpack.c.l.b16 %v16
  %v81 = vunpack.c.l.b16 %v17
  %v82 = vunpack.c.h.b16 %v17
  %v83 = vunpack.c.l.b16 %v18
  %v84 = vpack.c.b16 %v81, %v78
  %v85 = vpack.c.b16 %v82, %v79
  %v86 = vpack.c.b16 %v83, %v80
  %v138 = vunpack.c.l.b16 %v19
  %v139 = vunpack.c.l.b16 %v20
  %v140 = vunpack.c.l.b16 %v21
  %v141 = vunpack.c.l.b16 %v22
  %v142 = vunpack.c.l.b16 %v23
  %v143 = vunpack.c.l.b16 %v24
  %v144 = vunpack.c.l.b16 %v25
  %v145 = vunpack.c.l.b16 %v26
  %v146 = vunpack.c.l.b16 %v27
  %v147 = vunpack.c.l.b16 %v28
  %v148 = vunpack.c.l.b16 %v29
  %v149 = vunpack.c.l.b16 %v30
  %v150 = vunpack.c.l.b16 %v31
  %v151 = vunpack.c.l.b16 %v32
  %v152 = vunpack.c.l.b16 %v33
  %v153 = vunpack.c.l.b16 %v34
  %v154 = vunpack.c.l.b16 %v35
  %v155 = vunpack.c.l.b16 %v36
  %v156 = vunpack.c.l.b16 %v37
  %v157 = vunpack.c.l.b16 %v38
  %v158 = vunpack.c.l.b16 %v39
  %v159 = vunpack.c.l.b16 %v40
  %v160 = vunpack.c.l.b16 %v41
  %v161 = vunpack.c.l.b16 %v42
  %v162 = vunpack.c.l.b16 %v43
  %v163 = vunpack.c.l.b16 %v44
  %v164 = vunpack.c.l.b16 %v45
  %v165 = vunpack.c.l.b16 %v46
  %v166 = vunpack.c.l.b16 %v47
  %v167 = vunpack.c.l.b16 %v48
  %v168 = vunpack.c.l.b16 %v49
  %v169 = vunpack.c.l.b16 %v50
  %v170 = vunpack.c.l.b16 %v51
  %v171 = vunpack.c.l.b16 %v52
  %v172 = vunpack.c.l.b16 %v53
  %v173 = vunpack.c.l.b16 %v54
  %v174 = vunpack.c.l.b16 %v55
  %v175 = vunpack.c.l.b16 %v56
  %v176 = vunpack.c.l.b16 %v57
  %v177 = vunpack.c.l.b16 %v58
  %v178 = vunpack.c.l.b16 %v59
  %v179 = vunpack.c.l.b16 %v60
  %v180 = vunpack.c.l.b16 %v61
  %v181 = vunpack.c.l.b16 %v62
  %v182 = vunpack.c.l.b16 %v63
  %v183 = vunpack.c.l.b16 %v64
  %v184 = vunpack.c.l.b16 %v65
  %v185 = vunpack.c.l.b16 %v66
  %v186 = vpack.c.b16 %v139, %v138
  %v187 = vpack.c.b16 %v141, %v140
  %v188 = vpack.c.b16 %v143, %v142
  %v189 = vpack.c.b16 %v145, %v144
  %v190 = vpack.c.b16 %v147, %v146
  %v191 = vpack.c.b16 %v149, %v148
  %v192 = vpack.c.b16 %v151, %v150
  %v193 = vpack.c.b16 %v153, %v152
  %v194 = vpack.c.b16 %v155, %v154
  %v195 = vpack.c.b16 %v157, %v156
  %v196 = vpack.c.b16 %v159, %v158
  %v197 = vpack.c.b16 %v161, %v160
  %v198 = vpack.c.b16 %v163, %v162
  %v199 = vpack.c.b16 %v165, %v164
  %v200 = vpack.c.b16 %v167, %v166
  %v201 = vpack.c.b16 %v169, %v168
  %v202 = vpack.c.b16 %v171, %v170
  %v203 = vpack.c.b16 %v173, %v172
  %v204 = vpack.c.b16 %v175, %v174
  %v205 = vpack.c.b16 %v177, %v176
  %v206 = vpack.c.b16 %v179, %v178
  %v207 = vpack.c.b16 %v181, %v180
  %v208 = vpack.c.b16 %v183, %v182
  %v209 = vpack.c.b16 %v185, %v184
  %234 = vmatprep.subr.bf16.mxu0 0
  %235 = vmatpush1.bf16.msra.mxu0 %v186
  %236 = vmatprep.subr.bf16.mxu0 0
  %237 = vmatpush1.bf16.msra.mxu0 %v187
  %238 = vmatprep.subr.bf16.mxu0 0
  %239 = vmatpush1.bf16.msra.mxu0 %v188
  %240 = vmatprep.subr.bf16.mxu0 0
  %241 = vmatpush1.bf16.msra.mxu0 %v189
  %242 = vmatprep.subr.bf16.mxu0 0
  %243 = vmatpush1.bf16.msra.mxu0 %v190
  %244 = vmatprep.subr.bf16.mxu0 0
  %245 = vmatpush1.bf16.msra.mxu0 %v191
  %246 = vmatprep.subr.bf16.mxu0 0
  %247 = vmatpush1.bf16.msra.mxu0 %v192
  %248 = vmatprep.subr.bf16.mxu0 0
  %249 = vmatpush1.bf16.msra.mxu0 %v193
  %250 = vmatprep.subr.bf16.mxu0 0
  %251 = vmatpush1.bf16.msra.mxu0 %v194
  %252 = vmatprep.subr.bf16.mxu0 0
  %253 = vmatpush1.bf16.msra.mxu0 %v195
  %254 = vmatprep.subr.bf16.mxu0 0
  %255 = vmatpush1.bf16.msra.mxu0 %v196
  %256 = vmatprep.subr.bf16.mxu0 0
  %257 = vmatpush1.bf16.msra.mxu0 %v197
  %258 = vmatprep.subr.bf16.mxu0 0
  %259 = vmatpush1.bf16.msra.mxu0 %v198
  %260 = vmatprep.subr.bf16.mxu0 0
  %261 = vmatpush1.bf16.msra.mxu0 %v199
  %262 = vmatprep.subr.bf16.mxu0 0
  %263 = vmatpush1.bf16.msra.mxu0 %v200
  %264 = vmatprep.subr.bf16.mxu0 0
  %265 = vmatpush1.bf16.msra.mxu0 %v201
  %266 = vmatprep.mubr.bf16.mxu0 %v85
  %267 = vmatmul.mubr.bf16.gmra.mrb[0].mxu0 %v84
  %v268 = vpop.f32.mrb[0].mxu0
  %v269 = vadd.f32 %v72, %v268
  %v270 = vpop.f32.mrb[0].mxu0
  %v271 = vpop.f32.mrb[0].mxu0
  %v272 = vadd.f32 %v72, %v271
  %v273 = vpop.f32.mrb[0].mxu0
  %274 = vdwg.mxu0
  %275 = vmatprep.subr.bf16.mxu0 0
  %276 = vmatpush1.bf16.msra.mxu0 %v202
  %277 = vmatprep.subr.bf16.mxu0 0
  %278 = vmatpush1.bf16.msra.mxu0 %v203
  %279 = vmatprep.subr.bf16.mxu0 0
  %280 = vmatpush1.bf16.msra.mxu0 %v204
  %281 = vmatprep.subr.bf16.mxu0 0
  %282 = vmatpush1.bf16.msra.mxu0 %v205
  %283 = vmatprep.subr.bf16.mxu0 0
  %284 = vmatpush1.bf16.msra.mxu0 %v206
  %285 = vmatprep.subr.bf16.mxu0 0
  %286 = vmatpush1.bf16.msra.mxu0 %v207
  %287 = vmatprep.subr.bf16.mxu0 0
  %288 = vmatpush1.bf16.msra.mxu0 %v208
  %289 = vmatprep.subr.bf16.mxu0 0
  %290 = vmatpush1.bf16.msra.mxu0 %v209
  %291 = vmatprep.subr.bf16.mxu0 0
  %292 = vmatpush1.bf16.msra.mxu0 0
  %293 = vmatprep.subr.bf16.mxu0 0
  %294 = vmatpush1.bf16.msra.mxu0 0
  %295 = vmatprep.subr.bf16.mxu0 0
  %296 = vmatpush1.bf16.msra.mxu0 0
  %297 = vmatprep.subr.bf16.mxu0 0
  %298 = vmatpush1.bf16.msra.mxu0 0
  %299 = vmatprep.subr.bf16.mxu0 0
  %300 = vmatpush1.bf16.msra.mxu0 0
  %301 = vmatprep.subr.bf16.mxu0 0
  %302 = vmatpush1.bf16.msra.mxu0 0
  %303 = vmatprep.subr.bf16.mxu0 0
  %304 = vmatpush1.bf16.msra.mxu0 0
  %305 = vmatprep.subr.bf16.mxu0 0
  %306 = vmatpush1.bf16.msra.mxu0 0
  %307 = vmatprep.mubr.bf16.mxu0 0
  %308 = vmatmul.mubr.bf16.gmra.mrb[0].mxu0 %v86
  %v309 = vpop.f32.mrb[0].mxu0
  %v310 = vadd.f32 %v269, %v309
  %v311 = vpop.f32.mrb[0].mxu0
  %v312 = vpop.f32.mrb[0].mxu0
  %v313 = vadd.f32 %v272, %v312
  %v314 = vpop.f32.mrb[0].mxu0
  %315 = vdwg.mxu0
  %v316 = vmax.f32 %v310, 0.0
  %v317 = vmax.f32 %v313, 0.0
  %v318 = vpack.c.bf16 %v317, %v316
  %v320 = vunpack.c.l.b16 %v318
  %v321 = vunpack.c.h.b16 %v318
  %v322 = vpack.c.b16 %v320, %v320
  %v323 = vpack.c.b16 %v321, %v321
  %326 = vst [vmem:[%s3] sm:$0xf] %v322
  %327 = vst [vmem:[%s3 + $0x4] sm:$0xf] %v323
  // Predicated region
  $region14: #{_lambda_.12} parent=0 // pred_check
    _
  $region15: #{_lambda_.12} parent=0 // pred_check_branch
    %329 = sbr.rel (0) target = $region17
  $region16: #{_lambda_.12} parent=0 // pred_region
    _
  $region17: #{_lambda_.12} parent=0 // pred_fallthru
    _
  // Predicated region
  $region18: #{_lambda_.12} parent=0 // pred_check
    _
  $region19: #{_lambda_.12} parent=0 // pred_check_branch
    %331 = sbr.rel (0) target = $region21
  $region20: #{_lambda_.12} parent=0 // pred_region
    _
  $region21: #{_lambda_.12} parent=0 // pred_fallthru
    _

// kernel: _lambda_.14
$region0: #{_lambda_.14}
  #allocation0 [shape = 'u32[]', space=smem, size = 0x4, offset = 0x4, fixed_abs, tag = 'smem constant byte address 0x4 - core index']
  #allocation1 [shape = 'u32[144,128]{1,0:T(1,128)}', space=vmem, size = 0x12000, scoped, tag = 'internal scratch']
  %s0 = inlined_call_operand.vmem [shape: bf16[32,512], index: 0, kind: input, shape index: {}]
  %s1 = inlined_call_operand.vmem [shape: bf16[512,128], index: 1, kind: input, shape index: {}]
  %s2 = inlined_call_operand.vmem [shape: f32[1,128], index: 2, kind: input, shape index: {}]
  %s3 = inlined_call_operand.vmem [shape: bf16[32,128], index: 3, kind: output, shape index: {}]
  %s4 = sld [smem:[#allocation0]]
  $region45: #{_lambda_.14} parent=0
    _
  %s6 = ssub.s32 1, %s4
  %s7 = scalar_select 0, %s6, %s4
  loop: start=0, step=1, limit=4
  $region2: #{_lambda_.14} parent=0 // loop_pre_header
    _
  $region3: #{_lambda_.14} parent=0 // loop_header
    %s9 = sphi 0, %s13
    %p10 = scmp.ge.s32.totalorder %s9, 4
    %s19 = sphi 0, %s21
    %s22 = sphi 0, %s19
    %s23 = sphi 0, %s22
    %s39 = sphi 0, %s23
    %s43 = sphi 0, %s43
    %s45 = sphi 0, %s43
    %s46 = sphi 0, %s45
    %s60 = sphi 0, %s46
    %s64 = sphi 0, %s64
    %s66 = sphi 0, %s64
    %s67 = sphi 0, %s66
    %s81 = sphi 0, %s67
    %s87 = sphi 0, %s89
    %s90 = sphi 0, %s87
    %s91 = sphi 0, %s90
    %s107 = sphi 0, %s91
  $region4: #{_lambda_.14} parent=0 // loop_header_branch
    %12 = sbr.rel (%p10) target = $region8
  $region5: #{_lambda_.14} parent=0 // loop_body
    %s14 = ssub.s32 %s9, 1
    %s15 = ssub.s32 %s9, 2
    %s16 = sadd.s32 %s9, 1
    %s17 = ssub.s32 %s9, %s16
    %p18 = scmp.eq.s32.totalorder %s17, 0
    %s20 = sadd.s32 %s19, 1
    %s21 = scalar_select %p18, %s19, %s20
    %p24 = pneg %p18
    %p25 = scmp.eq.s32.totalorder %s9, 1
    %p26 = por %p24, %p25
    %p27 = scmp.ne.s32.totalorder %s19, %s22
    %p28 = scmp.eq.s32.totalorder %s9, 0
    %p29 = por %p27, %p28
    %p30 = scmp.ne.s32.totalorder %s19, %s22
    %p31 = scmp.eq.s32.totalorder %s14, 1
    %p32 = por %p30, %p31
    %p33 = scmp.ne.s32.totalorder %s22, %s23
    %p34 = scmp.eq.s32.totalorder %s14, 0
    %p35 = por %p33, %p34
    %p36 = scmp.ne.s32.totalorder %s22, %s23
    %p37 = scmp.eq.s32.totalorder %s15, 1
    %p38 = por %p36, %p37
    %p40 = scmp.ne.s32.totalorder %s23, %s39
    %p41 = scmp.eq.s32.totalorder %s15, 0
    %p42 = por %p40, %p41
    %s44 = sadd.s32 %s43, 1
    %p47 = scmp.eq.s32.totalorder %s9, 1
    %p48 = scmp.ne.s32.totalorder %s43, %s45
    %p49 = scmp.eq.s32.totalorder %s9, 0
    %p50 = por %p48, %p49
    %p51 = scmp.ne.s32.totalorder %s43, %s45
    %p52 = scmp.eq.s32.totalorder %s14, 1
    %p53 = por %p51, %p52
    %p54 = scmp.ne.s32.totalorder %s45, %s46
    %p55 = scmp.eq.s32.totalorder %s14, 0
    %p56 = por %p54, %p55
    %p57 = scmp.ne.s32.totalorder %s45, %s46
    %p58 = scmp.eq.s32.totalorder %s15, 1
    %p59 = por %p57, %p58
    %p61 = scmp.ne.s32.totalorder %s46, %s60
    %p62 = scmp.eq.s32.totalorder %s15, 0
    %p63 = por %p61, %p62
    %s65 = sadd.s32 %s64, 1
    %p68 = scmp.eq.s32.totalorder %s9, 1
    %p69 = scmp.ne.s32.totalorder %s64, %s66
    %p70 = scmp.eq.s32.totalorder %s9, 0
    %p71 = por %p69, %p70
    %p72 = scmp.ne.s32.totalorder %s64, %s66
    %p73 = scmp.eq.s32.totalorder %s14, 1
    %p74 = por %p72, %p73
    %p75 = scmp.ne.s32.totalorder %s66, %s67
    %p76 = scmp.eq.s32.totalorder %s14, 0
    %p77 = por %p75, %p76
    %p78 = scmp.ne.s32.totalorder %s66, %s67
    %p79 = scmp.eq.s32.totalorder %s15, 1
    %p80 = por %p78, %p79
    %p82 = scmp.ne.s32.totalorder %s67, %s81
    %p83 = scmp.eq.s32.totalorder %s15, 0
    %p84 = por %p82, %p83
    %s85 = ssub.s32 %s9, %s16
    %p86 = scmp.eq.s32.totalorder %s85, 0
    %s88 = sadd.s32 %s87, 1
    %s89 = scalar_select %p86, %s87, %s88
    %p92 = pneg %p86
    %p93 = scmp.eq.s32.totalorder %s9, 1
    %p94 = por %p92, %p93
    %p95 = scmp.ne.s32.totalorder %s87, %s90
    %p96 = scmp.eq.s32.totalorder %s9, 0
    %p97 = por %p95, %p96
    %p98 = scmp.ne.s32.totalorder %s87, %s90
    %p99 = scmp.eq.s32.totalorder %s14, 1
    %p100 = por %p98, %p99
    %p101 = scmp.ne.s32.totalorder %s90, %s91
    %p102 = scmp.eq.s32.totalorder %s14, 0
    %p103 = por %p101, %p102
    %p104 = scmp.ne.s32.totalorder %s90, %s91
    %p105 = scmp.eq.s32.totalorder %s15, 1
    %p106 = por %p104, %p105
    %p108 = scmp.ne.s32.totalorder %s91, %s107
    %p109 = scmp.eq.s32.totalorder %s15, 0
    %p110 = por %p108, %p109
    %p111 = scmp.le.s32.totalorder 1, %s9
    %p112 = scmp.lt.s32.totalorder %s9, 3
    %p113 = pnand %p111, %p112
    %p114 = pneg %p113
    // Predicated region
    $region9: #{_lambda_.14} parent=5 // pred_check
      _
    $region10: #{_lambda_.14} parent=5 // pred_check_branch
      %116 = sbr.rel (%p113) target = $region12
    $region11: #{_lambda_.14} parent=5 // pred_region
      %s117 = ssub.s32 %s9, 1
      // Predicated region
      $region13: #{_lambda_.14} parent=11 // pred_check
        %p118 = pneg %p56
      $region14: #{_lambda_.14} parent=11 // pred_check_branch
        %120 = sbr.rel (%p118) target = $region16
      $region15: #{_lambda_.14} parent=11 // pred_region
        _
      $region16: #{_lambda_.14} parent=11 // pred_fallthru
        _
      // Predicated region
      $region17: #{_lambda_.14} parent=11 // pred_check
        %p121 = pneg %p77
      $region18: #{_lambda_.14} parent=11 // pred_check_branch
        %123 = sbr.rel (%p121) target = $region20
      $region19: #{_lambda_.14} parent=11 // pred_region
        _
      $region20: #{_lambda_.14} parent=11 // pred_fallthru
        _
    $region12: #{_lambda_.14} parent=5 // pred_fallthru
      _
    %p124 = scmp.lt.s32.totalorder %s9, 2
    // Predicated region
    $region21: #{_lambda_.14} parent=5 // pred_check
      %p125 = pneg %p124
    $region22: #{_lambda_.14} parent=5 // pred_check_branch
      %127 = sbr.rel (%p125) target = $region24
    $region23: #{_lambda_.14} parent=5 // pred_region
      // Predicated region
      $region25: #{_lambda_.14} parent=23 // pred_check
        %p128 = pneg %p29
      $region26: #{_lambda_.14} parent=23 // pred_check_branch
        %130 = sbr.rel (%p128) target = $region28
      $region27: #{_lambda_.14} parent=23 // pred_region
        %s131 = smul.u32 2, %s9
        %p132 = scmp.lt.s32.totalorder %s131, 3
        %s133 = scalar_select %p132, %s131, 3
        %s134 = smul.addr %s133, 4
        %s135 = smul.addr %s134, 4
        %s136 = scalar_lea.vmem %s0, %s135
        %s137 = smul.u32 2, %s9
      $region28: #{_lambda_.14} parent=23 // pred_fallthru
        _
    $region24: #{_lambda_.14} parent=5 // pred_fallthru
      _
    %p138 = scmp.le.s32.totalorder 1, %s9
    %p139 = scmp.lt.s32.totalorder %s9, 3
    %p140 = pnand %p138, %p139
    %p141 = pneg %p140
    // Predicated region
    $region29: #{_lambda_.14} parent=5 // pred_check
      _
    $region30: #{_lambda_.14} parent=5 // pred_check_branch
      %143 = sbr.rel (%p140) target = $region32
    $region31: #{_lambda_.14} parent=5 // pred_region
      %s144 = ssub.s32 %s9, 1
      %s145 = smul.u32 2, %s14
      %p146 = scmp.lt.s32.totalorder %s145, 3
      %s147 = scalar_select %p146, %s145, 3
      %s148 = smul.addr %s147, 4
      %s149 = smul.addr %s148, 4
      %s150 = scalar_lea.vmem %s0, %s149
      %p151 = pneg %p35
      %p152 = pneg %p32
      %p153 = pneg %p56
      %p154 = pneg %p53
      %p155 = pneg %p77
      %p156 = pneg %p74
      %p157 = pneg %p103
      %p158 = pneg %p100
      %s159 = smul.u32 2, %s14
      %p160 = scmp.lt.s32.totalorder %s159, 3
      %s161 = scalar_select %p160, %s159, 3
      %s162 = smul.addr %s161, 4
      %s163 = scalar_lea.vmem %s3, %s162
      %s164 = smul.u32 2, %s14
      %p165 = scmp.lt.s32.totalorder %s164, 3
      %s166 = scalar_select %p165, %s164, 3
      %s167 = smul.addr %s166, 4
      %s168 = smul.addr %s167, 4
      %s169 = scalar_lea.vmem %s0, %s168
      %s170 = smul.u32 2, %s14
      %s171 = smul.u32 2, %s14
      %p172 = scmp.lt.s32.totalorder %s171, 3
      %s173 = scalar_select %p172, %s171, 3
      %s174 = smul.addr %s173, 4
      %s175 = scalar_lea.vmem %s3, %s174
      %s176 = smul.u32 2, %s14
      %v178 = vld [vmem:[%s169] sm:$0xff]
      %v179 = vld [vmem:[%s169 + $0x8] sm:$0xff]
      %v180 = vld [vmem:[%s169 + $0x10] sm:$0xff]
      %v181 = vld [vmem:[%s169 + $0x18] sm:$0xff]
      %v182 = vld [vmem:[%s1] sm:$0xf]
      %v183 = vld [vmem:[%s1 + $0x4] sm:$0xf]
      %v184 = vld [vmem:[%s1 + $0x8] sm:$0xf]
      %v185 = vld [vmem:[%s1 + $0xc] sm:$0xf]
      %v186 = vld [vmem:[%s1 + $0x10] sm:$0xf]
      %v187 = vld [vmem:[%s1 + $0x14] sm:$0xf]
      %v188 = vld [vmem:[%s1 + $0x18] sm:$0xf]
      %v189 = vld [vmem:[%s1 + $0x1c] sm:$0xf]
      %v190 = vld [vmem:[%s1 + $0x20] sm:$0xf]
      %v191 = vld [vmem:[%s1 + $0x24] sm:$0xf]
      %v192 = vld [vmem:[%s1 + $0x28] sm:$0xf]
      %v193 = vld [vmem:[%s1 + $0x2c] sm:$0xf]
      %v194 = vld [vmem:[%s1 + $0x30] sm:$0xf]
      %v195 = vld [vmem:[%s1 + $0x34] sm:$0xf]
      %v196 = vld [vmem:[%s1 + $0x38] sm:$0xf]
      %v197 = vld [vmem:[%s1 + $0x3c] sm:$0xf]
      %v198 = vld [vmem:[%s1 + $0x40] sm:$0xf]
      %v199 = vld [vmem:[%s1 + $0x44] sm:$0xf]
      %v200 = vld [vmem:[%s1 + $0x48] sm:$0xf]
      %v201 = vld [vmem:[%s1 + $0x4c] sm:$0xf]
      %v202 = vld [vmem:[%s1 + $0x50] sm:$0xf]
      %v203 = vld [vmem:[%s1 + $0x54] sm:$0xf]
      %v204 = vld [vmem:[%s1 + $0x58] sm:$0xf]
      %v205 = vld [vmem:[%s1 + $0x5c] sm:$0xf]
      %v206 = vld [vmem:[%s1 + $0x60] sm:$0xf]
      %v207 = vld [vmem:[%s1 + $0x64] sm:$0xf]
      %v208 = vld [vmem:[%s1 + $0x68] sm:$0xf]
      %v209 = vld [vmem:[%s1 + $0x6c] sm:$0xf]
      %v210 = vld [vmem:[%s1 + $0x70] sm:$0xf]
      %v211 = vld [vmem:[%s1 + $0x74] sm:$0xf]
      %v212 = vld [vmem:[%s1 + $0x78] sm:$0xf]
      %v213 = vld [vmem:[%s1 + $0x7c] sm:$0xf]
      %v214 = vld [vmem:[%s1 + $0x80] sm:$0xf]
      %v215 = vld [vmem:[%s1 + $0x84] sm:$0xf]
      %v216 = vld [vmem:[%s1 + $0x88] sm:$0xf]
      %v217 = vld [vmem:[%s1 + $0x8c] sm:$0xf]
      %v218 = vld [vmem:[%s1 + $0x90] sm:$0xf]
      %v219 = vld [vmem:[%s1 + $0x94] sm:$0xf]
      %v220 = vld [vmem:[%s1 + $0x98] sm:$0xf]
      %v221 = vld [vmem:[%s1 + $0x9c] sm:$0xf]
      %v222 = vld [vmem:[%s1 + $0xa0] sm:$0xf]
      %v223 = vld [vmem:[%s1 + $0xa4] sm:$0xf]
      %v224 = vld [vmem:[%s1 + $0xa8] sm:$0xf]
      %v225 = vld [vmem:[%s1 + $0xac] sm:$0xf]
      %v226 = vld [vmem:[%s1 + $0xb0] sm:$0xf]
      %v227 = vld [vmem:[%s1 + $0xb4] sm:$0xf]
      %v228 = vld [vmem:[%s1 + $0xb8] sm:$0xf]
      %v229 = vld [vmem:[%s1 + $0xbc] sm:$0xf]
      %v230 = vld [vmem:[%s1 + $0xc0] sm:$0xf]
      %v231 = vld [vmem:[%s1 + $0xc4] sm:$0xf]
      %v232 = vld [vmem:[%s1 + $0xc8] sm:$0xf]
      %v233 = vld [vmem:[%s1 + $0xcc] sm:$0xf]
      %v234 = vld [vmem:[%s1 + $0xd0] sm:$0xf]
      %v235 = vld [vmem:[%s1 + $0xd4] sm:$0xf]
      %v236 = vld [vmem:[%s1 + $0xd8] sm:$0xf]
      %v237 = vld [vmem:[%s1 + $0xdc] sm:$0xf]
      %v238 = vld [vmem:[%s1 + $0xe0] sm:$0xf]
      %v239 = vld [vmem:[%s1 + $0xe4] sm:$0xf]
      %v240 = vld [vmem:[%s1 + $0xe8] sm:$0xf]
      %v241 = vld [vmem:[%s1 + $0xec] sm:$0xf]
      %v242 = vld [vmem:[%s1 + $0xf0] sm:$0xf]
      %v243 = vld [vmem:[%s1 + $0xf4] sm:$0xf]
      %v244 = vld [vmem:[%s1 + $0xf8] sm:$0xf]
      %v245 = vld [vmem:[%s1 + $0xfc] sm:$0xf]
      %v246 = vld [vmem:[%s2] sm:$0x1]
      %v248 = vlaneseq
      %v249 = vshrl.u32 %v248, 7
      %v250 = vsub.s32 0, %v249
      %v251 = vrot.slane %v246, %v250
      %v257 = vunpack.c.l.b16 %v178
      %v258 = vunpack.c.h.b16 %v178
      %v259 = vunpack.c.l.b16 %v179
      %v260 = vunpack.c.h.b16 %v179
      %v261 = vunpack.c.l.b16 %v180
      %v262 = vunpack.c.h.b16 %v180
      %v263 = vunpack.c.l.b16 %v181
      %v264 = vunpack.c.h.b16 %v181
      %v265 = vpack.c.b16 %v261, %v257
      %v266 = vpack.c.b16 %v262, %v258
      %v267 = vpack.c.b16 %v263, %v259
      %v268 = vpack.c.b16 %v264, %v260
      %v337 = vunpack.c.l.b16 %v182
      %v338 = vunpack.c.l.b16 %v183
      %v339 = vunpack.c.l.b16 %v184
      %v340 = vunpack.c.l.b16 %v185
      %v341 = vunpack.c.l.b16 %v186
      %v342 = vunpack.c.l.b16 %v187
      %v343 = vunpack.c.l.b16 %v188
      %v344 = vunpack.c.l.b16 %v189
      %v345 = vunpack.c.l.b16 %v190
      %v346 = vunpack.c.l.b16 %v191
      %v347 = vunpack.c.l.b16 %v192
      %v348 = vunpack.c.l.b16 %v193
      %v349 = vunpack.c.l.b16 %v194
      %v350 = vunpack.c.l.b16 %v195
      %v351 = vunpack.c.l.b16 %v196
      %v352 = vunpack.c.l.b16 %v197
      %v353 = vunpack.c.l.b16 %v198
      %v354 = vunpack.c.l.b16 %v199
      %v355 = vunpack.c.l.b16 %v200
      %v356 = vunpack.c.l.b16 %v201
      %v357 = vunpack.c.l.b16 %v202
      %v358 = vunpack.c.l.b16 %v203
      %v359 = vunpack.c.l.b16 %v204
      %v360 = vunpack.c.l.b16 %v205
      %v361 = vunpack.c.l.b16 %v206
      %v362 = vunpack.c.l.b16 %v207
      %v363 = vunpack.c.l.b16 %v208
      %v364 = vunpack.c.l.b16 %v209
      %v365 = vunpack.c.l.b16 %v210
      %v366 = vunpack.c.l.b16 %v211
      %v367 = vunpack.c.l.b16 %v212
      %v368 = vunpack.c.l.b16 %v213
      %v369 = vunpack.c.l.b16 %v214
      %v370 = vunpack.c.l.b16 %v215
      %v371 = vunpack.c.l.b16 %v216
      %v372 = vunpack.c.l.b16 %v217
      %v373 = vunpack.c.l.b16 %v218
      %v374 = vunpack.c.l.b16 %v219
      %v375 = vunpack.c.l.b16 %v220
      %v376 = vunpack.c.l.b16 %v221
      %v377 = vunpack.c.l.b16 %v222
      %v378 = vunpack.c.l.b16 %v223
      %v379 = vunpack.c.l.b16 %v224
      %v380 = vunpack.c.l.b16 %v225
      %v381 = vunpack.c.l.b16 %v226
      %v382 = vunpack.c.l.b16 %v227
      %v383 = vunpack.c.l.b16 %v228
      %v384 = vunpack.c.l.b16 %v229
      %v385 = vunpack.c.l.b16 %v230
      %v386 = vunpack.c.l.b16 %v231
      %v387 = vunpack.c.l.b16 %v232
      %v388 = vunpack.c.l.b16 %v233
      %v389 = vunpack.c.l.b16 %v234
      %v390 = vunpack.c.l.b16 %v235
      %v391 = vunpack.c.l.b16 %v236
      %v392 = vunpack.c.l.b16 %v237
      %v393 = vunpack.c.l.b16 %v238
      %v394 = vunpack.c.l.b16 %v239
      %v395 = vunpack.c.l.b16 %v240
      %v396 = vunpack.c.l.b16 %v241
      %v397 = vunpack.c.l.b16 %v242
      %v398 = vunpack.c.l.b16 %v243
      %v399 = vunpack.c.l.b16 %v244
      %v400 = vunpack.c.l.b16 %v245
      %v401 = vpack.c.b16 %v338, %v337
      %v402 = vpack.c.b16 %v340, %v339
      %v403 = vpack.c.b16 %v342, %v341
      %v404 = vpack.c.b16 %v344, %v343
      %v405 = vpack.c.b16 %v346, %v345
      %v406 = vpack.c.b16 %v348, %v347
      %v407 = vpack.c.b16 %v350, %v349
      %v408 = vpack.c.b16 %v352, %v351
      %v409 = vpack.c.b16 %v354, %v353
      %v410 = vpack.c.b16 %v356, %v355
      %v411 = vpack.c.b16 %v358, %v357
      %v412 = vpack.c.b16 %v360, %v359
      %v413 = vpack.c.b16 %v362, %v361
      %v414 = vpack.c.b16 %v364, %v363
      %v415 = vpack.c.b16 %v366, %v365
      %v416 = vpack.c.b16 %v368, %v367
      %v417 = vpack.c.b16 %v370, %v369
      %v418 = vpack.c.b16 %v372, %v371
      %v419 = vpack.c.b16 %v374, %v373
      %v420 = vpack.c.b16 %v376, %v375
      %v421 = vpack.c.b16 %v378, %v377
      %v422 = vpack.c.b16 %v380, %v379
      %v423 = vpack.c.b16 %v382, %v381
      %v424 = vpack.c.b16 %v384, %v383
      %v425 = vpack.c.b16 %v386, %v385
      %v426 = vpack.c.b16 %v388, %v387
      %v427 = vpack.c.b16 %v390, %v389
      %v428 = vpack.c.b16 %v392, %v391
      %v429 = vpack.c.b16 %v394, %v393
      %v430 = vpack.c.b16 %v396, %v395
      %v431 = vpack.c.b16 %v398, %v397
      %v432 = vpack.c.b16 %v400, %v399
      %465 = vmatprep.subr.bf16.mxu0 0
      %466 = vmatpush1.bf16.msra.mxu0 %v401
      %467 = vmatprep.subr.bf16.mxu0 0
      %468 = vmatpush1.bf16.msra.mxu0 %v402
      %469 = vmatprep.subr.bf16.mxu0 0
      %470 = vmatpush1.bf16.msra.mxu0 %v403
      %471 = vmatprep.subr.bf16.mxu0 0
      %472 = vmatpush1.bf16.msra.mxu0 %v404
      %473 = vmatprep.subr.bf16.mxu0 0
      %474 = vmatpush1.bf16.msra.mxu0 %v405
      %475 = vmatprep.subr.bf16.mxu0 0
      %476 = vmatpush1.bf16.msra.mxu0 %v406
      %477 = vmatprep.subr.bf16.mxu0 0
      %478 = vmatpush1.bf16.msra.mxu0 %v407
      %479 = vmatprep.subr.bf16.mxu0 0
      %480 = vmatpush1.bf16.msra.mxu0 %v408
      %481 = vmatprep.subr.bf16.mxu0 0
      %482 = vmatpush1.bf16.msra.mxu0 %v409
      %483 = vmatprep.subr.bf16.mxu0 0
      %484 = vmatpush1.bf16.msra.mxu0 %v410
      %485 = vmatprep.subr.bf16.mxu0 0
      %486 = vmatpush1.bf16.msra.mxu0 %v411
      %487 = vmatprep.subr.bf16.mxu0 0
      %488 = vmatpush1.bf16.msra.mxu0 %v412
      %489 = vmatprep.subr.bf16.mxu0 0
      %490 = vmatpush1.bf16.msra.mxu0 %v413
      %491 = vmatprep.subr.bf16.mxu0 0
      %492 = vmatpush1.bf16.msra.mxu0 %v414
      %493 = vmatprep.subr.bf16.mxu0 0
      %494 = vmatpush1.bf16.msra.mxu0 %v415
      %495 = vmatprep.subr.bf16.mxu0 0
      %496 = vmatpush1.bf16.msra.mxu0 %v416
      %497 = vmatprep.mubr.bf16.mxu0 %v266
      %498 = vmatmul.mubr.bf16.gmra.mrb[0].mxu0 %v265
      %v499 = vpop.f32.mrb[0].mxu0
      %v500 = vadd.f32 %v251, %v499
      %v501 = vpop.f32.mrb[0].mxu0
      %v502 = vpop.f32.mrb[0].mxu0
      %v503 = vadd.f32 %v251, %v502
      %v504 = vpop.f32.mrb[0].mxu0
      %505 = vdwg.mxu0
      %506 = vmatprep.subr.bf16.mxu0 0
      %507 = vmatpush1.bf16.msra.mxu0 %v417
      %508 = vmatprep.subr.bf16.mxu0 0
      %509 = vmatpush1.bf16.msra.mxu0 %v418
      %510 = vmatprep.subr.bf16.mxu0 0
      %511 = vmatpush1.bf16.msra.mxu0 %v419
      %512 = vmatprep.subr.bf16.mxu0 0
      %513 = vmatpush1.bf16.msra.mxu0 %v420
      %514 = vmatprep.subr.bf16.mxu0 0
      %515 = vmatpush1.bf16.msra.mxu0 %v421
      %516 = vmatprep.subr.bf16.mxu0 0
      %517 = vmatpush1.bf16.msra.mxu0 %v422
      %518 = vmatprep.subr.bf16.mxu0 0
      %519 = vmatpush1.bf16.msra.mxu0 %v423
      %520 = vmatprep.subr.bf16.mxu0 0
      %521 = vmatpush1.bf16.msra.mxu0 %v424
      %522 = vmatprep.subr.bf16.mxu0 0
      %523 = vmatpush1.bf16.msra.mxu0 %v425
      %524 = vmatprep.subr.bf16.mxu0 0
      %525 = vmatpush1.bf16.msra.mxu0 %v426
      %526 = vmatprep.subr.bf16.mxu0 0
      %527 = vmatpush1.bf16.msra.mxu0 %v427
      %528 = vmatprep.subr.bf16.mxu0 0
      %529 = vmatpush1.bf16.msra.mxu0 %v428
      %530 = vmatprep.subr.bf16.mxu0 0
      %531 = vmatpush1.bf16.msra.mxu0 %v429
      %532 = vmatprep.subr.bf16.mxu0 0
      %533 = vmatpush1.bf16.msra.mxu0 %v430
      %534 = vmatprep.subr.bf16.mxu0 0
      %535 = vmatpush1.bf16.msra.mxu0 %v431
      %536 = vmatprep.subr.bf16.mxu0 0
      %537 = vmatpush1.bf16.msra.mxu0 %v432
      %538 = vmatprep.mubr.bf16.mxu0 %v268
      %539 = vmatmul.mubr.bf16.gmra.mrb[0].mxu0 %v267
      %v540 = vpop.f32.mrb[0].mxu0
      %v541 = vadd.f32 %v500, %v540
      %v542 = vpop.f32.mrb[0].mxu0
      %v543 = vpop.f32.mrb[0].mxu0
      %v544 = vadd.f32 %v503, %v543
      %v545 = vpop.f32.mrb[0].mxu0
      %546 = vdwg.mxu0
      %v547 = vmax.f32 %v541, 0.0
      %v548 = vmax.f32 %v544, 0.0
      %v549 = vpack.c.bf16 %v548, %v547
      %v551 = vunpack.c.l.b16 %v549
      %v552 = vunpack.c.h.b16 %v549
      %v553 = vpack.c.b16 %v551, %v551
      %v554 = vpack.c.b16 %v552, %v552
      %557 = vst [vmem:[%s175] sm:$0xf] %v553
      %558 = vst [vmem:[%s175 + $0x4] sm:$0xf] %v554
      %s559 = smul.u32 2, %s14
      %p560 = scmp.lt.s32.totalorder %s559, 3
      %s561 = scalar_select %p560, %s559, 3
      %s562 = smul.addr %s561, 4
      %s563 = scalar_lea.vmem %s3, %s562
      // Predicated region
      $region33: #{_lambda_.14} parent=31 // pred_check
        %p564 = pneg %p100
      $region34: #{_lambda_.14} parent=31 // pred_check_branch
        %566 = sbr.rel (%p564) target = $region36
      $region35: #{_lambda_.14} parent=31 // pred_region
        %s567 = smul.u32 2, %s14
      $region36: #{_lambda_.14} parent=31 // pred_fallthru
        _
    $region32: #{_lambda_.14} parent=5 // pred_fallthru
      _
    %p568 = scmp.le.s32.totalorder 2, %s9
    // Predicated region
    $region37: #{_lambda_.14} parent=5 // pred_check
      %p569 = pneg %p568
    $region38: #{_lambda_.14} parent=5 // pred_check_branch
      %571 = sbr.rel (%p569) target = $region40
    $region39: #{_lambda_.14} parent=5 // pred_region
      %s572 = ssub.s32 %s9, 2
      // Predicated region
      $region41: #{_lambda_.14} parent=39 // pred_check
        %p573 = pneg %p106
      $region42: #{_lambda_.14} parent=39 // pred_check_branch
        %575 = sbr.rel (%p573) target = $region44
      $region43: #{_lambda_.14} parent=39 // pred_region
        %s576 = smul.u32 2, %s15
        %p577 = scmp.lt.s32.totalorder %s576, 3
        %s578 = scalar_select %p577, %s576, 3
        %s579 = smul.addr %s578, 4
        %s580 = scalar_lea.vmem %s3, %s579
      $region44: #{_lambda_.14} parent=39 // pred_fallthru
        _
    $region40: #{_lambda_.14} parent=5 // pred_fallthru
      _
  $region6: #{_lambda_.14} parent=0 // loop_footer
    %s13 = sadd.s32 1, %s9
  $region7: #{_lambda_.14} parent=0 // loop_footer_branch
    %8 = sbr.rel target = $region3
  $region8: #{_lambda_.14} parent=0 // loop_exit
    _

// kernel: _lambda_.16
$region0: #{_lambda_.16}
  #allocation0 [shape = 'u32[]', space=smem, size = 0x4, offset = 0x4, fixed_abs, tag = 'smem constant byte address 0x4 - core index']
  #allocation1 [shape = 'u32[144,128]{1,0:T(1,128)}', space=vmem, size = 0x12000, scoped, tag = 'internal scratch']
  %s0 = inlined_call_operand.vmem [shape: bf16[128,256], index: 0, kind: input, shape index: {}]
  %s1 = inlined_call_operand.vmem [shape: bf16[256,128], index: 1, kind: input, shape index: {}]
  %s2 = inlined_call_operand.vmem [shape: f32[1,128], index: 2, kind: input, shape index: {}]
  %s3 = inlined_call_operand.vmem [shape: bf16[128,128], index: 3, kind: output, shape index: {}]
  %s4 = sld [smem:[#allocation0]]
  $region45: #{_lambda_.16} parent=0
    _
  %s6 = ssub.s32 1, %s4
  %s7 = scalar_select 0, %s6, %s4
  loop: start=0, step=1, limit=4
  $region2: #{_lambda_.16} parent=0 // loop_pre_header
    _
  $region3: #{_lambda_.16} parent=0 // loop_header
    %s9 = sphi 0, %s13
    %p10 = scmp.ge.s32.totalorder %s9, 4
    %s19 = sphi 0, %s21
    %s22 = sphi 0, %s19
    %s23 = sphi 0, %s22
    %s39 = sphi 0, %s23
    %s43 = sphi 0, %s43
    %s45 = sphi 0, %s43
    %s46 = sphi 0, %s45
    %s60 = sphi 0, %s46
    %s64 = sphi 0, %s64
    %s66 = sphi 0, %s64
    %s67 = sphi 0, %s66
    %s81 = sphi 0, %s67
    %s87 = sphi 0, %s89
    %s90 = sphi 0, %s87
    %s91 = sphi 0, %s90
    %s107 = sphi 0, %s91
  $region4: #{_lambda_.16} parent=0 // loop_header_branch
    %12 = sbr.rel (%p10) target = $region8
  $region5: #{_lambda_.16} parent=0 // loop_body
    %s14 = ssub.s32 %s9, 1
    %s15 = ssub.s32 %s9, 2
    %s16 = sadd.s32 %s9, 1
    %s17 = ssub.s32 %s9, %s16
    %p18 = scmp.eq.s32.totalorder %s17, 0
    %s20 = sadd.s32 %s19, 1
    %s21 = scalar_select %p18, %s19, %s20
    %p24 = pneg %p18
    %p25 = scmp.eq.s32.totalorder %s9, 1
    %p26 = por %p24, %p25
    %p27 = scmp.ne.s32.totalorder %s19, %s22
    %p28 = scmp.eq.s32.totalorder %s9, 0
    %p29 = por %p27, %p28
    %p30 = scmp.ne.s32.totalorder %s19, %s22
    %p31 = scmp.eq.s32.totalorder %s14, 1
    %p32 = por %p30, %p31
    %p33 = scmp.ne.s32.totalorder %s22, %s23
    %p34 = scmp.eq.s32.totalorder %s14, 0
    %p35 = por %p33, %p34
    %p36 = scmp.ne.s32.totalorder %s22, %s23
    %p37 = scmp.eq.s32.totalorder %s15, 1
    %p38 = por %p36, %p37
    %p40 = scmp.ne.s32.totalorder %s23, %s39
    %p41 = scmp.eq.s32.totalorder %s15, 0
    %p42 = por %p40, %p41
    %s44 = sadd.s32 %s43, 1
    %p47 = scmp.eq.s32.totalorder %s9, 1
    %p48 = scmp.ne.s32.totalorder %s43, %s45
    %p49 = scmp.eq.s32.totalorder %s9, 0
    %p50 = por %p48, %p49
    %p51 = scmp.ne.s32.totalorder %s43, %s45
    %p52 = scmp.eq.s32.totalorder %s14, 1
    %p53 = por %p51, %p52
    %p54 = scmp.ne.s32.totalorder %s45, %s46
    %p55 = scmp.eq.s32.totalorder %s14, 0
    %p56 = por %p54, %p55
    %p57 = scmp.ne.s32.totalorder %s45, %s46
    %p58 = scmp.eq.s32.totalorder %s15, 1
    %p59 = por %p57, %p58
    %p61 = scmp.ne.s32.totalorder %s46, %s60
    %p62 = scmp.eq.s32.totalorder %s15, 0
    %p63 = por %p61, %p62
    %s65 = sadd.s32 %s64, 1
    %p68 = scmp.eq.s32.totalorder %s9, 1
    %p69 = scmp.ne.s32.totalorder %s64, %s66
    %p70 = scmp.eq.s32.totalorder %s9, 0
    %p71 = por %p69, %p70
    %p72 = scmp.ne.s32.totalorder %s64, %s66
    %p73 = scmp.eq.s32.totalorder %s14, 1
    %p74 = por %p72, %p73
    %p75 = scmp.ne.s32.totalorder %s66, %s67
    %p76 = scmp.eq.s32.totalorder %s14, 0
    %p77 = por %p75, %p76
    %p78 = scmp.ne.s32.totalorder %s66, %s67
    %p79 = scmp.eq.s32.totalorder %s15, 1
    %p80 = por %p78, %p79
    %p82 = scmp.ne.s32.totalorder %s67, %s81
    %p83 = scmp.eq.s32.totalorder %s15, 0
    %p84 = por %p82, %p83
    %s85 = ssub.s32 %s9, %s16
    %p86 = scmp.eq.s32.totalorder %s85, 0
    %s88 = sadd.s32 %s87, 1
    %s89 = scalar_select %p86, %s87, %s88
    %p92 = pneg %p86
    %p93 = scmp.eq.s32.totalorder %s9, 1
    %p94 = por %p92, %p93
    %p95 = scmp.ne.s32.totalorder %s87, %s90
    %p96 = scmp.eq.s32.totalorder %s9, 0
    %p97 = por %p95, %p96
    %p98 = scmp.ne.s32.totalorder %s87, %s90
    %p99 = scmp.eq.s32.totalorder %s14, 1
    %p100 = por %p98, %p99
    %p101 = scmp.ne.s32.totalorder %s90, %s91
    %p102 = scmp.eq.s32.totalorder %s14, 0
    %p103 = por %p101, %p102
    %p104 = scmp.ne.s32.totalorder %s90, %s91
    %p105 = scmp.eq.s32.totalorder %s15, 1
    %p106 = por %p104, %p105
    %p108 = scmp.ne.s32.totalorder %s91, %s107
    %p109 = scmp.eq.s32.totalorder %s15, 0
    %p110 = por %p108, %p109
    %p111 = scmp.le.s32.totalorder 1, %s9
    %p112 = scmp.lt.s32.totalorder %s9, 3
    %p113 = pnand %p111, %p112
    %p114 = pneg %p113
    // Predicated region
    $region9: #{_lambda_.16} parent=5 // pred_check
      _
    $region10: #{_lambda_.16} parent=5 // pred_check_branch
      %116 = sbr.rel (%p113) target = $region12
    $region11: #{_lambda_.16} parent=5 // pred_region
      %s117 = ssub.s32 %s9, 1
      // Predicated region
      $region13: #{_lambda_.16} parent=11 // pred_check
        %p118 = pneg %p56
      $region14: #{_lambda_.16} parent=11 // pred_check_branch
        %120 = sbr.rel (%p118) target = $region16
      $region15: #{_lambda_.16} parent=11 // pred_region
        _
      $region16: #{_lambda_.16} parent=11 // pred_fallthru
        _
      // Predicated region
      $region17: #{_lambda_.16} parent=11 // pred_check
        %p121 = pneg %p77
      $region18: #{_lambda_.16} parent=11 // pred_check_branch
        %123 = sbr.rel (%p121) target = $region20
      $region19: #{_lambda_.16} parent=11 // pred_region
        _
      $region20: #{_lambda_.16} parent=11 // pred_fallthru
        _
    $region12: #{_lambda_.16} parent=5 // pred_fallthru
      _
    %p124 = scmp.lt.s32.totalorder %s9, 2
    // Predicated region
    $region21: #{_lambda_.16} parent=5 // pred_check
      %p125 = pneg %p124
    $region22: #{_lambda_.16} parent=5 // pred_check_branch
      %127 = sbr.rel (%p125) target = $region24
    $region23: #{_lambda_.16} parent=5 // pred_region
      // Predicated region
      $region25: #{_lambda_.16} parent=23 // pred_check
        %p128 = pneg %p29
      $region26: #{_lambda_.16} parent=23 // pred_check_branch
        %130 = sbr.rel (%p128) target = $region28
      $region27: #{_lambda_.16} parent=23 // pred_region
        %s131 = smul.u32 8, %s9
        %p132 = scmp.lt.s32.totalorder %s131, 15
        %s133 = scalar_select %p132, %s131, 15
        %s134 = smul.addr %s133, 2
        %s135 = smul.addr %s134, 4
        %s136 = scalar_lea.vmem %s0, %s135
        %s137 = smul.u32 8, %s9
      $region28: #{_lambda_.16} parent=23 // pred_fallthru
        _
    $region24: #{_lambda_.16} parent=5 // pred_fallthru
      _
    %p138 = scmp.le.s32.totalorder 1, %s9
    %p139 = scmp.lt.s32.totalorder %s9, 3
    %p140 = pnand %p138, %p139
    %p141 = pneg %p140
    // Predicated region
    $region29: #{_lambda_.16} parent=5 // pred_check
      _
    $region30: #{_lambda_.16} parent=5 // pred_check_branch
      %143 = sbr.rel (%p140) target = $region32
    $region31: #{_lambda_.16} parent=5 // pred_region
      %s144 = ssub.s32 %s9, 1
      %s145 = smul.u32 8, %s14
      %p146 = scmp.lt.s32.totalorder %s145, 15
      %s147 = scalar_select %p146, %s145, 15
      %s148 = smul.addr %s147, 2
      %s149 = smul.addr %s148, 4
      %s150 = scalar_lea.vmem %s0, %s149
      %p151 = pneg %p35
      %p152 = pneg %p32
      %p153 = pneg %p56
      %p154 = pneg %p53
      %p155 = pneg %p77
      %p156 = pneg %p74
      %p157 = pneg %p103
      %p158 = pneg %p100
      %s159 = smul.u32 8, %s14
      %p160 = scmp.lt.s32.totalorder %s159, 15
      %s161 = scalar_select %p160, %s159, 15
      %s162 = smul.addr %s161, 4
      %s163 = scalar_lea.vmem %s3, %s162
      %s164 = smul.u32 8, %s14
      %p165 = scmp.lt.s32.totalorder %s164, 15
      %s166 = scalar_select %p165, %s164, 15
      %s167 = smul.addr %s166, 2
      %s168 = smul.addr %s167, 4
      %s169 = scalar_lea.vmem %s0, %s168
      %s170 = smul.u32 8, %s14
      %s171 = smul.u32 8, %s14
      %p172 = scmp.lt.s32.totalorder %s171, 15
      %s173 = scalar_select %p172, %s171, 15
      %s174 = smul.addr %s173, 4
      %s175 = scalar_lea.vmem %s3, %s174
      %s176 = smul.u32 8, %s14
      %v178 = vld [vmem:[%s169] sm:$0xff]
      %v179 = vld [vmem:[%s169 + $0x8] sm:$0xff]
      %v180 = vld [vmem:[%s169 + $0x10] sm:$0xff]
      %v181 = vld [vmem:[%s169 + $0x18] sm:$0xff]
      %v182 = vld [vmem:[%s169 + $0x20] sm:$0xff]
      %v183 = vld [vmem:[%s169 + $0x28] sm:$0xff]
      %v184 = vld [vmem:[%s169 + $0x30] sm:$0xff]
      %v185 = vld [vmem:[%s169 + $0x38] sm:$0xff]
      %v186 = vld [vmem:[%s1] sm:$0xf]
      %v187 = vld [vmem:[%s1 + $0x4] sm:$0xf]
      %v188 = vld [vmem:[%s1 + $0x8] sm:$0xf]
      %v189 = vld [vmem:[%s1 + $0xc] sm:$0xf]
      %v190 = vld [vmem:[%s1 + $0x10] sm:$0xf]
      %v191 = vld [vmem:[%s1 + $0x14] sm:$0xf]
      %v192 = vld [vmem:[%s1 + $0x18] sm:$0xf]
      %v193 = vld [vmem:[%s1 + $0x1c] sm:$0xf]
      %v194 = vld [vmem:[%s1 + $0x20] sm:$0xf]
      %v195 = vld [vmem:[%s1 + $0x24] sm:$0xf]
      %v196 = vld [vmem:[%s1 + $0x28] sm:$0xf]
      %v197 = vld [vmem:[%s1 + $0x2c] sm:$0xf]
      %v198 = vld [vmem:[%s1 + $0x30] sm:$0xf]
      %v199 = vld [vmem:[%s1 + $0x34] sm:$0xf]
      %v200 = vld [vmem:[%s1 + $0x38] sm:$0xf]
      %v201 = vld [vmem:[%s1 + $0x3c] sm:$0xf]
      %v202 = vld [vmem:[%s1 + $0x40] sm:$0xf]
      %v203 = vld [vmem:[%s1 + $0x44] sm:$0xf]
      %v204 = vld [vmem:[%s1 + $0x48] sm:$0xf]
      %v205 = vld [vmem:[%s1 + $0x4c] sm:$0xf]
      %v206 = vld [vmem:[%s1 + $0x50] sm:$0xf]
      %v207 = vld [vmem:[%s1 + $0x54] sm:$0xf]
      %v208 = vld [vmem:[%s1 + $0x58] sm:$0xf]
      %v209 = vld [vmem:[%s1 + $0x5c] sm:$0xf]
      %v210 = vld [vmem:[%s1 + $0x60] sm:$0xf]
      %v211 = vld [vmem:[%s1 + $0x64] sm:$0xf]
      %v212 = vld [vmem:[%s1 + $0x68] sm:$0xf]
      %v213 = vld [vmem:[%s1 + $0x6c] sm:$0xf]
      %v214 = vld [vmem:[%s1 + $0x70] sm:$0xf]
      %v215 = vld [vmem:[%s1 + $0x74] sm:$0xf]
      %v216 = vld [vmem:[%s1 + $0x78] sm:$0xf]
      %v217 = vld [vmem:[%s1 + $0x7c] sm:$0xf]
      %v218 = vld [vmem:[%s2] sm:$0x1]
      %v220 = vlaneseq
      %v221 = vshrl.u32 %v220, 7
      %v222 = vsub.s32 0, %v221
      %v223 = vrot.slane %v218, %v222
      %v233 = vunpack.c.l.b16 %v178
      %v234 = vunpack.c.h.b16 %v178
      %v235 = vunpack.c.l.b16 %v179
      %v236 = vunpack.c.h.b16 %v179
      %v237 = vunpack.c.l.b16 %v180
      %v238 = vunpack.c.h.b16 %v180
      %v239 = vunpack.c.l.b16 %v181
      %v240 = vunpack.c.h.b16 %v181
      %v241 = vunpack.c.l.b16 %v182
      %v242 = vunpack.c.h.b16 %v182
      %v243 = vunpack.c.l.b16 %v183
      %v244 = vunpack.c.h.b16 %v183
      %v245 = vunpack.c.l.b16 %v184
      %v246 = vunpack.c.h.b16 %v184
      %v247 = vunpack.c.l.b16 %v185
      %v248 = vunpack.c.h.b16 %v185
      %v249 = vpack.c.b16 %v235, %v233
      %v250 = vpack.c.b16 %v236, %v234
      %v251 = vpack.c.b16 %v239, %v237
      %v252 = vpack.c.b16 %v240, %v238
      %v253 = vpack.c.b16 %v243, %v241
      %v254 = vpack.c.b16 %v244, %v242
      %v255 = vpack.c.b16 %v247, %v245
      %v256 = vpack.c.b16 %v248, %v246
      %v297 = vunpack.c.l.b16 %v186
      %v298 = vunpack.c.l.b16 %v187
      %v299 = vunpack.c.l.b16 %v188
      %v300 = vunpack.c.l.b16 %v189
      %v301 = vunpack.c.l.b16 %v190
      %v302 = vunpack.c.l.b16 %v191
      %v303 = vunpack.c.l.b16 %v192
      %v304 = vunpack.c.l.b16 %v193
      %v305 = vunpack.c.l.b16 %v194
      %v306 = vunpack.c.l.b16 %v195
      %v307 = vunpack.c.l.b16 %v196
      %v308 = vunpack.c.l.b16 %v197
      %v309 = vunpack.c.l.b16 %v198
      %v310 = vunpack.c.l.b16 %v199
      %v311 = vunpack.c.l.b16 %v200
      %v312 = vunpack.c.l.b16 %v201
      %v313 = vunpack.c.l.b16 %v202
      %v314 = vunpack.c.l.b16 %v203
      %v315 = vunpack.c.l.b16 %v204
      %v316 = vunpack.c.l.b16 %v205
      %v317 = vunpack.c.l.b16 %v206
      %v318 = vunpack.c.l.b16 %v207
      %v319 = vunpack.c.l.b16 %v208
      %v320 = vunpack.c.l.b16 %v209
      %v321 = vunpack.c.l.b16 %v210
      %v322 = vunpack.c.l.b16 %v211
      %v323 = vunpack.c.l.b16 %v212
      %v324 = vunpack.c.l.b16 %v213
      %v325 = vunpack.c.l.b16 %v214
      %v326 = vunpack.c.l.b16 %v215
      %v327 = vunpack.c.l.b16 %v216
      %v328 = vunpack.c.l.b16 %v217
      %v329 = vpack.c.b16 %v298, %v297
      %v330 = vpack.c.b16 %v300, %v299
      %v331 = vpack.c.b16 %v302, %v301
      %v332 = vpack.c.b16 %v304, %v303
      %v333 = vpack.c.b16 %v306, %v305
      %v334 = vpack.c.b16 %v308, %v307
      %v335 = vpack.c.b16 %v310, %v309
      %v336 = vpack.c.b16 %v312, %v311
      %v337 = vpack.c.b16 %v314, %v313
      %v338 = vpack.c.b16 %v316, %v315
      %v339 = vpack.c.b16 %v318, %v317
      %v340 = vpack.c.b16 %v320, %v319
      %v341 = vpack.c.b16 %v322, %v321
      %v342 = vpack.c.b16 %v324, %v323
      %v343 = vpack.c.b16 %v326, %v325
      %v344 = vpack.c.b16 %v328, %v327
      %361 = vmatprep.subr.bf16.mxu0 0
      %362 = vmatpush1.bf16.msra.mxu0 %v329
      %363 = vmatprep.subr.bf16.mxu0 0
      %364 = vmatpush1.bf16.msra.mxu0 %v330
      %365 = vmatprep.subr.bf16.mxu0 0
      %366 = vmatpush1.bf16.msra.mxu0 %v331
      %367 = vmatprep.subr.bf16.mxu0 0
      %368 = vmatpush1.bf16.msra.mxu0 %v332
      %369 = vmatprep.subr.bf16.mxu0 0
      %370 = vmatpush1.bf16.msra.mxu0 %v333
      %371 = vmatprep.subr.bf16.mxu0 0
      %372 = vmatpush1.bf16.msra.mxu0 %v334
      %373 = vmatprep.subr.bf16.mxu0 0
      %374 = vmatpush1.bf16.msra.mxu0 %v335
      %375 = vmatprep.subr.bf16.mxu0 0
      %376 = vmatpush1.bf16.msra.mxu0 %v336
      %377 = vmatprep.subr.bf16.mxu0 0
      %378 = vmatpush1.bf16.msra.mxu0 %v337
      %379 = vmatprep.subr.bf16.mxu0 0
      %380 = vmatpush1.bf16.msra.mxu0 %v338
      %381 = vmatprep.subr.bf16.mxu0 0
      %382 = vmatpush1.bf16.msra.mxu0 %v339
      %383 = vmatprep.subr.bf16.mxu0 0
      %384 = vmatpush1.bf16.msra.mxu0 %v340
      %385 = vmatprep.subr.bf16.mxu0 0
      %386 = vmatpush1.bf16.msra.mxu0 %v341
      %387 = vmatprep.subr.bf16.mxu0 0
      %388 = vmatpush1.bf16.msra.mxu0 %v342
      %389 = vmatprep.subr.bf16.mxu0 0
      %390 = vmatpush1.bf16.msra.mxu0 %v343
      %391 = vmatprep.subr.bf16.mxu0 0
      %392 = vmatpush1.bf16.msra.mxu0 %v344
      %393 = vmatprep.mubr.bf16.mxu0 %v250
      %394 = vmatmul.mubr.bf16.gmra.mrb[0].mxu0 %v249
      %v395 = vpop.f32.mrb[0].mxu0
      %v396 = vadd.f32 %v223, %v395
      %v397 = vpop.f32.mrb[0].mxu0
      %v398 = vpop.f32.mrb[0].mxu0
      %v399 = vadd.f32 %v223, %v398
      %v400 = vpop.f32.mrb[0].mxu0
      %401 = vmatprep.mubr.bf16.mxu0 %v252
      %402 = vmatmul.mubr.bf16.gmra.mrb[0].mxu0 %v251
      %v403 = vpop.f32.mrb[0].mxu0
      %v404 = vadd.f32 %v223, %v403
      %v405 = vpop.f32.mrb[0].mxu0
      %v406 = vpop.f32.mrb[0].mxu0
      %v407 = vadd.f32 %v223, %v406
      %v408 = vpop.f32.mrb[0].mxu0
      %409 = vmatprep.mubr.bf16.mxu0 %v254
      %410 = vmatmul.mubr.bf16.gmra.mrb[0].mxu0 %v253
      %v411 = vpop.f32.mrb[0].mxu0
      %v412 = vadd.f32 %v223, %v411
      %v413 = vpop.f32.mrb[0].mxu0
      %v414 = vpop.f32.mrb[0].mxu0
      %v415 = vadd.f32 %v223, %v414
      %v416 = vpop.f32.mrb[0].mxu0
      %417 = vmatprep.mubr.bf16.mxu0 %v256
      %418 = vmatmul.mubr.bf16.gmra.mrb[0].mxu0 %v255
      %v419 = vpop.f32.mrb[0].mxu0
      %v420 = vadd.f32 %v223, %v419
      %v421 = vpop.f32.mrb[0].mxu0
      %v422 = vpop.f32.mrb[0].mxu0
      %v423 = vadd.f32 %v223, %v422
      %v424 = vpop.f32.mrb[0].mxu0
      %425 = vdwg.mxu0
      %v426 = vmax.f32 %v396, 0.0
      %v427 = vmax.f32 %v399, 0.0
      %v428 = vmax.f32 %v404, 0.0
      %v429 = vmax.f32 %v407, 0.0
      %v430 = vmax.f32 %v412, 0.0
      %v431 = vmax.f32 %v415, 0.0
      %v432 = vmax.f32 %v420, 0.0
      %v433 = vmax.f32 %v423, 0.0
      %v434 = vpack.c.bf16 %v427, %v426
      %v435 = vpack.c.bf16 %v429, %v428
      %v436 = vpack.c.bf16 %v431, %v430
      %v437 = vpack.c.bf16 %v433, %v432
      %v442 = vunpack.c.l.b16 %v434
      %v443 = vunpack.c.h.b16 %v434
      %v444 = vunpack.c.l.b16 %v435
      %v445 = vunpack.c.h.b16 %v435
      %v446 = vunpack.c.l.b16 %v436
      %v447 = vunpack.c.h.b16 %v436
      %v448 = vunpack.c.l.b16 %v437
      %v449 = vunpack.c.h.b16 %v437
      %v450 = vpack.c.b16 %v442, %v442
      %v451 = vpack.c.b16 %v443, %v443
      %v452 = vpack.c.b16 %v444, %v444
      %v453 = vpack.c.b16 %v445, %v445
      %v454 = vpack.c.b16 %v446, %v446
      %v455 = vpack.c.b16 %v447, %v447
      %v456 = vpack.c.b16 %v448, %v448
      %v457 = vpack.c.b16 %v449, %v449
      %466 = vst [vmem:[%s175] sm:$0xf] %v450
      %467 = vst [vmem:[%s175 + $0x4] sm:$0xf] %v451
      %468 = vst [vmem:[%s175 + $0x8] sm:$0xf] %v452
      %469 = vst [vmem:[%s175 + $0xc] sm:$0xf] %v453
      %470 = vst [vmem:[%s175 + $0x10] sm:$0xf] %v454
      %471 = vst [vmem:[%s175 + $0x14] sm:$0xf] %v455
      %472 = vst [vmem:[%s175 + $0x18] sm:$0xf] %v456
      %473 = vst [vmem:[%s175 + $0x1c] sm:$0xf] %v457
      %s474 = smul.u32 8, %s14
      %p475 = scmp.lt.s32.totalorder %s474, 15
      %s476 = scalar_select %p475, %s474, 15
      %s477 = smul.addr %s476, 4
      %s478 = scalar_lea.vmem %s3, %s477
      // Predicated region
      $region33: #{_lambda_.16} parent=31 // pred_check
        %p479 = pneg %p100
      $region34: #{_lambda_.16} parent=31 // pred_check_branch
        %481 = sbr.rel (%p479) target = $region36
      $region35: #{_lambda_.16} parent=31 // pred_region
        %s482 = smul.u32 8, %s14
      $region36: #{_lambda_.16} parent=31 // pred_fallthru
        _
    $region32: #{_lambda_.16} parent=5 // pred_fallthru
      _
    %p483 = scmp.le.s32.totalorder 2, %s9
    // Predicated region
    $region37: #{_lambda_.16} parent=5 // pred_check
      %p484 = pneg %p483
    $region38: #{_lambda_.16} parent=5 // pred_check_branch
      %486 = sbr.rel (%p484) target = $region40
    $region39: #{_lambda_.16} parent=5 // pred_region
      %s487 = ssub.s32 %s9, 2
      // Predicated region
      $region41: #{_lambda_.16} parent=39 // pred_check
        %p488 = pneg %p106
      $region42: #{_lambda_.16} parent=39 // pred_check_branch
        %490 = sbr.rel (%p488) target = $region44
      $region43: #{_lambda_.16} parent=39 // pred_region
        %s491 = smul.u32 8, %s15
        %p492 = scmp.lt.s32.totalorder %s491, 15
        %s493 = scalar_select %p492, %s491, 15
        %s494 = smul.addr %s493, 4
        %s495 = scalar_lea.vmem %s3, %s494
      $region44: #{_lambda_.16} parent=39 // pred_fallthru
        _
    $region40: #{_lambda_.16} parent=5 // pred_fallthru
      _
  $region6: #{_lambda_.16} parent=0 // loop_footer
    %s13 = sadd.s32 1, %s9
  $region7: #{_lambda_.16} parent=0 // loop_footer_branch
    %8 = sbr.rel target = $region3
  $region8: #{_lambda_.16} parent=0 // loop_exit
    _

// kernel: _lambda_.17
$region0: #{_lambda_.17}
  #allocation0 [shape = 'u32[]', space=smem, size = 0x4, offset = 0x4, fixed_abs, tag = 'smem constant byte address 0x4 - core index']
  #allocation1 [shape = 'u32[144,128]{1,0:T(1,128)}', space=vmem, size = 0x12000, scoped, tag = 'internal scratch']
  %s0 = inlined_call_operand.vmem [shape: bf16[128,128], index: 0, kind: input, shape index: {}]
  %s1 = inlined_call_operand.vmem [shape: bf16[16,128], index: 1, kind: input, shape index: {}]
  %s2 = inlined_call_operand.vmem [shape: f32[16,1], index: 2, kind: input, shape index: {}]
  %s3 = inlined_call_operand.vmem [shape: f32[16,128], index: 3, kind: output, shape index: {}]
  %s4 = sld [smem:[#allocation0]]
  $region22: #{_lambda_.17} parent=0
    _
  %s6 = ssub.s32 1, %s4
  %s7 = scalar_select 0, %s6, %s4
  // Predicated region
  $region2: #{_lambda_.17} parent=0 // pred_check
    _
  $region3: #{_lambda_.17} parent=0 // pred_check_branch
    %9 = sbr.rel (0) target = $region5
  $region4: #{_lambda_.17} parent=0 // pred_region
    _
  $region5: #{_lambda_.17} parent=0 // pred_fallthru
    _
  // Predicated region
  $region6: #{_lambda_.17} parent=0 // pred_check
    _
  $region7: #{_lambda_.17} parent=0 // pred_check_branch
    %11 = sbr.rel (0) target = $region9
  $region8: #{_lambda_.17} parent=0 // pred_region
    _
  $region9: #{_lambda_.17} parent=0 // pred_fallthru
    _
  // Predicated region
  $region10: #{_lambda_.17} parent=0 // pred_check
    _
  $region11: #{_lambda_.17} parent=0 // pred_check_branch
    %13 = sbr.rel (0) target = $region13
  $region12: #{_lambda_.17} parent=0 // pred_region
    _
  $region13: #{_lambda_.17} parent=0 // pred_fallthru
    _
  %v15 = vld [vmem:[%s1] sm:$0xf]
  %v16 = vld [vmem:[%s1 + $0x4] sm:$0xf]
  %v17 = vld [vmem:[%s0] sm:$0xf]
  %v18 = vld [vmem:[%s0 + $0x4] sm:$0xf]
  %v19 = vld [vmem:[%s0 + $0x8] sm:$0xf]
  %v20 = vld [vmem:[%s0 + $0xc] sm:$0xf]
  %v21 = vld [vmem:[%s0 + $0x10] sm:$0xf]
  %v22 = vld [vmem:[%s0 + $0x14] sm:$0xf]
  %v23 = vld [vmem:[%s0 + $0x18] sm:$0xf]
  %v24 = vld [vmem:[%s0 + $0x1c] sm:$0xf]
  %v25 = vld [vmem:[%s0 + $0x20] sm:$0xf]
  %v26 = vld [vmem:[%s0 + $0x24] sm:$0xf]
  %v27 = vld [vmem:[%s0 + $0x28] sm:$0xf]
  %v28 = vld [vmem:[%s0 + $0x2c] sm:$0xf]
  %v29 = vld [vmem:[%s0 + $0x30] sm:$0xf]
  %v30 = vld [vmem:[%s0 + $0x34] sm:$0xf]
  %v31 = vld [vmem:[%s0 + $0x38] sm:$0xf]
  %v32 = vld [vmem:[%s0 + $0x3c] sm:$0xf]
  %v33 = vld [vmem:[%s2] sm:$0xff]
  %v34 = vld [vmem:[%s2 + $0x8] sm:$0xff]
  %36 = vset.pattern.permute.xlu0 0
  %37 = vperm.xlu0 %36, %v33
  %v38 = vpop.permute.xlu0 %37
  %41 = vset.pattern.permute.xlu0 0
  %42 = vperm.xlu0 %41, %v34
  %v43 = vpop.permute.xlu0 %42
  %v47 = vunpack.c.l.b16 %v15
  %v48 = vunpack.c.l.b16 %v16
  %v49 = vpack.c.b16 %v48, %v47
  %v67 = vunpack.c.l.b16 %v17
  %v68 = vunpack.c.l.b16 %v18
  %v69 = vunpack.c.l.b16 %v19
  %v70 = vunpack.c.l.b16 %v20
  %v71 = vunpack.c.l.b16 %v21
  %v72 = vunpack.c.l.b16 %v22
  %v73 = vunpack.c.l.b16 %v23
  %v74 = vunpack.c.l.b16 %v24
  %v75 = vunpack.c.l.b16 %v25
  %v76 = vunpack.c.l.b16 %v26
  %v77 = vunpack.c.l.b16 %v27
  %v78 = vunpack.c.l.b16 %v28
  %v79 = vunpack.c.l.b16 %v29
  %v80 = vunpack.c.l.b16 %v30
  %v81 = vunpack.c.l.b16 %v31
  %v82 = vunpack.c.l.b16 %v32
  %v83 = vpack.c.b16 %v68, %v67
  %v84 = vpack.c.b16 %v70, %v69
  %v85 = vpack.c.b16 %v72, %v71
  %v86 = vpack.c.b16 %v74, %v73
  %v87 = vpack.c.b16 %v76, %v75
  %v88 = vpack.c.b16 %v78, %v77
  %v89 = vpack.c.b16 %v80, %v79
  %v90 = vpack.c.b16 %v82, %v81
  %99 = vmatprep.subr.bf16.mxu0 0
  %100 = vmatpush1.bf16.msra.mxu0 %v83
  %101 = vmatprep.subr.bf16.mxu0 0
  %102 = vmatpush1.bf16.msra.mxu0 %v84
  %103 = vmatprep.subr.bf16.mxu0 0
  %104 = vmatpush1.bf16.msra.mxu0 %v85
  %105 = vmatprep.subr.bf16.mxu0 0
  %106 = vmatpush1.bf16.msra.mxu0 %v86
  %107 = vmatprep.subr.bf16.mxu0 0
  %108 = vmatpush1.bf16.msra.mxu0 %v87
  %109 = vmatprep.subr.bf16.mxu0 0
  %110 = vmatpush1.bf16.msra.mxu0 %v88
  %111 = vmatprep.subr.bf16.mxu0 0
  %112 = vmatpush1.bf16.msra.mxu0 %v89
  %113 = vmatprep.subr.bf16.mxu0 0
  %114 = vmatpush1.bf16.msra.mxu0 %v90
  %115 = vmatprep.subr.bf16.mxu0 0
  %116 = vmatpush1.bf16.msra.mxu0 0
  %117 = vmatprep.subr.bf16.mxu0 0
  %118 = vmatpush1.bf16.msra.mxu0 0
  %119 = vmatprep.subr.bf16.mxu0 0
  %120 = vmatpush1.bf16.msra.mxu0 0
  %121 = vmatprep.subr.bf16.mxu0 0
  %122 = vmatpush1.bf16.msra.mxu0 0
  %123 = vmatprep.subr.bf16.mxu0 0
  %124 = vmatpush1.bf16.msra.mxu0 0
  %125 = vmatprep.subr.bf16.mxu0 0
  %126 = vmatpush1.bf16.msra.mxu0 0
  %127 = vmatprep.subr.bf16.mxu0 0
  %128 = vmatpush1.bf16.msra.mxu0 0
  %129 = vmatprep.subr.bf16.mxu0 0
  %130 = vmatpush1.bf16.msra.mxu0 0
  %131 = vmatprep.mubr.bf16.mxu0 0
  %132 = vmatmul.mubr.bf16.gmra.mrb[0].mxu0 %v49
  %v133 = vpop.f32.mrb[0].mxu0
  %v134 = vadd.f32 %v38, %v133
  %v135 = vpop.f32.mrb[0].mxu0
  %v136 = vpop.f32.mrb[0].mxu0
  %v137 = vadd.f32 %v43, %v136
  %v138 = vpop.f32.mrb[0].mxu0
  %139 = vdwg.mxu0
  %v140 = vxor.u32 %v134, 2147483648
  %v141 = vmul.f32 %v140, 1.442695
  %v142 = vpow.pop %v141
  %v143 = vadd.f32 %v142, 1.0
  %v144 = vrcp.pop %v143
  %v145 = vmul.f32 1.0, %v144
  %v146 = vmul.f32 %v145, 9.99
  %v147 = vadd.f32 %v146, 0.01
  %v148 = vlaneseq
  %v149 = vshrl.u32 %v148, 7
  %v150 = vadd.s32 %v149, 8
  %vm151 = vcmp.eq.s32.totalorder %v149, 0
  %vm152 = vcmp.eq.s32.totalorder %v150, 0
  %v153 = vlaneseq
  %v154 = vshrl.u32 %v153, 7
  %v155 = vsub.s32 0, %v154
  %v156 = vrot.slane %v147, %v155
  %v157 = vsel %vm151, %v156, %v134
  %v158 = vsel %vm152, %v156, %v137
  %159 = vst [vmem:[%s3] sm:$0xff] %v157
  %160 = vst [vmem:[%s3 + $0x8] sm:$0xff] %v158
  // Predicated region
  $region14: #{_lambda_.17} parent=0 // pred_check
    _
  $region15: #{_lambda_.17} parent=0 // pred_check_branch
    %162 = sbr.rel (0) target = $region17
  $region16: #{_lambda_.17} parent=0 // pred_region
    _
  $region17: #{_lambda_.17} parent=0 // pred_fallthru
    _
  // Predicated region
  $region18: #{_lambda_.17} parent=0 // pred_check
    _
  $region19: #{_lambda_.17} parent=0 // pred_check_branch
    %164 = sbr.rel (0) target = $region21
  $region20: #{_lambda_.17} parent=0 // pred_region
    _
  $region21: #{_lambda_.17} parent=0 // pred_fallthru
    _

// kernel: _lambda_.15
$region0: #{_lambda_.15}
  #allocation0 [shape = 'u32[]', space=smem, size = 0x4, offset = 0x4, fixed_abs, tag = 'smem constant byte address 0x4 - core index']
  #allocation1 [shape = 'u32[144,128]{1,0:T(1,128)}', space=vmem, size = 0x12000, scoped, tag = 'internal scratch']
  %s0 = inlined_call_operand.vmem [shape: bf16[256,128], index: 0, kind: input, shape index: {}]
  %s1 = inlined_call_operand.vmem [shape: bf16[16,256], index: 1, kind: input, shape index: {}]
  %s2 = inlined_call_operand.vmem [shape: f32[16,1], index: 2, kind: input, shape index: {}]
  %s3 = inlined_call_operand.vmem [shape: f32[16,128], index: 3, kind: output, shape index: {}]
  %s4 = sld [smem:[#allocation0]]
  $region22: #{_lambda_.15} parent=0
    _
  %s6 = ssub.s32 1, %s4
  %s7 = scalar_select 0, %s6, %s4
  // Predicated region
  $region2: #{_lambda_.15} parent=0 // pred_check
    _
  $region3: #{_lambda_.15} parent=0 // pred_check_branch
    %9 = sbr.rel (0) target = $region5
  $region4: #{_lambda_.15} parent=0 // pred_region
    _
  $region5: #{_lambda_.15} parent=0 // pred_fallthru
    _
  // Predicated region
  $region6: #{_lambda_.15} parent=0 // pred_check
    _
  $region7: #{_lambda_.15} parent=0 // pred_check_branch
    %11 = sbr.rel (0) target = $region9
  $region8: #{_lambda_.15} parent=0 // pred_region
    _
  $region9: #{_lambda_.15} parent=0 // pred_fallthru
    _
  // Predicated region
  $region10: #{_lambda_.15} parent=0 // pred_check
    _
  $region11: #{_lambda_.15} parent=0 // pred_check_branch
    %13 = sbr.rel (0) target = $region13
  $region12: #{_lambda_.15} parent=0 // pred_region
    _
  $region13: #{_lambda_.15} parent=0 // pred_fallthru
    _
  %v15 = vld [vmem:[%s1] sm:$0xff]
  %v16 = vld [vmem:[%s1 + $0x8] sm:$0xff]
  %v17 = vld [vmem:[%s0] sm:$0xf]
  %v18 = vld [vmem:[%s0 + $0x4] sm:$0xf]
  %v19 = vld [vmem:[%s0 + $0x8] sm:$0xf]
  %v20 = vld [vmem:[%s0 + $0xc] sm:$0xf]
  %v21 = vld [vmem:[%s0 + $0x10] sm:$0xf]
  %v22 = vld [vmem:[%s0 + $0x14] sm:$0xf]
  %v23 = vld [vmem:[%s0 + $0x18] sm:$0xf]
  %v24 = vld [vmem:[%s0 + $0x1c] sm:$0xf]
  %v25 = vld [vmem:[%s0 + $0x20] sm:$0xf]
  %v26 = vld [vmem:[%s0 + $0x24] sm:$0xf]
  %v27 = vld [vmem:[%s0 + $0x28] sm:$0xf]
  %v28 = vld [vmem:[%s0 + $0x2c] sm:$0xf]
  %v29 = vld [vmem:[%s0 + $0x30] sm:$0xf]
  %v30 = vld [vmem:[%s0 + $0x34] sm:$0xf]
  %v31 = vld [vmem:[%s0 + $0x38] sm:$0xf]
  %v32 = vld [vmem:[%s0 + $0x3c] sm:$0xf]
  %v33 = vld [vmem:[%s0 + $0x40] sm:$0xf]
  %v34 = vld [vmem:[%s0 + $0x44] sm:$0xf]
  %v35 = vld [vmem:[%s0 + $0x48] sm:$0xf]
  %v36 = vld [vmem:[%s0 + $0x4c] sm:$0xf]
  %v37 = vld [vmem:[%s0 + $0x50] sm:$0xf]
  %v38 = vld [vmem:[%s0 + $0x54] sm:$0xf]
  %v39 = vld [vmem:[%s0 + $0x58] sm:$0xf]
  %v40 = vld [vmem:[%s0 + $0x5c] sm:$0xf]
  %v41 = vld [vmem:[%s0 + $0x60] sm:$0xf]
  %v42 = vld [vmem:[%s0 + $0x64] sm:$0xf]
  %v43 = vld [vmem:[%s0 + $0x68] sm:$0xf]
  %v44 = vld [vmem:[%s0 + $0x6c] sm:$0xf]
  %v45 = vld [vmem:[%s0 + $0x70] sm:$0xf]
  %v46 = vld [vmem:[%s0 + $0x74] sm:$0xf]
  %v47 = vld [vmem:[%s0 + $0x78] sm:$0xf]
  %v48 = vld [vmem:[%s0 + $0x7c] sm:$0xf]
  %v49 = vld [vmem:[%s2] sm:$0xff]
  %v50 = vld [vmem:[%s2 + $0x8] sm:$0xff]
  %52 = vset.pattern.permute.xlu0 0
  %53 = vperm.xlu0 %52, %v49
  %v54 = vpop.permute.xlu0 %53
  %57 = vset.pattern.permute.xlu0 0
  %58 = vperm.xlu0 %57, %v50
  %v59 = vpop.permute.xlu0 %58
  %v63 = vunpack.c.l.b16 %v15
  %v64 = vunpack.c.h.b16 %v15
  %v65 = vunpack.c.l.b16 %v16
  %v66 = vunpack.c.h.b16 %v16
  %v67 = vpack.c.b16 %v65, %v63
  %v68 = vpack.c.b16 %v66, %v64
  %v103 = vunpack.c.l.b16 %v17
  %v104 = vunpack.c.l.b16 %v18
  %v105 = vunpack.c.l.b16 %v19
  %v106 = vunpack.c.l.b16 %v20
  %v107 = vunpack.c.l.b16 %v21
  %v108 = vunpack.c.l.b16 %v22
  %v109 = vunpack.c.l.b16 %v23
  %v110 = vunpack.c.l.b16 %v24
  %v111 = vunpack.c.l.b16 %v25
  %v112 = vunpack.c.l.b16 %v26
  %v113 = vunpack.c.l.b16 %v27
  %v114 = vunpack.c.l.b16 %v28
  %v115 = vunpack.c.l.b16 %v29
  %v116 = vunpack.c.l.b16 %v30
  %v117 = vunpack.c.l.b16 %v31
  %v118 = vunpack.c.l.b16 %v32
  %v119 = vunpack.c.l.b16 %v33
  %v120 = vunpack.c.l.b16 %v34
  %v121 = vunpack.c.l.b16 %v35
  %v122 = vunpack.c.l.b16 %v36
  %v123 = vunpack.c.l.b16 %v37
  %v124 = vunpack.c.l.b16 %v38
  %v125 = vunpack.c.l.b16 %v39
  %v126 = vunpack.c.l.b16 %v40
  %v127 = vunpack.c.l.b16 %v41
  %v128 = vunpack.c.l.b16 %v42
  %v129 = vunpack.c.l.b16 %v43
  %v130 = vunpack.c.l.b16 %v44
  %v131 = vunpack.c.l.b16 %v45
  %v132 = vunpack.c.l.b16 %v46
  %v133 = vunpack.c.l.b16 %v47
  %v134 = vunpack.c.l.b16 %v48
  %v135 = vpack.c.b16 %v104, %v103
  %v136 = vpack.c.b16 %v106, %v105
  %v137 = vpack.c.b16 %v108, %v107
  %v138 = vpack.c.b16 %v110, %v109
  %v139 = vpack.c.b16 %v112, %v111
  %v140 = vpack.c.b16 %v114, %v113
  %v141 = vpack.c.b16 %v116, %v115
  %v142 = vpack.c.b16 %v118, %v117
  %v143 = vpack.c.b16 %v120, %v119
  %v144 = vpack.c.b16 %v122, %v121
  %v145 = vpack.c.b16 %v124, %v123
  %v146 = vpack.c.b16 %v126, %v125
  %v147 = vpack.c.b16 %v128, %v127
  %v148 = vpack.c.b16 %v130, %v129
  %v149 = vpack.c.b16 %v132, %v131
  %v150 = vpack.c.b16 %v134, %v133
  %167 = vmatprep.subr.bf16.mxu0 0
  %168 = vmatpush1.bf16.msra.mxu0 %v135
  %169 = vmatprep.subr.bf16.mxu0 0
  %170 = vmatpush1.bf16.msra.mxu0 %v136
  %171 = vmatprep.subr.bf16.mxu0 0
  %172 = vmatpush1.bf16.msra.mxu0 %v137
  %173 = vmatprep.subr.bf16.mxu0 0
  %174 = vmatpush1.bf16.msra.mxu0 %v138
  %175 = vmatprep.subr.bf16.mxu0 0
  %176 = vmatpush1.bf16.msra.mxu0 %v139
  %177 = vmatprep.subr.bf16.mxu0 0
  %178 = vmatpush1.bf16.msra.mxu0 %v140
  %179 = vmatprep.subr.bf16.mxu0 0
  %180 = vmatpush1.bf16.msra.mxu0 %v141
  %181 = vmatprep.subr.bf16.mxu0 0
  %182 = vmatpush1.bf16.msra.mxu0 %v142
  %183 = vmatprep.subr.bf16.mxu0 0
  %184 = vmatpush1.bf16.msra.mxu0 %v143
  %185 = vmatprep.subr.bf16.mxu0 0
  %186 = vmatpush1.bf16.msra.mxu0 %v144
  %187 = vmatprep.subr.bf16.mxu0 0
  %188 = vmatpush1.bf16.msra.mxu0 %v145
  %189 = vmatprep.subr.bf16.mxu0 0
  %190 = vmatpush1.bf16.msra.mxu0 %v146
  %191 = vmatprep.subr.bf16.mxu0 0
  %192 = vmatpush1.bf16.msra.mxu0 %v147
  %193 = vmatprep.subr.bf16.mxu0 0
  %194 = vmatpush1.bf16.msra.mxu0 %v148
  %195 = vmatprep.subr.bf16.mxu0 0
  %196 = vmatpush1.bf16.msra.mxu0 %v149
  %197 = vmatprep.subr.bf16.mxu0 0
  %198 = vmatpush1.bf16.msra.mxu0 %v150
  %199 = vmatprep.mubr.bf16.mxu0 %v68
  %200 = vmatmul.mubr.bf16.gmra.mrb[0].mxu0 %v67
  %v201 = vpop.f32.mrb[0].mxu0
  %v202 = vadd.f32 %v54, %v201
  %v203 = vpop.f32.mrb[0].mxu0
  %v204 = vpop.f32.mrb[0].mxu0
  %v205 = vadd.f32 %v59, %v204
  %v206 = vpop.f32.mrb[0].mxu0
  %207 = vdwg.mxu0
  %v208 = vxor.u32 %v202, 2147483648
  %v209 = vmul.f32 %v208, 1.442695
  %v210 = vpow.pop %v209
  %v211 = vadd.f32 %v210, 1.0
  %v212 = vrcp.pop %v211
  %v213 = vmul.f32 1.0, %v212
  %v214 = vmul.f32 %v213, 9.99
  %v215 = vadd.f32 %v214, 0.01
  %v216 = vlaneseq
  %v217 = vshrl.u32 %v216, 7
  %v218 = vadd.s32 %v217, 8
  %vm219 = vcmp.eq.s32.totalorder %v217, 0
  %vm220 = vcmp.eq.s32.totalorder %v218, 0
  %v221 = vlaneseq
  %v222 = vshrl.u32 %v221, 7
  %v223 = vsub.s32 0, %v222
  %v224 = vrot.slane %v215, %v223
  %v225 = vsel %vm219, %v224, %v202
  %v226 = vsel %vm220, %v224, %v205
  %227 = vst [vmem:[%s3] sm:$0xff] %v225
  %228 = vst [vmem:[%s3 + $0x8] sm:$0xff] %v226
  // Predicated region
  $region14: #{_lambda_.15} parent=0 // pred_check
    _
  $region15: #{_lambda_.15} parent=0 // pred_check_branch
    %230 = sbr.rel (0) target = $region17
  $region16: #{_lambda_.15} parent=0 // pred_region
    _
  $region17: #{_lambda_.15} parent=0 // pred_fallthru
    _
  // Predicated region
  $region18: #{_lambda_.15} parent=0 // pred_check
    _
  $region19: #{_lambda_.15} parent=0 // pred_check_branch
    %232 = sbr.rel (0) target = $region21
  $region20: #{_lambda_.15} parent=0 // pred_region
    _
  $region21: #{_lambda_.15} parent=0 // pred_fallthru
    _

// kernel: _lambda_.13
$region0: #{_lambda_.13}
  #allocation0 [shape = 'u32[]', space=smem, size = 0x4, offset = 0x4, fixed_abs, tag = 'smem constant byte address 0x4 - core index']
  #allocation1 [shape = 'u32[144,128]{1,0:T(1,128)}', space=vmem, size = 0x12000, scoped, tag = 'internal scratch']
  %s0 = inlined_call_operand.vmem [shape: bf16[384,128], index: 0, kind: input, shape index: {}]
  %s1 = inlined_call_operand.vmem [shape: bf16[16,384], index: 1, kind: input, shape index: {}]
  %s2 = inlined_call_operand.vmem [shape: f32[16,1], index: 2, kind: input, shape index: {}]
  %s3 = inlined_call_operand.vmem [shape: f32[16,128], index: 3, kind: output, shape index: {}]
  %s4 = sld [smem:[#allocation0]]
  $region22: #{_lambda_.13} parent=0
    _
  %s6 = ssub.s32 1, %s4
  %s7 = scalar_select 0, %s6, %s4
  // Predicated region
  $region2: #{_lambda_.13} parent=0 // pred_check
    _
  $region3: #{_lambda_.13} parent=0 // pred_check_branch
    %9 = sbr.rel (0) target = $region5
  $region4: #{_lambda_.13} parent=0 // pred_region
    _
  $region5: #{_lambda_.13} parent=0 // pred_fallthru
    _
  // Predicated region
  $region6: #{_lambda_.13} parent=0 // pred_check
    _
  $region7: #{_lambda_.13} parent=0 // pred_check_branch
    %11 = sbr.rel (0) target = $region9
  $region8: #{_lambda_.13} parent=0 // pred_region
    _
  $region9: #{_lambda_.13} parent=0 // pred_fallthru
    _
  // Predicated region
  $region10: #{_lambda_.13} parent=0 // pred_check
    _
  $region11: #{_lambda_.13} parent=0 // pred_check_branch
    %13 = sbr.rel (0) target = $region13
  $region12: #{_lambda_.13} parent=0 // pred_region
    _
  $region13: #{_lambda_.13} parent=0 // pred_fallthru
    _
  %v15 = vld [vmem:[%s1] sm:$0xff]
  %v16 = vld [vmem:[%s1 + $0x8] sm:$0xf]
  %v17 = vld [vmem:[%s1 + $0xc] sm:$0xff]
  %v18 = vld [vmem:[%s1 + $0x14] sm:$0xf]
  %v19 = vld [vmem:[%s0] sm:$0xf]
  %v20 = vld [vmem:[%s0 + $0x4] sm:$0xf]
  %v21 = vld [vmem:[%s0 + $0x8] sm:$0xf]
  %v22 = vld [vmem:[%s0 + $0xc] sm:$0xf]
  %v23 = vld [vmem:[%s0 + $0x10] sm:$0xf]
  %v24 = vld [vmem:[%s0 + $0x14] sm:$0xf]
  %v25 = vld [vmem:[%s0 + $0x18] sm:$0xf]
  %v26 = vld [vmem:[%s0 + $0x1c] sm:$0xf]
  %v27 = vld [vmem:[%s0 + $0x20] sm:$0xf]
  %v28 = vld [vmem:[%s0 + $0x24] sm:$0xf]
  %v29 = vld [vmem:[%s0 + $0x28] sm:$0xf]
  %v30 = vld [vmem:[%s0 + $0x2c] sm:$0xf]
  %v31 = vld [vmem:[%s0 + $0x30] sm:$0xf]
  %v32 = vld [vmem:[%s0 + $0x34] sm:$0xf]
  %v33 = vld [vmem:[%s0 + $0x38] sm:$0xf]
  %v34 = vld [vmem:[%s0 + $0x3c] sm:$0xf]
  %v35 = vld [vmem:[%s0 + $0x40] sm:$0xf]
  %v36 = vld [vmem:[%s0 + $0x44] sm:$0xf]
  %v37 = vld [vmem:[%s0 + $0x48] sm:$0xf]
  %v38 = vld [vmem:[%s0 + $0x4c] sm:$0xf]
  %v39 = vld [vmem:[%s0 + $0x50] sm:$0xf]
  %v40 = vld [vmem:[%s0 + $0x54] sm:$0xf]
  %v41 = vld [vmem:[%s0 + $0x58] sm:$0xf]
  %v42 = vld [vmem:[%s0 + $0x5c] sm:$0xf]
  %v43 = vld [vmem:[%s0 + $0x60] sm:$0xf]
  %v44 = vld [vmem:[%s0 + $0x64] sm:$0xf]
  %v45 = vld [vmem:[%s0 + $0x68] sm:$0xf]
  %v46 = vld [vmem:[%s0 + $0x6c] sm:$0xf]
  %v47 = vld [vmem:[%s0 + $0x70] sm:$0xf]
  %v48 = vld [vmem:[%s0 + $0x74] sm:$0xf]
  %v49 = vld [vmem:[%s0 + $0x78] sm:$0xf]
  %v50 = vld [vmem:[%s0 + $0x7c] sm:$0xf]
  %v51 = vld [vmem:[%s0 + $0x80] sm:$0xf]
  %v52 = vld [vmem:[%s0 + $0x84] sm:$0xf]
  %v53 = vld [vmem:[%s0 + $0x88] sm:$0xf]
  %v54 = vld [vmem:[%s0 + $0x8c] sm:$0xf]
  %v55 = vld [vmem:[%s0 + $0x90] sm:$0xf]
  %v56 = vld [vmem:[%s0 + $0x94] sm:$0xf]
  %v57 = vld [vmem:[%s0 + $0x98] sm:$0xf]
  %v58 = vld [vmem:[%s0 + $0x9c] sm:$0xf]
  %v59 = vld [vmem:[%s0 + $0xa0] sm:$0xf]
  %v60 = vld [vmem:[%s0 + $0xa4] sm:$0xf]
  %v61 = vld [vmem:[%s0 + $0xa8] sm:$0xf]
  %v62 = vld [vmem:[%s0 + $0xac] sm:$0xf]
  %v63 = vld [vmem:[%s0 + $0xb0] sm:$0xf]
  %v64 = vld [vmem:[%s0 + $0xb4] sm:$0xf]
  %v65 = vld [vmem:[%s0 + $0xb8] sm:$0xf]
  %v66 = vld [vmem:[%s0 + $0xbc] sm:$0xf]
  %v67 = vld [vmem:[%s2] sm:$0xff]
  %v68 = vld [vmem:[%s2 + $0x8] sm:$0xff]
  %70 = vset.pattern.permute.xlu0 0
  %71 = vperm.xlu0 %70, %v67
  %v72 = vpop.permute.xlu0 %71
  %75 = vset.pattern.permute.xlu0 0
  %76 = vperm.xlu0 %75, %v68
  %v77 = vpop.permute.xlu0 %76
  %v83 = vunpack.c.l.b16 %v15
  %v84 = vunpack.c.h.b16 %v15
  %v85 = vunpack.c.l.b16 %v16
  %v86 = vunpack.c.l.b16 %v17
  %v87 = vunpack.c.h.b16 %v17
  %v88 = vunpack.c.l.b16 %v18
  %v89 = vpack.c.b16 %v86, %v83
  %v90 = vpack.c.b16 %v87, %v84
  %v91 = vpack.c.b16 %v88, %v85
  %v143 = vunpack.c.l.b16 %v19
  %v144 = vunpack.c.l.b16 %v20
  %v145 = vunpack.c.l.b16 %v21
  %v146 = vunpack.c.l.b16 %v22
  %v147 = vunpack.c.l.b16 %v23
  %v148 = vunpack.c.l.b16 %v24
  %v149 = vunpack.c.l.b16 %v25
  %v150 = vunpack.c.l.b16 %v26
  %v151 = vunpack.c.l.b16 %v27
  %v152 = vunpack.c.l.b16 %v28
  %v153 = vunpack.c.l.b16 %v29
  %v154 = vunpack.c.l.b16 %v30
  %v155 = vunpack.c.l.b16 %v31
  %v156 = vunpack.c.l.b16 %v32
  %v157 = vunpack.c.l.b16 %v33
  %v158 = vunpack.c.l.b16 %v34
  %v159 = vunpack.c.l.b16 %v35
  %v160 = vunpack.c.l.b16 %v36
  %v161 = vunpack.c.l.b16 %v37
  %v162 = vunpack.c.l.b16 %v38
  %v163 = vunpack.c.l.b16 %v39
  %v164 = vunpack.c.l.b16 %v40
  %v165 = vunpack.c.l.b16 %v41
  %v166 = vunpack.c.l.b16 %v42
  %v167 = vunpack.c.l.b16 %v43
  %v168 = vunpack.c.l.b16 %v44
  %v169 = vunpack.c.l.b16 %v45
  %v170 = vunpack.c.l.b16 %v46
  %v171 = vunpack.c.l.b16 %v47
  %v172 = vunpack.c.l.b16 %v48
  %v173 = vunpack.c.l.b16 %v49
  %v174 = vunpack.c.l.b16 %v50
  %v175 = vunpack.c.l.b16 %v51
  %v176 = vunpack.c.l.b16 %v52
  %v177 = vunpack.c.l.b16 %v53
  %v178 = vunpack.c.l.b16 %v54
  %v179 = vunpack.c.l.b16 %v55
  %v180 = vunpack.c.l.b16 %v56
  %v181 = vunpack.c.l.b16 %v57
  %v182 = vunpack.c.l.b16 %v58
  %v183 = vunpack.c.l.b16 %v59
  %v184 = vunpack.c.l.b16 %v60
  %v185 = vunpack.c.l.b16 %v61
  %v186 = vunpack.c.l.b16 %v62
  %v187 = vunpack.c.l.b16 %v63
  %v188 = vunpack.c.l.b16 %v64
  %v189 = vunpack.c.l.b16 %v65
  %v190 = vunpack.c.l.b16 %v66
  %v191 = vpack.c.b16 %v144, %v143
  %v192 = vpack.c.b16 %v146, %v145
  %v193 = vpack.c.b16 %v148, %v147
  %v194 = vpack.c.b16 %v150, %v149
  %v195 = vpack.c.b16 %v152, %v151
  %v196 = vpack.c.b16 %v154, %v153
  %v197 = vpack.c.b16 %v156, %v155
  %v198 = vpack.c.b16 %v158, %v157
  %v199 = vpack.c.b16 %v160, %v159
  %v200 = vpack.c.b16 %v162, %v161
  %v201 = vpack.c.b16 %v164, %v163
  %v202 = vpack.c.b16 %v166, %v165
  %v203 = vpack.c.b16 %v168, %v167
  %v204 = vpack.c.b16 %v170, %v169
  %v205 = vpack.c.b16 %v172, %v171
  %v206 = vpack.c.b16 %v174, %v173
  %v207 = vpack.c.b16 %v176, %v175
  %v208 = vpack.c.b16 %v178, %v177
  %v209 = vpack.c.b16 %v180, %v179
  %v210 = vpack.c.b16 %v182, %v181
  %v211 = vpack.c.b16 %v184, %v183
  %v212 = vpack.c.b16 %v186, %v185
  %v213 = vpack.c.b16 %v188, %v187
  %v214 = vpack.c.b16 %v190, %v189
  %239 = vmatprep.subr.bf16.mxu0 0
  %240 = vmatpush1.bf16.msra.mxu0 %v191
  %241 = vmatprep.subr.bf16.mxu0 0
  %242 = vmatpush1.bf16.msra.mxu0 %v192
  %243 = vmatprep.subr.bf16.mxu0 0
  %244 = vmatpush1.bf16.msra.mxu0 %v193
  %245 = vmatprep.subr.bf16.mxu0 0
  %246 = vmatpush1.bf16.msra.mxu0 %v194
  %247 = vmatprep.subr.bf16.mxu0 0
  %248 = vmatpush1.bf16.msra.mxu0 %v195
  %249 = vmatprep.subr.bf16.mxu0 0
  %250 = vmatpush1.bf16.msra.mxu0 %v196
  %251 = vmatprep.subr.bf16.mxu0 0
  %252 = vmatpush1.bf16.msra.mxu0 %v197
  %253 = vmatprep.subr.bf16.mxu0 0
  %254 = vmatpush1.bf16.msra.mxu0 %v198
  %255 = vmatprep.subr.bf16.mxu0 0
  %256 = vmatpush1.bf16.msra.mxu0 %v199
  %257 = vmatprep.subr.bf16.mxu0 0
  %258 = vmatpush1.bf16.msra.mxu0 %v200
  %259 = vmatprep.subr.bf16.mxu0 0
  %260 = vmatpush1.bf16.msra.mxu0 %v201
  %261 = vmatprep.subr.bf16.mxu0 0
  %262 = vmatpush1.bf16.msra.mxu0 %v202
  %263 = vmatprep.subr.bf16.mxu0 0
  %264 = vmatpush1.bf16.msra.mxu0 %v203
  %265 = vmatprep.subr.bf16.mxu0 0
  %266 = vmatpush1.bf16.msra.mxu0 %v204
  %267 = vmatprep.subr.bf16.mxu0 0
  %268 = vmatpush1.bf16.msra.mxu0 %v205
  %269 = vmatprep.subr.bf16.mxu0 0
  %270 = vmatpush1.bf16.msra.mxu0 %v206
  %271 = vmatprep.mubr.bf16.mxu0 %v90
  %272 = vmatmul.mubr.bf16.gmra.mrb[0].mxu0 %v89
  %v273 = vpop.f32.mrb[0].mxu0
  %v274 = vadd.f32 %v72, %v273
  %v275 = vpop.f32.mrb[0].mxu0
  %v276 = vpop.f32.mrb[0].mxu0
  %v277 = vadd.f32 %v77, %v276
  %v278 = vpop.f32.mrb[0].mxu0
  %279 = vdwg.mxu0
  %280 = vmatprep.subr.bf16.mxu0 0
  %281 = vmatpush1.bf16.msra.mxu0 %v207
  %282 = vmatprep.subr.bf16.mxu0 0
  %283 = vmatpush1.bf16.msra.mxu0 %v208
  %284 = vmatprep.subr.bf16.mxu0 0
  %285 = vmatpush1.bf16.msra.mxu0 %v209
  %286 = vmatprep.subr.bf16.mxu0 0
  %287 = vmatpush1.bf16.msra.mxu0 %v210
  %288 = vmatprep.subr.bf16.mxu0 0
  %289 = vmatpush1.bf16.msra.mxu0 %v211
  %290 = vmatprep.subr.bf16.mxu0 0
  %291 = vmatpush1.bf16.msra.mxu0 %v212
  %292 = vmatprep.subr.bf16.mxu0 0
  %293 = vmatpush1.bf16.msra.mxu0 %v213
  %294 = vmatprep.subr.bf16.mxu0 0
  %295 = vmatpush1.bf16.msra.mxu0 %v214
  %296 = vmatprep.subr.bf16.mxu0 0
  %297 = vmatpush1.bf16.msra.mxu0 0
  %298 = vmatprep.subr.bf16.mxu0 0
  %299 = vmatpush1.bf16.msra.mxu0 0
  %300 = vmatprep.subr.bf16.mxu0 0
  %301 = vmatpush1.bf16.msra.mxu0 0
  %302 = vmatprep.subr.bf16.mxu0 0
  %303 = vmatpush1.bf16.msra.mxu0 0
  %304 = vmatprep.subr.bf16.mxu0 0
  %305 = vmatpush1.bf16.msra.mxu0 0
  %306 = vmatprep.subr.bf16.mxu0 0
  %307 = vmatpush1.bf16.msra.mxu0 0
  %308 = vmatprep.subr.bf16.mxu0 0
  %309 = vmatpush1.bf16.msra.mxu0 0
  %310 = vmatprep.subr.bf16.mxu0 0
  %311 = vmatpush1.bf16.msra.mxu0 0
  %312 = vmatprep.mubr.bf16.mxu0 0
  %313 = vmatmul.mubr.bf16.gmra.mrb[0].mxu0 %v91
  %v314 = vpop.f32.mrb[0].mxu0
  %v315 = vadd.f32 %v274, %v314
  %v316 = vpop.f32.mrb[0].mxu0
  %v317 = vpop.f32.mrb[0].mxu0
  %v318 = vadd.f32 %v277, %v317
  %v319 = vpop.f32.mrb[0].mxu0
  %320 = vdwg.mxu0
  %v321 = vxor.u32 %v315, 2147483648
  %v322 = vmul.f32 %v321, 1.442695
  %v323 = vpow.pop %v322
  %v324 = vadd.f32 %v323, 1.0
  %v325 = vrcp.pop %v324
  %v326 = vmul.f32 1.0, %v325
  %v327 = vmul.f32 %v326, 9.99
  %v328 = vadd.f32 %v327, 0.01
  %v329 = vlaneseq
  %v330 = vshrl.u32 %v329, 7
  %v331 = vadd.s32 %v330, 8
  %vm332 = vcmp.eq.s32.totalorder %v330, 0
  %vm333 = vcmp.eq.s32.totalorder %v331, 0
  %v334 = vlaneseq
  %v335 = vshrl.u32 %v334, 7
  %v336 = vsub.s32 0, %v335
  %v337 = vrot.slane %v328, %v336
  %v338 = vsel %vm332, %v337, %v315
  %v339 = vsel %vm333, %v337, %v318
  %340 = vst [vmem:[%s3] sm:$0xff] %v338
  %341 = vst [vmem:[%s3 + $0x8] sm:$0xff] %v339
  // Predicated region
  $region14: #{_lambda_.13} parent=0 // pred_check
    _
  $region15: #{_lambda_.13} parent=0 // pred_check_branch
    %343 = sbr.rel (0) target = $region17
  $region16: #{_lambda_.13} parent=0 // pred_region
    _
  $region17: #{_lambda_.13} parent=0 // pred_fallthru
    _
  // Predicated region
  $region18: #{_lambda_.13} parent=0 // pred_check
    _
  $region19: #{_lambda_.13} parent=0 // pred_check_branch
    %345 = sbr.rel (0) target = $region21
  $region20: #{_lambda_.13} parent=0 // pred_region
    _
  $region21: #{_lambda_.13} parent=0 // pred_fallthru
    _

</llo_original>
